<compile_context>
chip_gen: v5e
topology: v5e:2x2
jax: 0.10.0
libtpu: 0.0.40
codegen_flags: <defaults>
</compile_context>

<pallas_src>
import jax
import jax.numpy as jnp
from jax.experimental import pallas as pl
from jax.experimental.pallas import tpu as pltpu

H = W = 16                     # spatial size (original module implies 256)
H2, W2 = H // 2, W // 2
H4, W4 = H // 4, W // 4
C0, C1, C2 = 3, 64, 128        # input / conv1 / conv2 channels
FC_HID, N_CLS = 256, 2


# ----------------------------- in-kernel helpers ------------------------------

def _conv3x3_relu(pad_ref, w_ref, b_ref, h, w, cin, cout):
    """3x3 'same' conv (+bias, +ReLU) on a zero-padded VMEM scratch.

    pad_ref: (h+2, w+2, cin) zero-padded input, w_ref: (3,3,cin,cout), b_ref: (1,cout).
    Each tap is an (h*w, cin) x (cin, cout) MXU matmul; w is a multiple of 8 so the
    (h, w, cin) -> (h*w, cin) collapse is layout-preserving.
    """
    # Start the accumulator at the broadcast bias: saves a full-tile add at the end.
    acc = jnp.broadcast_to(b_ref[...], (h * w, cout)).astype(jnp.float32)
    for dy in range(3):
        for dx in range(3):
            patch = pad_ref[dy:dy + h, dx:dx + w, :].reshape(h * w, cin)
            acc = acc + jnp.dot(patch, w_ref[dy, dx],
                                preferred_element_type=jnp.float32)
    return jnp.maximum(acc, 0.0).reshape(h, w, cout)


def _maxpool2(a_ref, h, w, c):
    """2x2 stride-2 max-pool of a_ref (h, w, c) -> (h//2, w//2, c).

    W (sublane) axis: two stride-2 ref loads.  H (major) axis: free regroup + max.
    """
    wmax = jnp.maximum(a_ref[:, pl.ds(0, w // 2, 2), :],
                       a_ref[:, pl.ds(1, w // 2, 2), :])     # (h, w//2, c)
    wr = wmax.reshape(h // 2, 2, w // 2, c)                  # major-dim regroup only
    return jnp.maximum(wr[:, 0], wr[:, 1])                   # (h//2, w//2, c)


# ----------------------------- fused kernel -----------------------------------

def cva_net_kernel(x_ref, w1c_ref, b1c_ref, w2c_ref, b2c_ref,
                   w1f_ref, b1f_ref, w2f_ref, b2f_ref, o_ref,
                   pad1_ref, a1_ref, pad2_ref, a2_ref):
    # ---- conv1 (3 -> 64) + ReLU (zero-pad built in VMEM) ----------------------
    pad1_ref[...] = jnp.zeros_like(pad1_ref)
    pad1_ref[1:H + 1, 1:W + 1, :] = x_ref[0]
    a1_ref[...] = _conv3x3_relu(pad1_ref, w1c_ref, b1c_ref, H, W, C0, C1)

    # ---- maxpool 2x2 ----------------------------------------------------------
    p1 = _maxpool2(a1_ref, H, W, C1)                          # (H2, W2, C1)

    # ---- conv2 (64 -> 128) + ReLU --------------------------------------------
    pad2_ref[...] = jnp.zeros_like(pad2_ref)
    pad2_ref[1:H2 + 1, 1:W2 + 1, :] = p1
    a2_ref[...] = _conv3x3_relu(pad2_ref, w2c_ref, b2c_ref, H2, W2, C1, C2)

    # ---- maxpool 2x2 (kept as a value; fed straight into fc1) -----------------
    p2 = _maxpool2(a2_ref, H2, W2, C2)                        # (H4, W4, C2)

    # ---- fc1 (+ReLU) and fc2; torch's NCHW flatten is folded into w1f layout ---
    h1 = b1f_ref[...]                                          # (1, FC_HID)
    for hh in range(H4):
        for ww in range(W4):
            xc = p2[hh, ww:ww + 1, :]                          # (1, C2)
            h1 = h1 + jnp.dot(xc, w1f_ref[hh, ww],
                              preferred_element_type=jnp.float32)
    h1 = jnp.maximum(h1, 0.0)
    out = jnp.dot(h1, w2f_ref[...],
                  preferred_element_type=jnp.float32) + b2f_ref[...]
    o_ref[...] = out.reshape(1, 1, N_CLS)


# ----------------------------- wrapper -----------------------------------------

def cva_net_pallas(x_nhwc, p):
    n = x_nhwc.shape[0]
    out = pl.pallas_call(
        cva_net_kernel,
        out_shape=jax.ShapeDtypeStruct((n, 1, N_CLS), jnp.float32),
        grid=(n,),
        in_specs=[
            pl.BlockSpec((1, H, W, C0), lambda i: (i, 0, 0, 0)),
            pl.BlockSpec((3, 3, C0, C1), lambda i: (0, 0, 0, 0)),
            pl.BlockSpec((1, C1), lambda i: (0, 0)),
            pl.BlockSpec((3, 3, C1, C2), lambda i: (0, 0, 0, 0)),
            pl.BlockSpec((1, C2), lambda i: (0, 0)),
            pl.BlockSpec((H4, W4, C2, FC_HID), lambda i: (0, 0, 0, 0)),
            pl.BlockSpec((1, FC_HID), lambda i: (0, 0)),
            pl.BlockSpec((FC_HID, N_CLS), lambda i: (0, 0)),
            pl.BlockSpec((1, N_CLS), lambda i: (0, 0)),
        ],
        out_specs=pl.BlockSpec((1, 1, N_CLS), lambda i: (i, 0, 0)),
        scratch_shapes=[
            pltpu.VMEM((H + 2, W + 2, C0), jnp.float32),   # padded conv1 input
            pltpu.VMEM((H, W, C1), jnp.float32),           # conv1 activation
            pltpu.VMEM((H2 + 2, W2 + 2, C1), jnp.float32), # padded conv2 input
            pltpu.VMEM((H2, W2, C2), jnp.float32),         # conv2 activation
        ],
        compiler_params=pltpu.CompilerParams(
            dimension_semantics=("parallel",)),
    )(x_nhwc, p["w1c"], p["b1c"], p["w2c"], p["b2c"],
      p["w1f"], p["b1f"], p["w2f"], p["b2f"])
    return out.reshape(n, N_CLS)


@jax.jit
def cva_net_forward(x_nchw, kernel_params):
    # tiny one-op NCHW -> NHWC layout change; all other glue lives in the kernel.
    x = jnp.transpose(x_nchw, (0, 2, 3, 1)).astype(jnp.float32)
    return cva_net_pallas(x, kernel_params)


# ----------------------------- params ------------------------------------------

def init_torch_params(key):
    """Parameters in PyTorch layout (conv: OIHW, linear: (out_features, in_features))."""
    ks = jax.random.split(key, 8)
    f_in = C2 * H4 * W4
    s = 0.05
    return {
        "conv1_w": s * jax.random.normal(ks[0], (C1, C0, 3, 3), jnp.float32),
        "conv1_b": s * jax.random.normal(ks[1], (C1,), jnp.float32),
        "conv2_w": s * jax.random.normal(ks[2], (C2, C1, 3, 3), jnp.float32),
        "conv2_b": s * jax.random.normal(ks[3], (C2,), jnp.float32),
        "fc1_w": s * jax.random.normal(ks[4], (FC_HID, f_in), jnp.float32),
        "fc1_b": s * jax.random.normal(ks[5], (FC_HID,), jnp.float32),
        "fc2_w": s * jax.random.normal(ks[6], (N_CLS, FC_HID), jnp.float32),
        "fc2_b": s * jax.random.normal(ks[7], (N_CLS,), jnp.float32),
    }


def prepare_params(tp):
    """One-time host-side repack: conv OIHW->HWIO and fold torch's CHW flatten order
    into fc1's weight layout (so the kernel consumes NHWC activations directly)."""
    w1f = tp["fc1_w"].reshape(FC_HID, C2, H4, W4).transpose(2, 3, 1, 0)  # (H4,W4,C2,FC_HID)
    return {
        "w1c": tp["conv1_w"].transpose(2, 3, 1, 0),   # (3,3,C0,C1)
        "b1c": tp["conv1_b"].reshape(1, C1),
        "w2c": tp["conv2_w"].transpose(2, 3, 1, 0),   # (3,3,C1,C2)
        "b2c": tp["conv2_b"].reshape(1, C2),
        "w1f": w1f,
        "b1f": tp["fc1_b"].reshape(1, FC_HID),
        "w2f": tp["fc2_w"].T,                          # (FC_HID, N_CLS)
        "b2f": tp["fc2_b"].reshape(1, N_CLS),
    }


# ----------------------------- pure-JAX reference -------------------------------

def reference_forward(x, tp):
    dn = ("NCHW", "OIHW", "NCHW")
    hp = jax.lax.Precision.HIGHEST
    y = jax.lax.conv_general_dilated(x, tp["conv1_w"], (1, 1), "SAME",
                                     dimension_numbers=dn, precision=hp)
    y = jnp.maximum(y + tp["conv1_b"][None, :, None, None], 0.0)
    y = jax.lax.reduce_window(y, -jnp.inf, jax.lax.max,
                              (1, 1, 2, 2), (1, 1, 2, 2), "VALID")
    y = jax.lax.conv_general_dilated(y, tp["conv2_w"], (1, 1), "SAME",
                                     dimension_numbers=dn, precision=hp)
    y = jnp.maximum(y + tp["conv2_b"][None, :, None, None], 0.0)
    y = jax.lax.reduce_window(y, -jnp.inf, jax.lax.max,
                              (1, 1, 2, 2), (1, 1, 2, 2), "VALID")
    y = y.reshape(y.shape[0], -1)                       # torch-style NCHW flatten
    y = jnp.maximum(jnp.dot(y, tp["fc1_w"].T, precision=hp) + tp["fc1_b"], 0.0)
    return jnp.dot(y, tp["fc2_w"].T, precision=hp) + tp["fc2_b"]


# ----------------------------- main ---------------------------------------------

if __name__ == "__main__":
    key = jax.random.PRNGKey(0)
    k_x, k_p = jax.random.split(key)
    N = 2
    x = jax.random.normal(k_x, (N, C0, H, W), jnp.float32)

    torch_params = init_torch_params(k_p)
    kernel_params = prepare_params(torch_params)      # one-time weight repack

    out = cva_net_forward(x, kernel_params)
    out = jax.block_until_ready(out)
    assert out.shape == (N, N_CLS)

    ref = reference_forward(x, torch_params)
    err = float(jnp.max(jnp.abs(out - ref)))
    assert err < 2e-2, f"mismatch vs reference: {err}"

    print("KERNEL_OK")
</pallas_src>

<mosaic_0001>
module attributes {stable_mosaic.version = 11 : i64} {
  func.func @cva_net_kernel(%arg0: i32, %arg1: memref<1x16x16x3xf32, #tpu.memory_space<vmem>>, %arg2: memref<3x3x3x64xf32, #tpu.memory_space<vmem>>, %arg3: memref<1x64xf32, #tpu.memory_space<vmem>>, %arg4: memref<3x3x64x128xf32, #tpu.memory_space<vmem>>, %arg5: memref<1x128xf32, #tpu.memory_space<vmem>>, %arg6: memref<4x4x128x256xf32, #tpu.memory_space<vmem>>, %arg7: memref<1x256xf32, #tpu.memory_space<vmem>>, %arg8: memref<256x2xf32, #tpu.memory_space<vmem>>, %arg9: memref<1x2xf32, #tpu.memory_space<vmem>>, %arg10: memref<1x1x2xf32, #tpu.memory_space<vmem>>, %arg11: memref<18x18x3xf32, #tpu.memory_space<vmem>>, %arg12: memref<16x16x64xf32, #tpu.memory_space<vmem>>, %arg13: memref<10x10x64xf32, #tpu.memory_space<vmem>>, %arg14: memref<8x8x128xf32, #tpu.memory_space<vmem>>) attributes {dimension_semantics = [#tpu.dimension_semantics<parallel>], iteration_bounds = array<i64: 2>, scalar_prefetch = 0 : i64, scratch_operands = 4 : i64, tpu.core_type = #tpu.core_type<tc>, window_params = [{transform_indices = @transform_0, window_bounds = array<i64: 1, 16, 16, 3>}, {pipeline_mode = #tpu.pipeline_mode<synchronous>, transform_indices = @transform_1, window_bounds = array<i64: 3, 3, 3, 64>}, {pipeline_mode = #tpu.pipeline_mode<synchronous>, transform_indices = @transform_2, window_bounds = array<i64: 1, 64>}, {pipeline_mode = #tpu.pipeline_mode<synchronous>, transform_indices = @transform_3, window_bounds = array<i64: 3, 3, 64, 128>}, {pipeline_mode = #tpu.pipeline_mode<synchronous>, transform_indices = @transform_4, window_bounds = array<i64: 1, 128>}, {pipeline_mode = #tpu.pipeline_mode<synchronous>, transform_indices = @transform_5, window_bounds = array<i64: 4, 4, 128, 256>}, {pipeline_mode = #tpu.pipeline_mode<synchronous>, transform_indices = @transform_6, window_bounds = array<i64: 1, 256>}, {pipeline_mode = #tpu.pipeline_mode<synchronous>, transform_indices = @transform_7, window_bounds = array<i64: 256, 2>}, {pipeline_mode = #tpu.pipeline_mode<synchronous>, transform_indices = @transform_8, window_bounds = array<i64: 1, 2>}, {transform_indices = @transform_9, window_bounds = array<i64: 1, 1, 2>}]} {
    %cst = arith.constant 0.000000e+00 : f32
    %0 = vector.broadcast %cst : f32 to vector<18x18x3xf32>
    %c0 = arith.constant 0 : index
    %c0_0 = arith.constant 0 : index
    %c0_1 = arith.constant 0 : index
    %1 = vector.load %arg11[%c0, %c0_0, %c0_1] : memref<18x18x3xf32, #tpu.memory_space<vmem>>, vector<18x18x3xf32>
    tpu.vector_store %arg11[%c0, %c0_0, %c0_1], %0 {strides = array<i32>} : memref<18x18x3xf32, #tpu.memory_space<vmem>>, vector<18x18x3xf32>,
    %c0_2 = arith.constant 0 : index
    %c0_3 = arith.constant 0 : index
    %c0_4 = arith.constant 0 : index
    %c0_5 = arith.constant 0 : index
    %2 = vector.load %arg1[%c0_2, %c0_3, %c0_4, %c0_5] : memref<1x16x16x3xf32, #tpu.memory_space<vmem>>, vector<1x16x16x3xf32>
    %3 = vector.shape_cast %2 : vector<1x16x16x3xf32> to vector<16x16x3xf32>
    %c1 = arith.constant 1 : index
    %c1_6 = arith.constant 1 : index
    %c0_7 = arith.constant 0 : index
    %4 = vector.load %arg11[%c1, %c1_6, %c0_7] : memref<18x18x3xf32, #tpu.memory_space<vmem>>, vector<16x16x3xf32>
    tpu.vector_store %arg11[%c1, %c1_6, %c0_7], %3 {strides = array<i32>} : memref<18x18x3xf32, #tpu.memory_space<vmem>>, vector<16x16x3xf32>,
    %c0_8 = arith.constant 0 : index
    %c0_9 = arith.constant 0 : index
    %5 = vector.load %arg3[%c0_8, %c0_9] : memref<1x64xf32, #tpu.memory_space<vmem>>, vector<1x64xf32>
    %6 = vector.shape_cast %5 : vector<1x64xf32> to vector<1x64xf32>
    %7 = vector.broadcast %6 : vector<1x64xf32> to vector<256x64xf32>
    %c0_10 = arith.constant 0 : index
    %c0_11 = arith.constant 0 : index
    %c0_12 = arith.constant 0 : index
    %8 = vector.load %arg11[%c0_10, %c0_11, %c0_12] : memref<18x18x3xf32, #tpu.memory_space<vmem>>, vector<16x16x3xf32>
    %9 = vector.shape_cast %8 : vector<16x16x3xf32> to vector<256x3xf32>
    %c0_13 = arith.constant 0 : index
    %c0_14 = arith.constant 0 : index
    %c0_15 = arith.constant 0 : index
    %c0_16 = arith.constant 0 : index
    %10 = vector.load %arg2[%c0_13, %c0_14, %c0_15, %c0_16] : memref<3x3x3x64xf32, #tpu.memory_space<vmem>>, vector<1x1x3x64xf32>
    %11 = vector.shape_cast %10 : vector<1x1x3x64xf32> to vector<3x64xf32>
    %cst_17 = arith.constant dense<0.000000e+00> : vector<256x64xf32>
    %12 = tpu.matmul %9, %11, %cst_17 {dimension_numbers = #tpu.dot_dimension_numbers<[1], [0], [0], [1], [0, 0, 1, 1], [], []>} : vector<256x3xf32>, vector<3x64xf32>, vector<256x64xf32> -> vector<256x64xf32>
    %13 = arith.addf %7, %12 : vector<256x64xf32>
    %c0_18 = arith.constant 0 : index
    %c1_19 = arith.constant 1 : index
    %c0_20 = arith.constant 0 : index
    %14 = vector.load %arg11[%c0_18, %c1_19, %c0_20] : memref<18x18x3xf32, #tpu.memory_space<vmem>>, vector<16x16x3xf32>
    %15 = vector.shape_cast %14 : vector<16x16x3xf32> to vector<256x3xf32>
    %c0_21 = arith.constant 0 : index
    %c1_22 = arith.constant 1 : index
    %c0_23 = arith.constant 0 : index
    %c0_24 = arith.constant 0 : index
    %16 = vector.load %arg2[%c0_21, %c1_22, %c0_23, %c0_24] : memref<3x3x3x64xf32, #tpu.memory_space<vmem>>, vector<1x1x3x64xf32>
    %17 = vector.shape_cast %16 : vector<1x1x3x64xf32> to vector<3x64xf32>
    %cst_25 = arith.constant dense<0.000000e+00> : vector<256x64xf32>
    %18 = tpu.matmul %15, %17, %cst_25 {dimension_numbers = #tpu.dot_dimension_numbers<[1], [0], [0], [1], [0, 0, 1, 1], [], []>} : vector<256x3xf32>, vector<3x64xf32>, vector<256x64xf32> -> vector<256x64xf32>
    %19 = arith.addf %13, %18 : vector<256x64xf32>
    %c0_26 = arith.constant 0 : index
    %c2 = arith.constant 2 : index
    %c0_27 = arith.constant 0 : index
    %20 = vector.load %arg11[%c0_26, %c2, %c0_27] : memref<18x18x3xf32, #tpu.memory_space<vmem>>, vector<16x16x3xf32>
    %21 = vector.shape_cast %20 : vector<16x16x3xf32> to vector<256x3xf32>
    %c0_28 = arith.constant 0 : index
    %c2_29 = arith.constant 2 : index
    %c0_30 = arith.constant 0 : index
    %c0_31 = arith.constant 0 : index
    %22 = vector.load %arg2[%c0_28, %c2_29, %c0_30, %c0_31] : memref<3x3x3x64xf32, #tpu.memory_space<vmem>>, vector<1x1x3x64xf32>
    %23 = vector.shape_cast %22 : vector<1x1x3x64xf32> to vector<3x64xf32>
    %cst_32 = arith.constant dense<0.000000e+00> : vector<256x64xf32>
    %24 = tpu.matmul %21, %23, %cst_32 {dimension_numbers = #tpu.dot_dimension_numbers<[1], [0], [0], [1], [0, 0, 1, 1], [], []>} : vector<256x3xf32>, vector<3x64xf32>, vector<256x64xf32> -> vector<256x64xf32>
    %25 = arith.addf %19, %24 : vector<256x64xf32>
    %c1_33 = arith.constant 1 : index
    %c0_34 = arith.constant 0 : index
    %c0_35 = arith.constant 0 : index
    %26 = vector.load %arg11[%c1_33, %c0_34, %c0_35] : memref<18x18x3xf32, #tpu.memory_space<vmem>>, vector<16x16x3xf32>
    %27 = vector.shape_cast %26 : vector<16x16x3xf32> to vector<256x3xf32>
    %c1_36 = arith.constant 1 : index
    %c0_37 = arith.constant 0 : index
    %c0_38 = arith.constant 0 : index
    %c0_39 = arith.constant 0 : index
    %28 = vector.load %arg2[%c1_36, %c0_37, %c0_38, %c0_39] : memref<3x3x3x64xf32, #tpu.memory_space<vmem>>, vector<1x1x3x64xf32>
    %29 = vector.shape_cast %28 : vector<1x1x3x64xf32> to vector<3x64xf32>
    %cst_40 = arith.constant dense<0.000000e+00> : vector<256x64xf32>
    %30 = tpu.matmul %27, %29, %cst_40 {dimension_numbers = #tpu.dot_dimension_numbers<[1], [0], [0], [1], [0, 0, 1, 1], [], []>} : vector<256x3xf32>, vector<3x64xf32>, vector<256x64xf32> -> vector<256x64xf32>
    %31 = arith.addf %25, %30 : vector<256x64xf32>
    %c1_41 = arith.constant 1 : index
    %c1_42 = arith.constant 1 : index
    %c0_43 = arith.constant 0 : index
    %32 = vector.load %arg11[%c1_41, %c1_42, %c0_43] : memref<18x18x3xf32, #tpu.memory_space<vmem>>, vector<16x16x3xf32>
    %33 = vector.shape_cast %32 : vector<16x16x3xf32> to vector<256x3xf32>
    %c1_44 = arith.constant 1 : index
    %c1_45 = arith.constant 1 : index
    %c0_46 = arith.constant 0 : index
    %c0_47 = arith.constant 0 : index
    %34 = vector.load %arg2[%c1_44, %c1_45, %c0_46, %c0_47] : memref<3x3x3x64xf32, #tpu.memory_space<vmem>>, vector<1x1x3x64xf32>
    %35 = vector.shape_cast %34 : vector<1x1x3x64xf32> to vector<3x64xf32>
    %cst_48 = arith.constant dense<0.000000e+00> : vector<256x64xf32>
    %36 = tpu.matmul %33, %35, %cst_48 {dimension_numbers = #tpu.dot_dimension_numbers<[1], [0], [0], [1], [0, 0, 1, 1], [], []>} : vector<256x3xf32>, vector<3x64xf32>, vector<256x64xf32> -> vector<256x64xf32>
    %37 = arith.addf %31, %36 : vector<256x64xf32>
    %c1_49 = arith.constant 1 : index
    %c2_50 = arith.constant 2 : index
    %c0_51 = arith.constant 0 : index
    %38 = vector.load %arg11[%c1_49, %c2_50, %c0_51] : memref<18x18x3xf32, #tpu.memory_space<vmem>>, vector<16x16x3xf32>
    %39 = vector.shape_cast %38 : vector<16x16x3xf32> to vector<256x3xf32>
    %c1_52 = arith.constant 1 : index
    %c2_53 = arith.constant 2 : index
    %c0_54 = arith.constant 0 : index
    %c0_55 = arith.constant 0 : index
    %40 = vector.load %arg2[%c1_52, %c2_53, %c0_54, %c0_55] : memref<3x3x3x64xf32, #tpu.memory_space<vmem>>, vector<1x1x3x64xf32>
    %41 = vector.shape_cast %40 : vector<1x1x3x64xf32> to vector<3x64xf32>
    %cst_56 = arith.constant dense<0.000000e+00> : vector<256x64xf32>
    %42 = tpu.matmul %39, %41, %cst_56 {dimension_numbers = #tpu.dot_dimension_numbers<[1], [0], [0], [1], [0, 0, 1, 1], [], []>} : vector<256x3xf32>, vector<3x64xf32>, vector<256x64xf32> -> vector<256x64xf32>
    %43 = arith.addf %37, %42 : vector<256x64xf32>
    %c2_57 = arith.constant 2 : index
    %c0_58 = arith.constant 0 : index
    %c0_59 = arith.constant 0 : index
    %44 = vector.load %arg11[%c2_57, %c0_58, %c0_59] : memref<18x18x3xf32, #tpu.memory_space<vmem>>, vector<16x16x3xf32>
    %45 = vector.shape_cast %44 : vector<16x16x3xf32> to vector<256x3xf32>
    %c2_60 = arith.constant 2 : index
    %c0_61 = arith.constant 0 : index
    %c0_62 = arith.constant 0 : index
    %c0_63 = arith.constant 0 : index
    %46 = vector.load %arg2[%c2_60, %c0_61, %c0_62, %c0_63] : memref<3x3x3x64xf32, #tpu.memory_space<vmem>>, vector<1x1x3x64xf32>
    %47 = vector.shape_cast %46 : vector<1x1x3x64xf32> to vector<3x64xf32>
    %cst_64 = arith.constant dense<0.000000e+00> : vector<256x64xf32>
    %48 = tpu.matmul %45, %47, %cst_64 {dimension_numbers = #tpu.dot_dimension_numbers<[1], [0], [0], [1], [0, 0, 1, 1], [], []>} : vector<256x3xf32>, vector<3x64xf32>, vector<256x64xf32> -> vector<256x64xf32>
    %49 = arith.addf %43, %48 : vector<256x64xf32>
    %c2_65 = arith.constant 2 : index
    %c1_66 = arith.constant 1 : index
    %c0_67 = arith.constant 0 : index
    %50 = vector.load %arg11[%c2_65, %c1_66, %c0_67] : memref<18x18x3xf32, #tpu.memory_space<vmem>>, vector<16x16x3xf32>
    %51 = vector.shape_cast %50 : vector<16x16x3xf32> to vector<256x3xf32>
    %c2_68 = arith.constant 2 : index
    %c1_69 = arith.constant 1 : index
    %c0_70 = arith.constant 0 : index
    %c0_71 = arith.constant 0 : index
    %52 = vector.load %arg2[%c2_68, %c1_69, %c0_70, %c0_71] : memref<3x3x3x64xf32, #tpu.memory_space<vmem>>, vector<1x1x3x64xf32>
    %53 = vector.shape_cast %52 : vector<1x1x3x64xf32> to vector<3x64xf32>
    %cst_72 = arith.constant dense<0.000000e+00> : vector<256x64xf32>
    %54 = tpu.matmul %51, %53, %cst_72 {dimension_numbers = #tpu.dot_dimension_numbers<[1], [0], [0], [1], [0, 0, 1, 1], [], []>} : vector<256x3xf32>, vector<3x64xf32>, vector<256x64xf32> -> vector<256x64xf32>
    %55 = arith.addf %49, %54 : vector<256x64xf32>
    %c2_73 = arith.constant 2 : index
    %c2_74 = arith.constant 2 : index
    %c0_75 = arith.constant 0 : index
    %56 = vector.load %arg11[%c2_73, %c2_74, %c0_75] : memref<18x18x3xf32, #tpu.memory_space<vmem>>, vector<16x16x3xf32>
    %57 = vector.shape_cast %56 : vector<16x16x3xf32> to vector<256x3xf32>
    %c2_76 = arith.constant 2 : index
    %c2_77 = arith.constant 2 : index
    %c0_78 = arith.constant 0 : index
    %c0_79 = arith.constant 0 : index
    %58 = vector.load %arg2[%c2_76, %c2_77, %c0_78, %c0_79] : memref<3x3x3x64xf32, #tpu.memory_space<vmem>>, vector<1x1x3x64xf32>
    %59 = vector.shape_cast %58 : vector<1x1x3x64xf32> to vector<3x64xf32>
    %cst_80 = arith.constant dense<0.000000e+00> : vector<256x64xf32>
    %60 = tpu.matmul %57, %59, %cst_80 {dimension_numbers = #tpu.dot_dimension_numbers<[1], [0], [0], [1], [0, 0, 1, 1], [], []>} : vector<256x3xf32>, vector<3x64xf32>, vector<256x64xf32> -> vector<256x64xf32>
    %61 = arith.addf %55, %60 : vector<256x64xf32>
    %cst_81 = arith.constant 0.000000e+00 : f32
    %62 = vector.broadcast %cst_81 : f32 to vector<256x64xf32>
    %63 = arith.maximumf %61, %62 : vector<256x64xf32>
    %64 = vector.shape_cast %63 : vector<256x64xf32> to vector<16x16x64xf32>
    %c0_82 = arith.constant 0 : index
    %c0_83 = arith.constant 0 : index
    %c0_84 = arith.constant 0 : index
    %65 = vector.load %arg12[%c0_82, %c0_83, %c0_84] : memref<16x16x64xf32, #tpu.memory_space<vmem>>, vector<16x16x64xf32>
    tpu.vector_store %arg12[%c0_82, %c0_83, %c0_84], %64 {strides = array<i32>} : memref<16x16x64xf32, #tpu.memory_space<vmem>>, vector<16x16x64xf32>,
    %c0_85 = arith.constant 0 : index
    %c0_86 = arith.constant 0 : index
    %c0_87 = arith.constant 0 : index
    %66 = tpu.strided_load %arg12[%c0_85, %c0_86, %c0_87] {strides = array<i32: 1, 2, 1>} : memref<16x16x64xf32, #tpu.memory_space<vmem>>, vector<16x8x64xf32>
    %c0_88 = arith.constant 0 : index
    %c1_89 = arith.constant 1 : index
    %c0_90 = arith.constant 0 : index
    %67 = tpu.strided_load %arg12[%c0_88, %c1_89, %c0_90] {strides = array<i32: 1, 2, 1>} : memref<16x16x64xf32, #tpu.memory_space<vmem>>, vector<16x8x64xf32>
    %68 = arith.maximumf %66, %67 : vector<16x8x64xf32>
    %69 = vector.shape_cast %68 : vector<16x8x64xf32> to vector<8x2x8x64xf32>
    %70 = vector.extract_strided_slice %69 {offsets = [0, 0, 0, 0], sizes = [8, 1, 8, 64], strides = [1, 1, 1, 1]} : vector<8x2x8x64xf32> to vector<8x1x8x64xf32>
    %71 = vector.shape_cast %70 : vector<8x1x8x64xf32> to vector<8x8x64xf32>
    %72 = vector.extract_strided_slice %69 {offsets = [0, 1, 0, 0], sizes = [8, 1, 8, 64], strides = [1, 1, 1, 1]} : vector<8x2x8x64xf32> to vector<8x1x8x64xf32>
    %73 = vector.shape_cast %72 : vector<8x1x8x64xf32> to vector<8x8x64xf32>
    %74 = arith.maximumf %71, %73 : vector<8x8x64xf32>
    %cst_91 = arith.constant 0.000000e+00 : f32
    %75 = vector.broadcast %cst_91 : f32 to vector<10x10x64xf32>
    %c0_92 = arith.constant 0 : index
    %c0_93 = arith.constant 0 : index
    %c0_94 = arith.constant 0 : index
    %76 = vector.load %arg13[%c0_92, %c0_93, %c0_94] : memref<10x10x64xf32, #tpu.memory_space<vmem>>, vector<10x10x64xf32>
    tpu.vector_store %arg13[%c0_92, %c0_93, %c0_94], %75 {strides = array<i32>} : memref<10x10x64xf32, #tpu.memory_space<vmem>>, vector<10x10x64xf32>,
    %c1_95 = arith.constant 1 : index
    %c1_96 = arith.constant 1 : index
    %c0_97 = arith.constant 0 : index
    %77 = vector.load %arg13[%c1_95, %c1_96, %c0_97] : memref<10x10x64xf32, #tpu.memory_space<vmem>>, vector<8x8x64xf32>
    tpu.vector_store %arg13[%c1_95, %c1_96, %c0_97], %74 {strides = array<i32>} : memref<10x10x64xf32, #tpu.memory_space<vmem>>, vector<8x8x64xf32>,
    %c0_98 = arith.constant 0 : index
    %c0_99 = arith.constant 0 : index
    %78 = vector.load %arg5[%c0_98, %c0_99] : memref<1x128xf32, #tpu.memory_space<vmem>>, vector<1x128xf32>
    %79 = vector.shape_cast %78 : vector<1x128xf32> to vector<1x128xf32>
    %80 = vector.broadcast %79 : vector<1x128xf32> to vector<64x128xf32>
    %c0_100 = arith.constant 0 : index
    %c0_101 = arith.constant 0 : index
    %c0_102 = arith.constant 0 : index
    %81 = vector.load %arg13[%c0_100, %c0_101, %c0_102] : memref<10x10x64xf32, #tpu.memory_space<vmem>>, vector<8x8x64xf32>
    %82 = vector.shape_cast %81 : vector<8x8x64xf32> to vector<64x64xf32>
    %c0_103 = arith.constant 0 : index
    %c0_104 = arith.constant 0 : index
    %c0_105 = arith.constant 0 : index
    %c0_106 = arith.constant 0 : index
    %83 = vector.load %arg4[%c0_103, %c0_104, %c0_105, %c0_106] : memref<3x3x64x128xf32, #tpu.memory_space<vmem>>, vector<1x1x64x128xf32>
    %84 = vector.shape_cast %83 : vector<1x1x64x128xf32> to vector<64x128xf32>
    %cst_107 = arith.constant dense<0.000000e+00> : vector<64x128xf32>
    %85 = tpu.matmul %82, %84, %cst_107 {dimension_numbers = #tpu.dot_dimension_numbers<[1], [0], [0], [1], [0, 0, 1, 1], [], []>} : vector<64x64xf32>, vector<64x128xf32>, vector<64x128xf32> -> vector<64x128xf32>
    %86 = arith.addf %80, %85 : vector<64x128xf32>
    %c0_108 = arith.constant 0 : index
    %c1_109 = arith.constant 1 : index
    %c0_110 = arith.constant 0 : index
    %87 = vector.load %arg13[%c0_108, %c1_109, %c0_110] : memref<10x10x64xf32, #tpu.memory_space<vmem>>, vector<8x8x64xf32>
    %88 = vector.shape_cast %87 : vector<8x8x64xf32> to vector<64x64xf32>
    %c0_111 = arith.constant 0 : index
    %c1_112 = arith.constant 1 : index
    %c0_113 = arith.constant 0 : index
    %c0_114 = arith.constant 0 : index
    %89 = vector.load %arg4[%c0_111, %c1_112, %c0_113, %c0_114] : memref<3x3x64x128xf32, #tpu.memory_space<vmem>>, vector<1x1x64x128xf32>
    %90 = vector.shape_cast %89 : vector<1x1x64x128xf32> to vector<64x128xf32>
    %cst_115 = arith.constant dense<0.000000e+00> : vector<64x128xf32>
    %91 = tpu.matmul %88, %90, %cst_115 {dimension_numbers = #tpu.dot_dimension_numbers<[1], [0], [0], [1], [0, 0, 1, 1], [], []>} : vector<64x64xf32>, vector<64x128xf32>, vector<64x128xf32> -> vector<64x128xf32>
    %92 = arith.addf %86, %91 : vector<64x128xf32>
    %c0_116 = arith.constant 0 : index
    %c2_117 = arith.constant 2 : index
    %c0_118 = arith.constant 0 : index
    %93 = vector.load %arg13[%c0_116, %c2_117, %c0_118] : memref<10x10x64xf32, #tpu.memory_space<vmem>>, vector<8x8x64xf32>
    %94 = vector.shape_cast %93 : vector<8x8x64xf32> to vector<64x64xf32>
    %c0_119 = arith.constant 0 : index
    %c2_120 = arith.constant 2 : index
    %c0_121 = arith.constant 0 : index
    %c0_122 = arith.constant 0 : index
    %95 = vector.load %arg4[%c0_119, %c2_120, %c0_121, %c0_122] : memref<3x3x64x128xf32, #tpu.memory_space<vmem>>, vector<1x1x64x128xf32>
    %96 = vector.shape_cast %95 : vector<1x1x64x128xf32> to vector<64x128xf32>
    %cst_123 = arith.constant dense<0.000000e+00> : vector<64x128xf32>
    %97 = tpu.matmul %94, %96, %cst_123 {dimension_numbers = #tpu.dot_dimension_numbers<[1], [0], [0], [1], [0, 0, 1, 1], [], []>} : vector<64x64xf32>, vector<64x128xf32>, vector<64x128xf32> -> vector<64x128xf32>
    %98 = arith.addf %92, %97 : vector<64x128xf32>
    %c1_124 = arith.constant 1 : index
    %c0_125 = arith.constant 0 : index
    %c0_126 = arith.constant 0 : index
    %99 = vector.load %arg13[%c1_124, %c0_125, %c0_126] : memref<10x10x64xf32, #tpu.memory_space<vmem>>, vector<8x8x64xf32>
    %100 = vector.shape_cast %99 : vector<8x8x64xf32> to vector<64x64xf32>
    %c1_127 = arith.constant 1 : index
    %c0_128 = arith.constant 0 : index
    %c0_129 = arith.constant 0 : index
    %c0_130 = arith.constant 0 : index
    %101 = vector.load %arg4[%c1_127, %c0_128, %c0_129, %c0_130] : memref<3x3x64x128xf32, #tpu.memory_space<vmem>>, vector<1x1x64x128xf32>
    %102 = vector.shape_cast %101 : vector<1x1x64x128xf32> to vector<64x128xf32>
    %cst_131 = arith.constant dense<0.000000e+00> : vector<64x128xf32>
    %103 = tpu.matmul %100, %102, %cst_131 {dimension_numbers = #tpu.dot_dimension_numbers<[1], [0], [0], [1], [0, 0, 1, 1], [], []>} : vector<64x64xf32>, vector<64x128xf32>, vector<64x128xf32> -> vector<64x128xf32>
    %104 = arith.addf %98, %103 : vector<64x128xf32>
    %c1_132 = arith.constant 1 : index
    %c1_133 = arith.constant 1 : index
    %c0_134 = arith.constant 0 : index
    %105 = vector.load %arg13[%c1_132, %c1_133, %c0_134] : memref<10x10x64xf32, #tpu.memory_space<vmem>>, vector<8x8x64xf32>
    %106 = vector.shape_cast %105 : vector<8x8x64xf32> to vector<64x64xf32>
    %c1_135 = arith.constant 1 : index
    %c1_136 = arith.constant 1 : index
    %c0_137 = arith.constant 0 : index
    %c0_138 = arith.constant 0 : index
    %107 = vector.load %arg4[%c1_135, %c1_136, %c0_137, %c0_138] : memref<3x3x64x128xf32, #tpu.memory_space<vmem>>, vector<1x1x64x128xf32>
    %108 = vector.shape_cast %107 : vector<1x1x64x128xf32> to vector<64x128xf32>
    %cst_139 = arith.constant dense<0.000000e+00> : vector<64x128xf32>
    %109 = tpu.matmul %106, %108, %cst_139 {dimension_numbers = #tpu.dot_dimension_numbers<[1], [0], [0], [1], [0, 0, 1, 1], [], []>} : vector<64x64xf32>, vector<64x128xf32>, vector<64x128xf32> -> vector<64x128xf32>
    %110 = arith.addf %104, %109 : vector<64x128xf32>
    %c1_140 = arith.constant 1 : index
    %c2_141 = arith.constant 2 : index
    %c0_142 = arith.constant 0 : index
    %111 = vector.load %arg13[%c1_140, %c2_141, %c0_142] : memref<10x10x64xf32, #tpu.memory_space<vmem>>, vector<8x8x64xf32>
    %112 = vector.shape_cast %111 : vector<8x8x64xf32> to vector<64x64xf32>
    %c1_143 = arith.constant 1 : index
    %c2_144 = arith.constant 2 : index
    %c0_145 = arith.constant 0 : index
    %c0_146 = arith.constant 0 : index
    %113 = vector.load %arg4[%c1_143, %c2_144, %c0_145, %c0_146] : memref<3x3x64x128xf32, #tpu.memory_space<vmem>>, vector<1x1x64x128xf32>
    %114 = vector.shape_cast %113 : vector<1x1x64x128xf32> to vector<64x128xf32>
    %cst_147 = arith.constant dense<0.000000e+00> : vector<64x128xf32>
    %115 = tpu.matmul %112, %114, %cst_147 {dimension_numbers = #tpu.dot_dimension_numbers<[1], [0], [0], [1], [0, 0, 1, 1], [], []>} : vector<64x64xf32>, vector<64x128xf32>, vector<64x128xf32> -> vector<64x128xf32>
    %116 = arith.addf %110, %115 : vector<64x128xf32>
    %c2_148 = arith.constant 2 : index
    %c0_149 = arith.constant 0 : index
    %c0_150 = arith.constant 0 : index
    %117 = vector.load %arg13[%c2_148, %c0_149, %c0_150] : memref<10x10x64xf32, #tpu.memory_space<vmem>>, vector<8x8x64xf32>
    %118 = vector.shape_cast %117 : vector<8x8x64xf32> to vector<64x64xf32>
    %c2_151 = arith.constant 2 : index
    %c0_152 = arith.constant 0 : index
    %c0_153 = arith.constant 0 : index
    %c0_154 = arith.constant 0 : index
    %119 = vector.load %arg4[%c2_151, %c0_152, %c0_153, %c0_154] : memref<3x3x64x128xf32, #tpu.memory_space<vmem>>, vector<1x1x64x128xf32>
    %120 = vector.shape_cast %119 : vector<1x1x64x128xf32> to vector<64x128xf32>
    %cst_155 = arith.constant dense<0.000000e+00> : vector<64x128xf32>
    %121 = tpu.matmul %118, %120, %cst_155 {dimension_numbers = #tpu.dot_dimension_numbers<[1], [0], [0], [1], [0, 0, 1, 1], [], []>} : vector<64x64xf32>, vector<64x128xf32>, vector<64x128xf32> -> vector<64x128xf32>
    %122 = arith.addf %116, %121 : vector<64x128xf32>
    %c2_156 = arith.constant 2 : index
    %c1_157 = arith.constant 1 : index
    %c0_158 = arith.constant 0 : index
    %123 = vector.load %arg13[%c2_156, %c1_157, %c0_158] : memref<10x10x64xf32, #tpu.memory_space<vmem>>, vector<8x8x64xf32>
    %124 = vector.shape_cast %123 : vector<8x8x64xf32> to vector<64x64xf32>
    %c2_159 = arith.constant 2 : index
    %c1_160 = arith.constant 1 : index
    %c0_161 = arith.constant 0 : index
    %c0_162 = arith.constant 0 : index
    %125 = vector.load %arg4[%c2_159, %c1_160, %c0_161, %c0_162] : memref<3x3x64x128xf32, #tpu.memory_space<vmem>>, vector<1x1x64x128xf32>
    %126 = vector.shape_cast %125 : vector<1x1x64x128xf32> to vector<64x128xf32>
    %cst_163 = arith.constant dense<0.000000e+00> : vector<64x128xf32>
    %127 = tpu.matmul %124, %126, %cst_163 {dimension_numbers = #tpu.dot_dimension_numbers<[1], [0], [0], [1], [0, 0, 1, 1], [], []>} : vector<64x64xf32>, vector<64x128xf32>, vector<64x128xf32> -> vector<64x128xf32>
    %128 = arith.addf %122, %127 : vector<64x128xf32>
    %c2_164 = arith.constant 2 : index
    %c2_165 = arith.constant 2 : index
    %c0_166 = arith.constant 0 : index
    %129 = vector.load %arg13[%c2_164, %c2_165, %c0_166] : memref<10x10x64xf32, #tpu.memory_space<vmem>>, vector<8x8x64xf32>
    %130 = vector.shape_cast %129 : vector<8x8x64xf32> to vector<64x64xf32>
    %c2_167 = arith.constant 2 : index
    %c2_168 = arith.constant 2 : index
    %c0_169 = arith.constant 0 : index
    %c0_170 = arith.constant 0 : index
    %131 = vector.load %arg4[%c2_167, %c2_168, %c0_169, %c0_170] : memref<3x3x64x128xf32, #tpu.memory_space<vmem>>, vector<1x1x64x128xf32>
    %132 = vector.shape_cast %131 : vector<1x1x64x128xf32> to vector<64x128xf32>
    %cst_171 = arith.constant dense<0.000000e+00> : vector<64x128xf32>
    %133 = tpu.matmul %130, %132, %cst_171 {dimension_numbers = #tpu.dot_dimension_numbers<[1], [0], [0], [1], [0, 0, 1, 1], [], []>} : vector<64x64xf32>, vector<64x128xf32>, vector<64x128xf32> -> vector<64x128xf32>
    %134 = arith.addf %128, %133 : vector<64x128xf32>
    %cst_172 = arith.constant 0.000000e+00 : f32
    %135 = vector.broadcast %cst_172 : f32 to vector<64x128xf32>
    %136 = arith.maximumf %134, %135 : vector<64x128xf32>
    %137 = vector.shape_cast %136 : vector<64x128xf32> to vector<8x8x128xf32>
    %c0_173 = arith.constant 0 : index
    %c0_174 = arith.constant 0 : index
    %c0_175 = arith.constant 0 : index
    %138 = vector.load %arg14[%c0_173, %c0_174, %c0_175] : memref<8x8x128xf32, #tpu.memory_space<vmem>>, vector<8x8x128xf32>
    tpu.vector_store %arg14[%c0_173, %c0_174, %c0_175], %137 {strides = array<i32>} : memref<8x8x128xf32, #tpu.memory_space<vmem>>, vector<8x8x128xf32>,
    %c0_176 = arith.constant 0 : index
    %c0_177 = arith.constant 0 : index
    %c0_178 = arith.constant 0 : index
    %139 = tpu.strided_load %arg14[%c0_176, %c0_177, %c0_178] {strides = array<i32: 1, 2, 1>} : memref<8x8x128xf32, #tpu.memory_space<vmem>>, vector<8x4x128xf32>
    %c0_179 = arith.constant 0 : index
    %c1_180 = arith.constant 1 : index
    %c0_181 = arith.constant 0 : index
    %140 = tpu.strided_load %arg14[%c0_179, %c1_180, %c0_181] {strides = array<i32: 1, 2, 1>} : memref<8x8x128xf32, #tpu.memory_space<vmem>>, vector<8x4x128xf32>
    %141 = arith.maximumf %139, %140 : vector<8x4x128xf32>
    %142 = vector.shape_cast %141 : vector<8x4x128xf32> to vector<4x2x4x128xf32>
    %143 = vector.extract_strided_slice %142 {offsets = [0, 0, 0, 0], sizes = [4, 1, 4, 128], strides = [1, 1, 1, 1]} : vector<4x2x4x128xf32> to vector<4x1x4x128xf32>
    %144 = vector.shape_cast %143 : vector<4x1x4x128xf32> to vector<4x4x128xf32>
    %145 = vector.extract_strided_slice %142 {offsets = [0, 1, 0, 0], sizes = [4, 1, 4, 128], strides = [1, 1, 1, 1]} : vector<4x2x4x128xf32> to vector<4x1x4x128xf32>
    %146 = vector.shape_cast %145 : vector<4x1x4x128xf32> to vector<4x4x128xf32>
    %147 = arith.maximumf %144, %146 : vector<4x4x128xf32>
    %c0_182 = arith.constant 0 : index
    %c0_183 = arith.constant 0 : index
    %148 = vector.load %arg7[%c0_182, %c0_183] : memref<1x256xf32, #tpu.memory_space<vmem>>, vector<1x256xf32>
    %149 = vector.extract_strided_slice %147 {offsets = [0, 0, 0], sizes = [1, 1, 128], strides = [1, 1, 1]} : vector<4x4x128xf32> to vector<1x1x128xf32>
    %150 = vector.shape_cast %149 : vector<1x1x128xf32> to vector<1x128xf32>
    %c0_184 = arith.constant 0 : index
    %c0_185 = arith.constant 0 : index
    %c0_186 = arith.constant 0 : index
    %c0_187 = arith.constant 0 : index
    %151 = vector.load %arg6[%c0_184, %c0_185, %c0_186, %c0_187] : memref<4x4x128x256xf32, #tpu.memory_space<vmem>>, vector<1x1x128x256xf32>
    %152 = vector.shape_cast %151 : vector<1x1x128x256xf32> to vector<128x256xf32>
    %cst_188 = arith.constant dense<0.000000e+00> : vector<1x256xf32>
    %153 = tpu.matmul %150, %152, %cst_188 {dimension_numbers = #tpu.dot_dimension_numbers<[1], [0], [0], [1], [0, 0, 1, 1], [], []>} : vector<1x128xf32>, vector<128x256xf32>, vector<1x256xf32> -> vector<1x256xf32>
    %154 = arith.addf %148, %153 : vector<1x256xf32>
    %155 = vector.extract_strided_slice %147 {offsets = [0, 1, 0], sizes = [1, 1, 128], strides = [1, 1, 1]} : vector<4x4x128xf32> to vector<1x1x128xf32>
    %156 = vector.shape_cast %155 : vector<1x1x128xf32> to vector<1x128xf32>
    %c0_189 = arith.constant 0 : index
    %c1_190 = arith.constant 1 : index
    %c0_191 = arith.constant 0 : index
    %c0_192 = arith.constant 0 : index
    %157 = vector.load %arg6[%c0_189, %c1_190, %c0_191, %c0_192] : memref<4x4x128x256xf32, #tpu.memory_space<vmem>>, vector<1x1x128x256xf32>
    %158 = vector.shape_cast %157 : vector<1x1x128x256xf32> to vector<128x256xf32>
    %cst_193 = arith.constant dense<0.000000e+00> : vector<1x256xf32>
    %159 = tpu.matmul %156, %158, %cst_193 {dimension_numbers = #tpu.dot_dimension_numbers<[1], [0], [0], [1], [0, 0, 1, 1], [], []>} : vector<1x128xf32>, vector<128x256xf32>, vector<1x256xf32> -> vector<1x256xf32>
    %160 = arith.addf %154, %159 : vector<1x256xf32>
    %161 = vector.extract_strided_slice %147 {offsets = [0, 2, 0], sizes = [1, 1, 128], strides = [1, 1, 1]} : vector<4x4x128xf32> to vector<1x1x128xf32>
    %162 = vector.shape_cast %161 : vector<1x1x128xf32> to vector<1x128xf32>
    %c0_194 = arith.constant 0 : index
    %c2_195 = arith.constant 2 : index
    %c0_196 = arith.constant 0 : index
    %c0_197 = arith.constant 0 : index
    %163 = vector.load %arg6[%c0_194, %c2_195, %c0_196, %c0_197] : memref<4x4x128x256xf32, #tpu.memory_space<vmem>>, vector<1x1x128x256xf32>
    %164 = vector.shape_cast %163 : vector<1x1x128x256xf32> to vector<128x256xf32>
    %cst_198 = arith.constant dense<0.000000e+00> : vector<1x256xf32>
    %165 = tpu.matmul %162, %164, %cst_198 {dimension_numbers = #tpu.dot_dimension_numbers<[1], [0], [0], [1], [0, 0, 1, 1], [], []>} : vector<1x128xf32>, vector<128x256xf32>, vector<1x256xf32> -> vector<1x256xf32>
    %166 = arith.addf %160, %165 : vector<1x256xf32>
    %167 = vector.extract_strided_slice %147 {offsets = [0, 3, 0], sizes = [1, 1, 128], strides = [1, 1, 1]} : vector<4x4x128xf32> to vector<1x1x128xf32>
    %168 = vector.shape_cast %167 : vector<1x1x128xf32> to vector<1x128xf32>
    %c0_199 = arith.constant 0 : index
    %c3 = arith.constant 3 : index
    %c0_200 = arith.constant 0 : index
    %c0_201 = arith.constant 0 : index
    %169 = vector.load %arg6[%c0_199, %c3, %c0_200, %c0_201] : memref<4x4x128x256xf32, #tpu.memory_space<vmem>>, vector<1x1x128x256xf32>
    %170 = vector.shape_cast %169 : vector<1x1x128x256xf32> to vector<128x256xf32>
    %cst_202 = arith.constant dense<0.000000e+00> : vector<1x256xf32>
    %171 = tpu.matmul %168, %170, %cst_202 {dimension_numbers = #tpu.dot_dimension_numbers<[1], [0], [0], [1], [0, 0, 1, 1], [], []>} : vector<1x128xf32>, vector<128x256xf32>, vector<1x256xf32> -> vector<1x256xf32>
    %172 = arith.addf %166, %171 : vector<1x256xf32>
    %173 = vector.extract_strided_slice %147 {offsets = [1, 0, 0], sizes = [1, 1, 128], strides = [1, 1, 1]} : vector<4x4x128xf32> to vector<1x1x128xf32>
    %174 = vector.shape_cast %173 : vector<1x1x128xf32> to vector<1x128xf32>
    %c1_203 = arith.constant 1 : index
    %c0_204 = arith.constant 0 : index
    %c0_205 = arith.constant 0 : index
    %c0_206 = arith.constant 0 : index
    %175 = vector.load %arg6[%c1_203, %c0_204, %c0_205, %c0_206] : memref<4x4x128x256xf32, #tpu.memory_space<vmem>>, vector<1x1x128x256xf32>
    %176 = vector.shape_cast %175 : vector<1x1x128x256xf32> to vector<128x256xf32>
    %cst_207 = arith.constant dense<0.000000e+00> : vector<1x256xf32>
    %177 = tpu.matmul %174, %176, %cst_207 {dimension_numbers = #tpu.dot_dimension_numbers<[1], [0], [0], [1], [0, 0, 1, 1], [], []>} : vector<1x128xf32>, vector<128x256xf32>, vector<1x256xf32> -> vector<1x256xf32>
    %178 = arith.addf %172, %177 : vector<1x256xf32>
    %179 = vector.extract_strided_slice %147 {offsets = [1, 1, 0], sizes = [1, 1, 128], strides = [1, 1, 1]} : vector<4x4x128xf32> to vector<1x1x128xf32>
    %180 = vector.shape_cast %179 : vector<1x1x128xf32> to vector<1x128xf32>
    %c1_208 = arith.constant 1 : index
    %c1_209 = arith.constant 1 : index
    %c0_210 = arith.constant 0 : index
    %c0_211 = arith.constant 0 : index
    %181 = vector.load %arg6[%c1_208, %c1_209, %c0_210, %c0_211] : memref<4x4x128x256xf32, #tpu.memory_space<vmem>>, vector<1x1x128x256xf32>
    %182 = vector.shape_cast %181 : vector<1x1x128x256xf32> to vector<128x256xf32>
    %cst_212 = arith.constant dense<0.000000e+00> : vector<1x256xf32>
    %183 = tpu.matmul %180, %182, %cst_212 {dimension_numbers = #tpu.dot_dimension_numbers<[1], [0], [0], [1], [0, 0, 1, 1], [], []>} : vector<1x128xf32>, vector<128x256xf32>, vector<1x256xf32> -> vector<1x256xf32>
    %184 = arith.addf %178, %183 : vector<1x256xf32>
    %185 = vector.extract_strided_slice %147 {offsets = [1, 2, 0], sizes = [1, 1, 128], strides = [1, 1, 1]} : vector<4x4x128xf32> to vector<1x1x128xf32>
    %186 = vector.shape_cast %185 : vector<1x1x128xf32> to vector<1x128xf32>
    %c1_213 = arith.constant 1 : index
    %c2_214 = arith.constant 2 : index
    %c0_215 = arith.constant 0 : index
    %c0_216 = arith.constant 0 : index
    %187 = vector.load %arg6[%c1_213, %c2_214, %c0_215, %c0_216] : memref<4x4x128x256xf32, #tpu.memory_space<vmem>>, vector<1x1x128x256xf32>
    %188 = vector.shape_cast %187 : vector<1x1x128x256xf32> to vector<128x256xf32>
    %cst_217 = arith.constant dense<0.000000e+00> : vector<1x256xf32>
    %189 = tpu.matmul %186, %188, %cst_217 {dimension_numbers = #tpu.dot_dimension_numbers<[1], [0], [0], [1], [0, 0, 1, 1], [], []>} : vector<1x128xf32>, vector<128x256xf32>, vector<1x256xf32> -> vector<1x256xf32>
    %190 = arith.addf %184, %189 : vector<1x256xf32>
    %191 = vector.extract_strided_slice %147 {offsets = [1, 3, 0], sizes = [1, 1, 128], strides = [1, 1, 1]} : vector<4x4x128xf32> to vector<1x1x128xf32>
    %192 = vector.shape_cast %191 : vector<1x1x128xf32> to vector<1x128xf32>
    %c1_218 = arith.constant 1 : index
    %c3_219 = arith.constant 3 : index
    %c0_220 = arith.constant 0 : index
    %c0_221 = arith.constant 0 : index
    %193 = vector.load %arg6[%c1_218, %c3_219, %c0_220, %c0_221] : memref<4x4x128x256xf32, #tpu.memory_space<vmem>>, vector<1x1x128x256xf32>
    %194 = vector.shape_cast %193 : vector<1x1x128x256xf32> to vector<128x256xf32>
    %cst_222 = arith.constant dense<0.000000e+00> : vector<1x256xf32>
    %195 = tpu.matmul %192, %194, %cst_222 {dimension_numbers = #tpu.dot_dimension_numbers<[1], [0], [0], [1], [0, 0, 1, 1], [], []>} : vector<1x128xf32>, vector<128x256xf32>, vector<1x256xf32> -> vector<1x256xf32>
    %196 = arith.addf %190, %195 : vector<1x256xf32>
    %197 = vector.extract_strided_slice %147 {offsets = [2, 0, 0], sizes = [1, 1, 128], strides = [1, 1, 1]} : vector<4x4x128xf32> to vector<1x1x128xf32>
    %198 = vector.shape_cast %197 : vector<1x1x128xf32> to vector<1x128xf32>
    %c2_223 = arith.constant 2 : index
    %c0_224 = arith.constant 0 : index
    %c0_225 = arith.constant 0 : index
    %c0_226 = arith.constant 0 : index
    %199 = vector.load %arg6[%c2_223, %c0_224, %c0_225, %c0_226] : memref<4x4x128x256xf32, #tpu.memory_space<vmem>>, vector<1x1x128x256xf32>
    %200 = vector.shape_cast %199 : vector<1x1x128x256xf32> to vector<128x256xf32>
    %cst_227 = arith.constant dense<0.000000e+00> : vector<1x256xf32>
    %201 = tpu.matmul %198, %200, %cst_227 {dimension_numbers = #tpu.dot_dimension_numbers<[1], [0], [0], [1], [0, 0, 1, 1], [], []>} : vector<1x128xf32>, vector<128x256xf32>, vector<1x256xf32> -> vector<1x256xf32>
    %202 = arith.addf %196, %201 : vector<1x256xf32>
    %203 = vector.extract_strided_slice %147 {offsets = [2, 1, 0], sizes = [1, 1, 128], strides = [1, 1, 1]} : vector<4x4x128xf32> to vector<1x1x128xf32>
    %204 = vector.shape_cast %203 : vector<1x1x128xf32> to vector<1x128xf32>
    %c2_228 = arith.constant 2 : index
    %c1_229 = arith.constant 1 : index
    %c0_230 = arith.constant 0 : index
    %c0_231 = arith.constant 0 : index
    %205 = vector.load %arg6[%c2_228, %c1_229, %c0_230, %c0_231] : memref<4x4x128x256xf32, #tpu.memory_space<vmem>>, vector<1x1x128x256xf32>
    %206 = vector.shape_cast %205 : vector<1x1x128x256xf32> to vector<128x256xf32>
    %cst_232 = arith.constant dense<0.000000e+00> : vector<1x256xf32>
    %207 = tpu.matmul %204, %206, %cst_232 {dimension_numbers = #tpu.dot_dimension_numbers<[1], [0], [0], [1], [0, 0, 1, 1], [], []>} : vector<1x128xf32>, vector<128x256xf32>, vector<1x256xf32> -> vector<1x256xf32>
    %208 = arith.addf %202, %207 : vector<1x256xf32>
    %209 = vector.extract_strided_slice %147 {offsets = [2, 2, 0], sizes = [1, 1, 128], strides = [1, 1, 1]} : vector<4x4x128xf32> to vector<1x1x128xf32>
    %210 = vector.shape_cast %209 : vector<1x1x128xf32> to vector<1x128xf32>
    %c2_233 = arith.constant 2 : index
    %c2_234 = arith.constant 2 : index
    %c0_235 = arith.constant 0 : index
    %c0_236 = arith.constant 0 : index
    %211 = vector.load %arg6[%c2_233, %c2_234, %c0_235, %c0_236] : memref<4x4x128x256xf32, #tpu.memory_space<vmem>>, vector<1x1x128x256xf32>
    %212 = vector.shape_cast %211 : vector<1x1x128x256xf32> to vector<128x256xf32>
    %cst_237 = arith.constant dense<0.000000e+00> : vector<1x256xf32>
    %213 = tpu.matmul %210, %212, %cst_237 {dimension_numbers = #tpu.dot_dimension_numbers<[1], [0], [0], [1], [0, 0, 1, 1], [], []>} : vector<1x128xf32>, vector<128x256xf32>, vector<1x256xf32> -> vector<1x256xf32>
    %214 = arith.addf %208, %213 : vector<1x256xf32>
    %215 = vector.extract_strided_slice %147 {offsets = [2, 3, 0], sizes = [1, 1, 128], strides = [1, 1, 1]} : vector<4x4x128xf32> to vector<1x1x128xf32>
    %216 = vector.shape_cast %215 : vector<1x1x128xf32> to vector<1x128xf32>
    %c2_238 = arith.constant 2 : index
    %c3_239 = arith.constant 3 : index
    %c0_240 = arith.constant 0 : index
    %c0_241 = arith.constant 0 : index
    %217 = vector.load %arg6[%c2_238, %c3_239, %c0_240, %c0_241] : memref<4x4x128x256xf32, #tpu.memory_space<vmem>>, vector<1x1x128x256xf32>
    %218 = vector.shape_cast %217 : vector<1x1x128x256xf32> to vector<128x256xf32>
    %cst_242 = arith.constant dense<0.000000e+00> : vector<1x256xf32>
    %219 = tpu.matmul %216, %218, %cst_242 {dimension_numbers = #tpu.dot_dimension_numbers<[1], [0], [0], [1], [0, 0, 1, 1], [], []>} : vector<1x128xf32>, vector<128x256xf32>, vector<1x256xf32> -> vector<1x256xf32>
    %220 = arith.addf %214, %219 : vector<1x256xf32>
    %221 = vector.extract_strided_slice %147 {offsets = [3, 0, 0], sizes = [1, 1, 128], strides = [1, 1, 1]} : vector<4x4x128xf32> to vector<1x1x128xf32>
    %222 = vector.shape_cast %221 : vector<1x1x128xf32> to vector<1x128xf32>
    %c3_243 = arith.constant 3 : index
    %c0_244 = arith.constant 0 : index
    %c0_245 = arith.constant 0 : index
    %c0_246 = arith.constant 0 : index
    %223 = vector.load %arg6[%c3_243, %c0_244, %c0_245, %c0_246] : memref<4x4x128x256xf32, #tpu.memory_space<vmem>>, vector<1x1x128x256xf32>
    %224 = vector.shape_cast %223 : vector<1x1x128x256xf32> to vector<128x256xf32>
    %cst_247 = arith.constant dense<0.000000e+00> : vector<1x256xf32>
    %225 = tpu.matmul %222, %224, %cst_247 {dimension_numbers = #tpu.dot_dimension_numbers<[1], [0], [0], [1], [0, 0, 1, 1], [], []>} : vector<1x128xf32>, vector<128x256xf32>, vector<1x256xf32> -> vector<1x256xf32>
    %226 = arith.addf %220, %225 : vector<1x256xf32>
    %227 = vector.extract_strided_slice %147 {offsets = [3, 1, 0], sizes = [1, 1, 128], strides = [1, 1, 1]} : vector<4x4x128xf32> to vector<1x1x128xf32>
    %228 = vector.shape_cast %227 : vector<1x1x128xf32> to vector<1x128xf32>
    %c3_248 = arith.constant 3 : index
    %c1_249 = arith.constant 1 : index
    %c0_250 = arith.constant 0 : index
    %c0_251 = arith.constant 0 : index
    %229 = vector.load %arg6[%c3_248, %c1_249, %c0_250, %c0_251] : memref<4x4x128x256xf32, #tpu.memory_space<vmem>>, vector<1x1x128x256xf32>
    %230 = vector.shape_cast %229 : vector<1x1x128x256xf32> to vector<128x256xf32>
    %cst_252 = arith.constant dense<0.000000e+00> : vector<1x256xf32>
    %231 = tpu.matmul %228, %230, %cst_252 {dimension_numbers = #tpu.dot_dimension_numbers<[1], [0], [0], [1], [0, 0, 1, 1], [], []>} : vector<1x128xf32>, vector<128x256xf32>, vector<1x256xf32> -> vector<1x256xf32>
    %232 = arith.addf %226, %231 : vector<1x256xf32>
    %233 = vector.extract_strided_slice %147 {offsets = [3, 2, 0], sizes = [1, 1, 128], strides = [1, 1, 1]} : vector<4x4x128xf32> to vector<1x1x128xf32>
    %234 = vector.shape_cast %233 : vector<1x1x128xf32> to vector<1x128xf32>
    %c3_253 = arith.constant 3 : index
    %c2_254 = arith.constant 2 : index
    %c0_255 = arith.constant 0 : index
    %c0_256 = arith.constant 0 : index
    %235 = vector.load %arg6[%c3_253, %c2_254, %c0_255, %c0_256] : memref<4x4x128x256xf32, #tpu.memory_space<vmem>>, vector<1x1x128x256xf32>
    %236 = vector.shape_cast %235 : vector<1x1x128x256xf32> to vector<128x256xf32>
    %cst_257 = arith.constant dense<0.000000e+00> : vector<1x256xf32>
    %237 = tpu.matmul %234, %236, %cst_257 {dimension_numbers = #tpu.dot_dimension_numbers<[1], [0], [0], [1], [0, 0, 1, 1], [], []>} : vector<1x128xf32>, vector<128x256xf32>, vector<1x256xf32> -> vector<1x256xf32>
    %238 = arith.addf %232, %237 : vector<1x256xf32>
    %239 = vector.extract_strided_slice %147 {offsets = [3, 3, 0], sizes = [1, 1, 128], strides = [1, 1, 1]} : vector<4x4x128xf32> to vector<1x1x128xf32>
    %240 = vector.shape_cast %239 : vector<1x1x128xf32> to vector<1x128xf32>
    %c3_258 = arith.constant 3 : index
    %c3_259 = arith.constant 3 : index
    %c0_260 = arith.constant 0 : index
    %c0_261 = arith.constant 0 : index
    %241 = vector.load %arg6[%c3_258, %c3_259, %c0_260, %c0_261] : memref<4x4x128x256xf32, #tpu.memory_space<vmem>>, vector<1x1x128x256xf32>
    %242 = vector.shape_cast %241 : vector<1x1x128x256xf32> to vector<128x256xf32>
    %cst_262 = arith.constant dense<0.000000e+00> : vector<1x256xf32>
    %243 = tpu.matmul %240, %242, %cst_262 {dimension_numbers = #tpu.dot_dimension_numbers<[1], [0], [0], [1], [0, 0, 1, 1], [], []>} : vector<1x128xf32>, vector<128x256xf32>, vector<1x256xf32> -> vector<1x256xf32>
    %244 = arith.addf %238, %243 : vector<1x256xf32>
    %cst_263 = arith.constant 0.000000e+00 : f32
    %245 = vector.broadcast %cst_263 : f32 to vector<1x256xf32>
    %246 = arith.maximumf %244, %245 : vector<1x256xf32>
    %c0_264 = arith.constant 0 : index
    %c0_265 = arith.constant 0 : index
    %247 = vector.load %arg8[%c0_264, %c0_265] : memref<256x2xf32, #tpu.memory_space<vmem>>, vector<256x2xf32>
    %cst_266 = arith.constant dense<0.000000e+00> : vector<1x2xf32>
    %248 = tpu.matmul %246, %247, %cst_266 {dimension_numbers = #tpu.dot_dimension_numbers<[1], [0], [0], [1], [0, 0, 1, 1], [], []>} : vector<1x256xf32>, vector<256x2xf32>, vector<1x2xf32> -> vector<1x2xf32>
    %c0_267 = arith.constant 0 : index
    %c0_268 = arith.constant 0 : index
    %249 = vector.load %arg9[%c0_267, %c0_268] : memref<1x2xf32, #tpu.memory_space<vmem>>, vector<1x2xf32>
    %250 = arith.addf %248, %249 : vector<1x2xf32>
    %251 = vector.shape_cast %250 : vector<1x2xf32> to vector<1x1x2xf32>
    %c0_269 = arith.constant 0 : index
    %c0_270 = arith.constant 0 : index
    %c0_271 = arith.constant 0 : index
    %252 = vector.load %arg10[%c0_269, %c0_270, %c0_271] : memref<1x1x2xf32, #tpu.memory_space<vmem>>, vector<1x1x2xf32>
    tpu.vector_store %arg10[%c0_269, %c0_270, %c0_271], %251 {strides = array<i32>} : memref<1x1x2xf32, #tpu.memory_space<vmem>>, vector<1x1x2xf32>,
    return
  }
  func.func @transform_0(%arg0: i32) -> (i32, i32, i32, i32) {
    %c0_i32 = arith.constant 0 : i32
    %c0_i32_0 = arith.constant 0 : i32
    %c0_i32_1 = arith.constant 0 : i32
    %c0_i32_2 = arith.constant 0 : i32
    return %arg0, %c0_i32, %c0_i32_0, %c0_i32_1 : i32, i32, i32, i32
  }
  func.func @transform_1(%arg0: i32) -> (i32, i32, i32, i32) {
    %c0_i32 = arith.constant 0 : i32
    %c0_i32_0 = arith.constant 0 : i32
    %c0_i32_1 = arith.constant 0 : i32
    %c0_i32_2 = arith.constant 0 : i32
    %c0_i32_3 = arith.constant 0 : i32
    return %c0_i32, %c0_i32_0, %c0_i32_1, %c0_i32_2 : i32, i32, i32, i32
  }
  func.func @transform_2(%arg0: i32) -> (i32, i32) {
    %c0_i32 = arith.constant 0 : i32
    %c0_i32_0 = arith.constant 0 : i32
    %c0_i32_1 = arith.constant 0 : i32
    return %c0_i32, %c0_i32_0 : i32, i32
  }
  func.func @transform_3(%arg0: i32) -> (i32, i32, i32, i32) {
    %c0_i32 = arith.constant 0 : i32
    %c0_i32_0 = arith.constant 0 : i32
    %c0_i32_1 = arith.constant 0 : i32
    %c0_i32_2 = arith.constant 0 : i32
    %c0_i32_3 = arith.constant 0 : i32
    return %c0_i32, %c0_i32_0, %c0_i32_1, %c0_i32_2 : i32, i32, i32, i32
  }
  func.func @transform_4(%arg0: i32) -> (i32, i32) {
    %c0_i32 = arith.constant 0 : i32
    %c0_i32_0 = arith.constant 0 : i32
    %c0_i32_1 = arith.constant 0 : i32
    return %c0_i32, %c0_i32_0 : i32, i32
  }
  func.func @transform_5(%arg0: i32) -> (i32, i32, i32, i32) {
    %c0_i32 = arith.constant 0 : i32
    %c0_i32_0 = arith.constant 0 : i32
    %c0_i32_1 = arith.constant 0 : i32
    %c0_i32_2 = arith.constant 0 : i32
    %c0_i32_3 = arith.constant 0 : i32
    return %c0_i32, %c0_i32_0, %c0_i32_1, %c0_i32_2 : i32, i32, i32, i32
  }
  func.func @transform_6(%arg0: i32) -> (i32, i32) {
    %c0_i32 = arith.constant 0 : i32
    %c0_i32_0 = arith.constant 0 : i32
    %c0_i32_1 = arith.constant 0 : i32
    return %c0_i32, %c0_i32_0 : i32, i32
  }
  func.func @transform_7(%arg0: i32) -> (i32, i32) {
    %c0_i32 = arith.constant 0 : i32
    %c0_i32_0 = arith.constant 0 : i32
    %c0_i32_1 = arith.constant 0 : i32
    return %c0_i32, %c0_i32_0 : i32, i32
  }
  func.func @transform_8(%arg0: i32) -> (i32, i32) {
    %c0_i32 = arith.constant 0 : i32
    %c0_i32_0 = arith.constant 0 : i32
    %c0_i32_1 = arith.constant 0 : i32
    return %c0_i32, %c0_i32_0 : i32, i32
  }
  func.func @transform_9(%arg0: i32) -> (i32, i32, i32) {
    %c0_i32 = arith.constant 0 : i32
    %c0_i32_0 = arith.constant 0 : i32
    %c0_i32_1 = arith.constant 0 : i32
    return %arg0, %c0_i32, %c0_i32_0 : i32, i32, i32
  }
}

</mosaic_0001>

<llo_original>
// kernel: cva_net_forward.1
$region0: #{cva_net_forward.1}
  #allocation0 [shape = 'u32[]', space=smem, size = 0x4, offset = 0x4, fixed_abs, tag = 'smem constant byte address 0x4 - core index']
  #allocation1 [shape = 'u32[72,128]{1,0:T(1,128)}', space=vmem, size = 0x9000, scoped, tag = 'internal scratch']
  #allocation2 [shape = 'f32[18,18,3]{2,1,0:T(8,128)}', space=vmem, size = 0x36000, scoped, tag = 'scratch operand']
  #allocation3 [shape = 'f32[16,16,64]{2,1,0:T(8,128)}', space=vmem, size = 0x20000, scoped, tag = 'scratch operand']
  #allocation4 [shape = 'f32[10,10,64]{2,1,0:T(8,128)}', space=vmem, size = 0x14000, scoped, tag = 'scratch operand']
  #allocation5 [shape = 'f32[8,8,128]{2,1,0:T(8,128)}', space=vmem, size = 0x8000, scoped, tag = 'scratch operand']
  %s0 = inlined_call_operand.vmem [shape: f32[2,16,16,3], index: 0, kind: input, shape index: {}]
  %s1 = inlined_call_operand.hbm [shape: f32[3,3,3,64], index: 1, kind: input, shape index: {}]
  %s2 = inlined_call_operand.hbm [shape: f32[1,64], index: 2, kind: input, shape index: {}]
  %s3 = inlined_call_operand.hbm [shape: f32[3,3,64,128], index: 3, kind: input, shape index: {}]
  %s4 = inlined_call_operand.hbm [shape: f32[1,128], index: 4, kind: input, shape index: {}]
  %s5 = inlined_call_operand.hbm [shape: f32[4,4,128,256], index: 5, kind: input, shape index: {}]
  %s6 = inlined_call_operand.hbm [shape: f32[1,256], index: 6, kind: input, shape index: {}]
  %s7 = inlined_call_operand.vmem [shape: f32[256,2], index: 7, kind: input, shape index: {}]
  %s8 = inlined_call_operand.hbm [shape: f32[1,2], index: 8, kind: input, shape index: {}]
  %s9 = inlined_call_operand.hbm [shape: f32[2,1,2], index: 9, kind: output, shape index: {}]
  %s10 = sld [smem:[#allocation0]]
  $region97: #{cva_net_forward.1} parent=0
    _
  %s12 = ssub.s32 1, %s10
  %s13 = scalar_select 0, %s12, %s10
  $region1: #{cva_net_forward.1} parent=0
    #allocation6 [shape = 'u8[18432]{0}', space=vmem, size = 0x4800, scoped, tag = 'input window, operand 1, single buffered']
    #allocation7 [shape = 's32[2]{0}', space=sflag, size = 0x8, scoped, tag = 'scoped memory for cva_net_forward.1']
    #allocation8 [shape = 's32[2]{0}', space=sflag, size = 0x8, scoped, tag = 'scoped memory for cva_net_forward.1']
    #allocation9 [shape = 'u8[512]{0}', space=vmem, size = 0x400, scoped, tag = 'input window, operand 2, single buffered']
    #allocation10 [shape = 's32[1]{0}', space=sflag, size = 0x4, scoped, tag = 'scoped memory for cva_net_forward.1']
    #allocation11 [shape = 'u8[294912]{0}', space=vmem, size = 0x48000, scoped, tag = 'input window, operand 3, single buffered']
    #allocation12 [shape = 'u8[512]{0}', space=vmem, size = 0x400, scoped, tag = 'input window, operand 4, single buffered']
    #allocation13 [shape = 's32[1]{0}', space=sflag, size = 0x4, scoped, tag = 'scoped memory for cva_net_forward.1']
    #allocation14 [shape = 'u8[2097152]{0}', space=vmem, size = 0x200000, scoped, tag = 'input window, operand 5, single buffered']
    #allocation15 [shape = 'u8[1024]{0}', space=vmem, size = 0x400, scoped, tag = 'input window, operand 6, single buffered']
    #allocation16 [shape = 's32[1]{0}', space=sflag, size = 0x4, scoped, tag = 'scoped memory for cva_net_forward.1']
    #allocation17 [shape = 'u8[512]{0}', space=vmem, size = 0x400, scoped, tag = 'input window, operand 8, single buffered']
    #allocation18 [shape = 'u8[1024]{0}', space=vmem, size = 0x400, scoped, tag = 'output window, operand 0']
    %14 = vsyncpa [#allocation7], 0
    %15 = vsyncpa [#allocation10], 0
    %16 = vsyncpa [#allocation13], 0
    %17 = vsyncpa [#allocation16], 0
    %18 = vsyncpa [#allocation8], 0
    %s19 = scalar_lea.sflag [#allocation8], 1
    %20 = vsyncpa %s19, 0
    loop: start=0, step=1, limit=4
    $region2: #{cva_net_forward.1} parent=1 // loop_pre_header
      _
    $region3: #{cva_net_forward.1} parent=1 // loop_header
      %s22 = sphi 0, %s26
      %p23 = scmp.ge.s32.totalorder %s22, 4
      %s32 = sphi 0, %s34
      %s35 = sphi 0, %s32
      %s36 = sphi 0, %s35
      %s52 = sphi 0, %s36
      %s56 = sphi 0, %s56
      %s58 = sphi 0, %s56
      %s59 = sphi 0, %s58
      %s73 = sphi 0, %s59
      %s77 = sphi 0, %s77
      %s79 = sphi 0, %s77
      %s80 = sphi 0, %s79
      %s94 = sphi 0, %s80
      %s98 = sphi 0, %s98
      %s100 = sphi 0, %s98
      %s101 = sphi 0, %s100
      %s115 = sphi 0, %s101
      %s119 = sphi 0, %s119
      %s121 = sphi 0, %s119
      %s122 = sphi 0, %s121
      %s136 = sphi 0, %s122
      %s140 = sphi 0, %s140
      %s142 = sphi 0, %s140
      %s143 = sphi 0, %s142
      %s157 = sphi 0, %s143
      %s161 = sphi 0, %s161
      %s163 = sphi 0, %s161
      %s164 = sphi 0, %s163
      %s178 = sphi 0, %s164
      %s182 = sphi 0, %s182
      %s184 = sphi 0, %s182
      %s185 = sphi 0, %s184
      %s199 = sphi 0, %s185
      %s203 = sphi 0, %s203
      %s205 = sphi 0, %s203
      %s206 = sphi 0, %s205
      %s220 = sphi 0, %s206
      %s226 = sphi 0, %s228
      %s229 = sphi 0, %s226
      %s230 = sphi 0, %s229
      %s246 = sphi 0, %s230
    $region4: #{cva_net_forward.1} parent=1 // loop_header_branch
      %25 = sbr.rel (%p23) target = $region8
    $region5: #{cva_net_forward.1} parent=1 // loop_body
      %s27 = ssub.s32 %s22, 1
      %s28 = ssub.s32 %s22, 2
      %s29 = sadd.s32 %s22, 1
      %s30 = ssub.s32 %s22, %s29
      %p31 = scmp.eq.s32.totalorder %s30, 0
      %s33 = sadd.s32 %s32, 1
      %s34 = scalar_select %p31, %s32, %s33
      %p37 = pneg %p31
      %p38 = scmp.eq.s32.totalorder %s22, 1
      %p39 = por %p37, %p38
      %p40 = scmp.ne.s32.totalorder %s32, %s35
      %p41 = scmp.eq.s32.totalorder %s22, 0
      %p42 = por %p40, %p41
      %p43 = scmp.ne.s32.totalorder %s32, %s35
      %p44 = scmp.eq.s32.totalorder %s27, 1
      %p45 = por %p43, %p44
      %p46 = scmp.ne.s32.totalorder %s35, %s36
      %p47 = scmp.eq.s32.totalorder %s27, 0
      %p48 = por %p46, %p47
      %p49 = scmp.ne.s32.totalorder %s35, %s36
      %p50 = scmp.eq.s32.totalorder %s28, 1
      %p51 = por %p49, %p50
      %p53 = scmp.ne.s32.totalorder %s36, %s52
      %p54 = scmp.eq.s32.totalorder %s28, 0
      %p55 = por %p53, %p54
      %s57 = sadd.s32 %s56, 1
      %p60 = scmp.eq.s32.totalorder %s22, 1
      %p61 = scmp.ne.s32.totalorder %s56, %s58
      %p62 = scmp.eq.s32.totalorder %s22, 0
      %p63 = por %p61, %p62
      %p64 = scmp.ne.s32.totalorder %s56, %s58
      %p65 = scmp.eq.s32.totalorder %s27, 1
      %p66 = por %p64, %p65
      %p67 = scmp.ne.s32.totalorder %s58, %s59
      %p68 = scmp.eq.s32.totalorder %s27, 0
      %p69 = por %p67, %p68
      %p70 = scmp.ne.s32.totalorder %s58, %s59
      %p71 = scmp.eq.s32.totalorder %s28, 1
      %p72 = por %p70, %p71
      %p74 = scmp.ne.s32.totalorder %s59, %s73
      %p75 = scmp.eq.s32.totalorder %s28, 0
      %p76 = por %p74, %p75
      %s78 = sadd.s32 %s77, 1
      %p81 = scmp.eq.s32.totalorder %s22, 1
      %p82 = scmp.ne.s32.totalorder %s77, %s79
      %p83 = scmp.eq.s32.totalorder %s22, 0
      %p84 = por %p82, %p83
      %p85 = scmp.ne.s32.totalorder %s77, %s79
      %p86 = scmp.eq.s32.totalorder %s27, 1
      %p87 = por %p85, %p86
      %p88 = scmp.ne.s32.totalorder %s79, %s80
      %p89 = scmp.eq.s32.totalorder %s27, 0
      %p90 = por %p88, %p89
      %p91 = scmp.ne.s32.totalorder %s79, %s80
      %p92 = scmp.eq.s32.totalorder %s28, 1
      %p93 = por %p91, %p92
      %p95 = scmp.ne.s32.totalorder %s80, %s94
      %p96 = scmp.eq.s32.totalorder %s28, 0
      %p97 = por %p95, %p96
      %s99 = sadd.s32 %s98, 1
      %p102 = scmp.eq.s32.totalorder %s22, 1
      %p103 = scmp.ne.s32.totalorder %s98, %s100
      %p104 = scmp.eq.s32.totalorder %s22, 0
      %p105 = por %p103, %p104
      %p106 = scmp.ne.s32.totalorder %s98, %s100
      %p107 = scmp.eq.s32.totalorder %s27, 1
      %p108 = por %p106, %p107
      %p109 = scmp.ne.s32.totalorder %s100, %s101
      %p110 = scmp.eq.s32.totalorder %s27, 0
      %p111 = por %p109, %p110
      %p112 = scmp.ne.s32.totalorder %s100, %s101
      %p113 = scmp.eq.s32.totalorder %s28, 1
      %p114 = por %p112, %p113
      %p116 = scmp.ne.s32.totalorder %s101, %s115
      %p117 = scmp.eq.s32.totalorder %s28, 0
      %p118 = por %p116, %p117
      %s120 = sadd.s32 %s119, 1
      %p123 = scmp.eq.s32.totalorder %s22, 1
      %p124 = scmp.ne.s32.totalorder %s119, %s121
      %p125 = scmp.eq.s32.totalorder %s22, 0
      %p126 = por %p124, %p125
      %p127 = scmp.ne.s32.totalorder %s119, %s121
      %p128 = scmp.eq.s32.totalorder %s27, 1
      %p129 = por %p127, %p128
      %p130 = scmp.ne.s32.totalorder %s121, %s122
      %p131 = scmp.eq.s32.totalorder %s27, 0
      %p132 = por %p130, %p131
      %p133 = scmp.ne.s32.totalorder %s121, %s122
      %p134 = scmp.eq.s32.totalorder %s28, 1
      %p135 = por %p133, %p134
      %p137 = scmp.ne.s32.totalorder %s122, %s136
      %p138 = scmp.eq.s32.totalorder %s28, 0
      %p139 = por %p137, %p138
      %s141 = sadd.s32 %s140, 1
      %p144 = scmp.eq.s32.totalorder %s22, 1
      %p145 = scmp.ne.s32.totalorder %s140, %s142
      %p146 = scmp.eq.s32.totalorder %s22, 0
      %p147 = por %p145, %p146
      %p148 = scmp.ne.s32.totalorder %s140, %s142
      %p149 = scmp.eq.s32.totalorder %s27, 1
      %p150 = por %p148, %p149
      %p151 = scmp.ne.s32.totalorder %s142, %s143
      %p152 = scmp.eq.s32.totalorder %s27, 0
      %p153 = por %p151, %p152
      %p154 = scmp.ne.s32.totalorder %s142, %s143
      %p155 = scmp.eq.s32.totalorder %s28, 1
      %p156 = por %p154, %p155
      %p158 = scmp.ne.s32.totalorder %s143, %s157
      %p159 = scmp.eq.s32.totalorder %s28, 0
      %p160 = por %p158, %p159
      %s162 = sadd.s32 %s161, 1
      %p165 = scmp.eq.s32.totalorder %s22, 1
      %p166 = scmp.ne.s32.totalorder %s161, %s163
      %p167 = scmp.eq.s32.totalorder %s22, 0
      %p168 = por %p166, %p167
      %p169 = scmp.ne.s32.totalorder %s161, %s163
      %p170 = scmp.eq.s32.totalorder %s27, 1
      %p171 = por %p169, %p170
      %p172 = scmp.ne.s32.totalorder %s163, %s164
      %p173 = scmp.eq.s32.totalorder %s27, 0
      %p174 = por %p172, %p173
      %p175 = scmp.ne.s32.totalorder %s163, %s164
      %p176 = scmp.eq.s32.totalorder %s28, 1
      %p177 = por %p175, %p176
      %p179 = scmp.ne.s32.totalorder %s164, %s178
      %p180 = scmp.eq.s32.totalorder %s28, 0
      %p181 = por %p179, %p180
      %s183 = sadd.s32 %s182, 1
      %p186 = scmp.eq.s32.totalorder %s22, 1
      %p187 = scmp.ne.s32.totalorder %s182, %s184
      %p188 = scmp.eq.s32.totalorder %s22, 0
      %p189 = por %p187, %p188
      %p190 = scmp.ne.s32.totalorder %s182, %s184
      %p191 = scmp.eq.s32.totalorder %s27, 1
      %p192 = por %p190, %p191
      %p193 = scmp.ne.s32.totalorder %s184, %s185
      %p194 = scmp.eq.s32.totalorder %s27, 0
      %p195 = por %p193, %p194
      %p196 = scmp.ne.s32.totalorder %s184, %s185
      %p197 = scmp.eq.s32.totalorder %s28, 1
      %p198 = por %p196, %p197
      %p200 = scmp.ne.s32.totalorder %s185, %s199
      %p201 = scmp.eq.s32.totalorder %s28, 0
      %p202 = por %p200, %p201
      %s204 = sadd.s32 %s203, 1
      %p207 = scmp.eq.s32.totalorder %s22, 1
      %p208 = scmp.ne.s32.totalorder %s203, %s205
      %p209 = scmp.eq.s32.totalorder %s22, 0
      %p210 = por %p208, %p209
      %p211 = scmp.ne.s32.totalorder %s203, %s205
      %p212 = scmp.eq.s32.totalorder %s27, 1
      %p213 = por %p211, %p212
      %p214 = scmp.ne.s32.totalorder %s205, %s206
      %p215 = scmp.eq.s32.totalorder %s27, 0
      %p216 = por %p214, %p215
      %p217 = scmp.ne.s32.totalorder %s205, %s206
      %p218 = scmp.eq.s32.totalorder %s28, 1
      %p219 = por %p217, %p218
      %p221 = scmp.ne.s32.totalorder %s206, %s220
      %p222 = scmp.eq.s32.totalorder %s28, 0
      %p223 = por %p221, %p222
      %s224 = ssub.s32 %s22, %s29
      %p225 = scmp.eq.s32.totalorder %s224, 0
      %s227 = sadd.s32 %s226, 1
      %s228 = scalar_select %p225, %s226, %s227
      %p231 = pneg %p225
      %p232 = scmp.eq.s32.totalorder %s22, 1
      %p233 = por %p231, %p232
      %p234 = scmp.ne.s32.totalorder %s226, %s229
      %p235 = scmp.eq.s32.totalorder %s22, 0
      %p236 = por %p234, %p235
      %p237 = scmp.ne.s32.totalorder %s226, %s229
      %p238 = scmp.eq.s32.totalorder %s27, 1
      %p239 = por %p237, %p238
      %p240 = scmp.ne.s32.totalorder %s229, %s230
      %p241 = scmp.eq.s32.totalorder %s27, 0
      %p242 = por %p240, %p241
      %p243 = scmp.ne.s32.totalorder %s229, %s230
      %p244 = scmp.eq.s32.totalorder %s28, 1
      %p245 = por %p243, %p244
      %p247 = scmp.ne.s32.totalorder %s230, %s246
      %p248 = scmp.eq.s32.totalorder %s28, 0
      %p249 = por %p247, %p248
      %p250 = scmp.le.s32.totalorder 1, %s22
      %p251 = scmp.lt.s32.totalorder %s22, 3
      %p252 = pnand %p250, %p251
      %p253 = pneg %p252
      // Predicated region
      $region9: #{cva_net_forward.1} parent=5 // pred_check
        _
      $region10: #{cva_net_forward.1} parent=5 // pred_check_branch
        %255 = sbr.rel (%p252) target = $region12
      $region11: #{cva_net_forward.1} parent=5 // pred_region
        %s256 = ssub.s32 %s22, 1
        // Predicated region
        $region13: #{cva_net_forward.1} parent=11 // pred_check
          %p257 = pneg %p69
        $region14: #{cva_net_forward.1} parent=11 // pred_check_branch
          %259 = sbr.rel (%p257) target = $region16
        $region15: #{cva_net_forward.1} parent=11 // pred_region
          %261 = vsyncadd [#allocation7], 0
          %s262 = sshll.u32 %s1, 4
          %s263 = int_to_ptr.hbm [resolvable:$true] %s262
          %s264 = sshll.u32 [#allocation6], 4
          %s265 = int_to_ptr.vmem [resolvable:$true] %s264
          %270 = dma.hbm_to_vmem [thread:$0]  %s263, 576, %s265, [#allocation7], 64, 64, 4
        $region16: #{cva_net_forward.1} parent=11 // pred_fallthru
          _
        // Predicated region
        $region17: #{cva_net_forward.1} parent=11 // pred_check
          %p271 = pneg %p90
        $region18: #{cva_net_forward.1} parent=11 // pred_check_branch
          %273 = sbr.rel (%p271) target = $region20
        $region19: #{cva_net_forward.1} parent=11 // pred_region
          %275 = vsyncadd [#allocation10], 0
          %s277 = sshll.u32 %s2, 4
          %s278 = int_to_ptr.hbm [resolvable:$true] %s277
          %s279 = sshll.u32 [#allocation9], 4
          %s280 = int_to_ptr.vmem [resolvable:$true] %s279
          %282 = dma.hbm_to_vmem [thread:$0]  %s278, 16, %s280, [#allocation10]
        $region20: #{cva_net_forward.1} parent=11 // pred_fallthru
          _
        // Predicated region
        $region21: #{cva_net_forward.1} parent=11 // pred_check
          %p283 = pneg %p111
        $region22: #{cva_net_forward.1} parent=11 // pred_check_branch
          %285 = sbr.rel (%p283) target = $region24
        $region23: #{cva_net_forward.1} parent=11 // pred_region
          %287 = vsyncadd [#allocation10], 0
          %s288 = sshll.u32 %s3, 4
          %s289 = int_to_ptr.hbm [resolvable:$true] %s288
          %s290 = sshll.u32 [#allocation11], 4
          %s291 = int_to_ptr.vmem [resolvable:$true] %s290
          %296 = dma.hbm_to_vmem [thread:$0]  %s289, 9216, %s291, [#allocation10], 128, 128, 8
        $region24: #{cva_net_forward.1} parent=11 // pred_fallthru
          _
        // Predicated region
        $region25: #{cva_net_forward.1} parent=11 // pred_check
          %p297 = pneg %p132
        $region26: #{cva_net_forward.1} parent=11 // pred_check_branch
          %299 = sbr.rel (%p297) target = $region28
        $region27: #{cva_net_forward.1} parent=11 // pred_region
          %301 = vsyncadd [#allocation13], 0
          %s303 = sshll.u32 %s4, 4
          %s304 = int_to_ptr.hbm [resolvable:$true] %s303
          %s305 = sshll.u32 [#allocation12], 4
          %s306 = int_to_ptr.vmem [resolvable:$true] %s305
          %308 = dma.hbm_to_vmem [thread:$0]  %s304, 16, %s306, [#allocation13]
        $region28: #{cva_net_forward.1} parent=11 // pred_fallthru
          _
        // Predicated region
        $region29: #{cva_net_forward.1} parent=11 // pred_check
          %p309 = pneg %p153
        $region30: #{cva_net_forward.1} parent=11 // pred_check_branch
          %311 = sbr.rel (%p309) target = $region32
        $region31: #{cva_net_forward.1} parent=11 // pred_region
          %313 = vsyncadd [#allocation13], 0
          %s314 = sshll.u32 %s5, 4
          %s315 = int_to_ptr.hbm [resolvable:$true] %s314
          %s316 = sshll.u32 [#allocation14], 4
          %s317 = int_to_ptr.vmem [resolvable:$true] %s316
          %322 = dma.hbm_to_vmem [thread:$0]  %s315, 65536, %s317, [#allocation13], 256, 256, 16
        $region32: #{cva_net_forward.1} parent=11 // pred_fallthru
          _
        // Predicated region
        $region33: #{cva_net_forward.1} parent=11 // pred_check
          %p323 = pneg %p174
        $region34: #{cva_net_forward.1} parent=11 // pred_check_branch
          %325 = sbr.rel (%p323) target = $region36
        $region35: #{cva_net_forward.1} parent=11 // pred_region
          %327 = vsyncadd [#allocation16], 0
          %s329 = sshll.u32 %s6, 4
          %s330 = int_to_ptr.hbm [resolvable:$true] %s329
          %s331 = sshll.u32 [#allocation15], 4
          %s332 = int_to_ptr.vmem [resolvable:$true] %s331
          %334 = dma.hbm_to_vmem [thread:$0]  %s330, 32, %s332, [#allocation16]
        $region36: #{cva_net_forward.1} parent=11 // pred_fallthru
          _
        // Predicated region
        $region37: #{cva_net_forward.1} parent=11 // pred_check
          %p335 = pneg %p195
        $region38: #{cva_net_forward.1} parent=11 // pred_check_branch
          %337 = sbr.rel (%p335) target = $region40
        $region39: #{cva_net_forward.1} parent=11 // pred_region
          _
        $region40: #{cva_net_forward.1} parent=11 // pred_fallthru
          _
        // Predicated region
        $region41: #{cva_net_forward.1} parent=11 // pred_check
          %p338 = pneg %p216
        $region42: #{cva_net_forward.1} parent=11 // pred_check_branch
          %340 = sbr.rel (%p338) target = $region44
        $region43: #{cva_net_forward.1} parent=11 // pred_region
          %342 = vsyncadd [#allocation16], 0
          %s344 = sshll.u32 %s8, 4
          %s345 = int_to_ptr.hbm [resolvable:$true] %s344
          %s346 = sshll.u32 [#allocation17], 4
          %s347 = int_to_ptr.vmem [resolvable:$true] %s346
          %349 = dma.hbm_to_vmem [thread:$0]  %s345, 16, %s347, [#allocation16]
        $region44: #{cva_net_forward.1} parent=11 // pred_fallthru
          _
      $region12: #{cva_net_forward.1} parent=5 // pred_fallthru
        _
      %p350 = scmp.lt.s32.totalorder %s22, 2
      // Predicated region
      $region45: #{cva_net_forward.1} parent=5 // pred_check
        %p351 = pneg %p350
      $region46: #{cva_net_forward.1} parent=5 // pred_check_branch
        %353 = sbr.rel (%p351) target = $region48
      $region47: #{cva_net_forward.1} parent=5 // pred_region
        // Predicated region
        $region49: #{cva_net_forward.1} parent=47 // pred_check
          %p354 = pneg %p42
        $region50: #{cva_net_forward.1} parent=47 // pred_check_branch
          %356 = sbr.rel (%p354) target = $region52
        $region51: #{cva_net_forward.1} parent=47 // pred_region
          %p357 = scmp.lt.s32.totalorder %s22, 1
          %s358 = scalar_select %p357, %s22, 1
          %s359 = smul.addr %s358, 32
          %s360 = smul.addr %s359, 8
          %s361 = scalar_lea.vmem %s0, %s360
        $region52: #{cva_net_forward.1} parent=47 // pred_fallthru
          _
      $region48: #{cva_net_forward.1} parent=5 // pred_fallthru
        _
      %p362 = scmp.le.s32.totalorder 1, %s22
      %p363 = scmp.lt.s32.totalorder %s22, 3
      %p364 = pnand %p362, %p363
      %p365 = pneg %p364
      // Predicated region
      $region53: #{cva_net_forward.1} parent=5 // pred_check
        _
      $region54: #{cva_net_forward.1} parent=5 // pred_check_branch
        %367 = sbr.rel (%p364) target = $region56
      $region55: #{cva_net_forward.1} parent=5 // pred_region
        %s368 = ssub.s32 %s22, 1
        // Predicated region
        $region57: #{cva_net_forward.1} parent=55 // pred_check
          %p369 = pneg %p69
        $region58: #{cva_net_forward.1} parent=55 // pred_check_branch
          %371 = sbr.rel (%p369) target = $region60
        $region59: #{cva_net_forward.1} parent=55 // pred_region
          %373 = dma.done [#allocation7], 576
        $region60: #{cva_net_forward.1} parent=55 // pred_fallthru
          _
        // Predicated region
        $region61: #{cva_net_forward.1} parent=55 // pred_check
          %p374 = pneg %p90
        $region62: #{cva_net_forward.1} parent=55 // pred_check_branch
          %376 = sbr.rel (%p374) target = $region64
        $region63: #{cva_net_forward.1} parent=55 // pred_region
          %378 = dma.done [#allocation10], 16
        $region64: #{cva_net_forward.1} parent=55 // pred_fallthru
          _
        // Predicated region
        $region65: #{cva_net_forward.1} parent=55 // pred_check
          %p379 = pneg %p111
        $region66: #{cva_net_forward.1} parent=55 // pred_check_branch
          %381 = sbr.rel (%p379) target = $region68
        $region67: #{cva_net_forward.1} parent=55 // pred_region
          %383 = dma.done [#allocation10], 9216
        $region68: #{cva_net_forward.1} parent=55 // pred_fallthru
          _
        // Predicated region
        $region69: #{cva_net_forward.1} parent=55 // pred_check
          %p384 = pneg %p132
        $region70: #{cva_net_forward.1} parent=55 // pred_check_branch
          %386 = sbr.rel (%p384) target = $region72
        $region71: #{cva_net_forward.1} parent=55 // pred_region
          %388 = dma.done [#allocation13], 16
        $region72: #{cva_net_forward.1} parent=55 // pred_fallthru
          _
        // Predicated region
        $region73: #{cva_net_forward.1} parent=55 // pred_check
          %p389 = pneg %p153
        $region74: #{cva_net_forward.1} parent=55 // pred_check_branch
          %391 = sbr.rel (%p389) target = $region76
        $region75: #{cva_net_forward.1} parent=55 // pred_region
          %393 = dma.done [#allocation13], 65536
        $region76: #{cva_net_forward.1} parent=55 // pred_fallthru
          _
        // Predicated region
        $region77: #{cva_net_forward.1} parent=55 // pred_check
          %p394 = pneg %p174
        $region78: #{cva_net_forward.1} parent=55 // pred_check_branch
          %396 = sbr.rel (%p394) target = $region80
        $region79: #{cva_net_forward.1} parent=55 // pred_region
          %398 = dma.done [#allocation16], 32
        $region80: #{cva_net_forward.1} parent=55 // pred_fallthru
          _
        // Predicated region
        $region81: #{cva_net_forward.1} parent=55 // pred_check
          %p399 = pneg %p216
        $region82: #{cva_net_forward.1} parent=55 // pred_check_branch
          %401 = sbr.rel (%p399) target = $region84
        $region83: #{cva_net_forward.1} parent=55 // pred_region
          %403 = dma.done [#allocation16], 16
        $region84: #{cva_net_forward.1} parent=55 // pred_fallthru
          _
        %p404 = scmp.lt.s32.totalorder %s27, 1
        %s405 = scalar_select %p404, %s27, 1
        %s406 = smul.addr %s405, 32
        %s407 = smul.addr %s406, 8
        %s408 = scalar_lea.vmem %s0, %s407
        %p409 = pneg %p48
        %p410 = pneg %p45
        %p411 = pneg %p69
        %p412 = pneg %p66
        %p413 = pneg %p90
        %p414 = pneg %p87
        %p415 = pneg %p111
        %p416 = pneg %p108
        %p417 = pneg %p132
        %p418 = pneg %p129
        %p419 = pneg %p153
        %p420 = pneg %p150
        %p421 = pneg %p174
        %p422 = pneg %p171
        %p423 = pneg %p195
        %p424 = pneg %p192
        %p425 = pneg %p216
        %p426 = pneg %p213
        %p427 = pneg %p242
        %p428 = pneg %p239
        %s429 = sand.u32 %s229, 1
        %s430 = scalar_lea.sflag [#allocation8], %s429
        %s431 = sand.u32 %s229, 1
        %s432 = scalar_lea.vmem [#allocation18], %s431
        %p433 = scmp.lt.s32.totalorder %s27, 1
        %s434 = scalar_select %p433, %s27, 1
        %s435 = smul.addr %s434, 32
        %s436 = smul.addr %s435, 8
        %s437 = scalar_lea.vmem %s0, %s436
        %vm438 = vcmask 23552
        %439 = vst.msk [vmem:[#allocation2] sm:$0xff] %vm438, 0.0
        %440 = vst.msk [vmem:[#allocation2 + $0x8] sm:$0xff] %vm438, 0.0
        %vm441 = vcmask 17408
        %442 = vst.msk [vmem:[#allocation2 + $0x10] sm:$0x3] %vm441, 0.0
        %443 = vst.msk [vmem:[#allocation2 + $0x18] sm:$0xff] %vm438, 0.0
        %444 = vst.msk [vmem:[#allocation2 + $0x20] sm:$0xff] %vm438, 0.0
        %445 = vst.msk [vmem:[#allocation2 + $0x28] sm:$0x3] %vm441, 0.0
        %446 = vst.msk [vmem:[#allocation2 + $0x30] sm:$0xff] %vm438, 0.0
        %447 = vst.msk [vmem:[#allocation2 + $0x38] sm:$0xff] %vm438, 0.0
        %448 = vst.msk [vmem:[#allocation2 + $0x40] sm:$0x3] %vm441, 0.0
        %449 = vst.msk [vmem:[#allocation2 + $0x48] sm:$0xff] %vm438, 0.0
        %450 = vst.msk [vmem:[#allocation2 + $0x50] sm:$0xff] %vm438, 0.0
        %451 = vst.msk [vmem:[#allocation2 + $0x58] sm:$0x3] %vm441, 0.0
        %452 = vst.msk [vmem:[#allocation2 + $0x60] sm:$0xff] %vm438, 0.0
        %453 = vst.msk [vmem:[#allocation2 + $0x68] sm:$0xff] %vm438, 0.0
        %454 = vst.msk [vmem:[#allocation2 + $0x70] sm:$0x3] %vm441, 0.0
        %455 = vst.msk [vmem:[#allocation2 + $0x78] sm:$0xff] %vm438, 0.0
        %456 = vst.msk [vmem:[#allocation2 + $0x80] sm:$0xff] %vm438, 0.0
        %457 = vst.msk [vmem:[#allocation2 + $0x88] sm:$0x3] %vm441, 0.0
        %458 = vst.msk [vmem:[#allocation2 + $0x90] sm:$0xff] %vm438, 0.0
        %459 = vst.msk [vmem:[#allocation2 + $0x98] sm:$0xff] %vm438, 0.0
        %460 = vst.msk [vmem:[#allocation2 + $0xa0] sm:$0x3] %vm441, 0.0
        %461 = vst.msk [vmem:[#allocation2 + $0xa8] sm:$0xff] %vm438, 0.0
        %462 = vst.msk [vmem:[#allocation2 + $0xb0] sm:$0xff] %vm438, 0.0
        %463 = vst.msk [vmem:[#allocation2 + $0xb8] sm:$0x3] %vm441, 0.0
        %464 = vst.msk [vmem:[#allocation2 + $0xc0] sm:$0xff] %vm438, 0.0
        %465 = vst.msk [vmem:[#allocation2 + $0xc8] sm:$0xff] %vm438, 0.0
        %466 = vst.msk [vmem:[#allocation2 + $0xd0] sm:$0x3] %vm441, 0.0
        %467 = vst.msk [vmem:[#allocation2 + $0xd8] sm:$0xff] %vm438, 0.0
        %468 = vst.msk [vmem:[#allocation2 + $0xe0] sm:$0xff] %vm438, 0.0
        %469 = vst.msk [vmem:[#allocation2 + $0xe8] sm:$0x3] %vm441, 0.0
        %470 = vst.msk [vmem:[#allocation2 + $0xf0] sm:$0xff] %vm438, 0.0
        %471 = vst.msk [vmem:[#allocation2 + $0xf8] sm:$0xff] %vm438, 0.0
        %472 = vst.msk [vmem:[#allocation2 + $0x100] sm:$0x3] %vm441, 0.0
        %473 = vst.msk [vmem:[#allocation2 + $0x108] sm:$0xff] %vm438, 0.0
        %474 = vst.msk [vmem:[#allocation2 + $0x110] sm:$0xff] %vm438, 0.0
        %475 = vst.msk [vmem:[#allocation2 + $0x118] sm:$0x3] %vm441, 0.0
        %476 = vst.msk [vmem:[#allocation2 + $0x120] sm:$0xff] %vm438, 0.0
        %477 = vst.msk [vmem:[#allocation2 + $0x128] sm:$0xff] %vm438, 0.0
        %478 = vst.msk [vmem:[#allocation2 + $0x130] sm:$0x3] %vm441, 0.0
        %479 = vst.msk [vmem:[#allocation2 + $0x138] sm:$0xff] %vm438, 0.0
        %480 = vst.msk [vmem:[#allocation2 + $0x140] sm:$0xff] %vm438, 0.0
        %481 = vst.msk [vmem:[#allocation2 + $0x148] sm:$0x3] %vm441, 0.0
        %482 = vst.msk [vmem:[#allocation2 + $0x150] sm:$0xff] %vm438, 0.0
        %483 = vst.msk [vmem:[#allocation2 + $0x158] sm:$0xff] %vm438, 0.0
        %484 = vst.msk [vmem:[#allocation2 + $0x160] sm:$0x3] %vm441, 0.0
        %485 = vst.msk [vmem:[#allocation2 + $0x168] sm:$0xff] %vm438, 0.0
        %486 = vst.msk [vmem:[#allocation2 + $0x170] sm:$0xff] %vm438, 0.0
        %487 = vst.msk [vmem:[#allocation2 + $0x178] sm:$0x3] %vm441, 0.0
        %488 = vst.msk [vmem:[#allocation2 + $0x180] sm:$0xff] %vm438, 0.0
        %489 = vst.msk [vmem:[#allocation2 + $0x188] sm:$0xff] %vm438, 0.0
        %490 = vst.msk [vmem:[#allocation2 + $0x190] sm:$0x3] %vm441, 0.0
        %491 = vst.msk [vmem:[#allocation2 + $0x198] sm:$0xff] %vm438, 0.0
        %492 = vst.msk [vmem:[#allocation2 + $0x1a0] sm:$0xff] %vm438, 0.0
        %493 = vst.msk [vmem:[#allocation2 + $0x1a8] sm:$0x3] %vm441, 0.0
        %v494 = vld [vmem:[%s437] sm:$0xff]
        %v495 = vld [vmem:[%s437 + $0x8] sm:$0xff]
        %v496 = vld [vmem:[%s437 + $0x10] sm:$0xff]
        %v497 = vld [vmem:[%s437 + $0x18] sm:$0xff]
        %v498 = vld [vmem:[%s437 + $0x20] sm:$0xff]
        %v499 = vld [vmem:[%s437 + $0x28] sm:$0xff]
        %v500 = vld [vmem:[%s437 + $0x30] sm:$0xff]
        %v501 = vld [vmem:[%s437 + $0x38] sm:$0xff]
        %v502 = vld [vmem:[%s437 + $0x40] sm:$0xff]
        %v503 = vld [vmem:[%s437 + $0x48] sm:$0xff]
        %v504 = vld [vmem:[%s437 + $0x50] sm:$0xff]
        %v505 = vld [vmem:[%s437 + $0x58] sm:$0xff]
        %v506 = vld [vmem:[%s437 + $0x60] sm:$0xff]
        %v507 = vld [vmem:[%s437 + $0x68] sm:$0xff]
        %v508 = vld [vmem:[%s437 + $0x70] sm:$0xff]
        %v509 = vld [vmem:[%s437 + $0x78] sm:$0xff]
        %v510 = vld [vmem:[%s437 + $0x80] sm:$0xff]
        %v511 = vld [vmem:[%s437 + $0x88] sm:$0xff]
        %v512 = vld [vmem:[%s437 + $0x90] sm:$0xff]
        %v513 = vld [vmem:[%s437 + $0x98] sm:$0xff]
        %v514 = vld [vmem:[%s437 + $0xa0] sm:$0xff]
        %v515 = vld [vmem:[%s437 + $0xa8] sm:$0xff]
        %v516 = vld [vmem:[%s437 + $0xb0] sm:$0xff]
        %v517 = vld [vmem:[%s437 + $0xb8] sm:$0xff]
        %v518 = vld [vmem:[%s437 + $0xc0] sm:$0xff]
        %v519 = vld [vmem:[%s437 + $0xc8] sm:$0xff]
        %v520 = vld [vmem:[%s437 + $0xd0] sm:$0xff]
        %v521 = vld [vmem:[%s437 + $0xd8] sm:$0xff]
        %v522 = vld [vmem:[%s437 + $0xe0] sm:$0xff]
        %v523 = vld [vmem:[%s437 + $0xe8] sm:$0xff]
        %v524 = vld [vmem:[%s437 + $0xf0] sm:$0xff]
        %v525 = vld [vmem:[%s437 + $0xf8] sm:$0xff]
        %s526 = scalar_lea.vmem [#allocation2], 24
        %527 = vst.msk [vmem:[%s526 + $0x1] sm:$0xff] %vm438, %v494
        %528 = vst.msk [vmem:[%s526 + $0x9] sm:$0xff] %vm438, %v495
        %529 = vst.msk [vmem:[%s526 + $0x19] sm:$0xff] %vm438, %v496
        %530 = vst.msk [vmem:[%s526 + $0x21] sm:$0xff] %vm438, %v497
        %531 = vst.msk [vmem:[%s526 + $0x31] sm:$0xff] %vm438, %v498
        %532 = vst.msk [vmem:[%s526 + $0x39] sm:$0xff] %vm438, %v499
        %533 = vst.msk [vmem:[%s526 + $0x49] sm:$0xff] %vm438, %v500
        %534 = vst.msk [vmem:[%s526 + $0x51] sm:$0xff] %vm438, %v501
        %535 = vst.msk [vmem:[%s526 + $0x61] sm:$0xff] %vm438, %v502
        %536 = vst.msk [vmem:[%s526 + $0x69] sm:$0xff] %vm438, %v503
        %537 = vst.msk [vmem:[%s526 + $0x79] sm:$0xff] %vm438, %v504
        %538 = vst.msk [vmem:[%s526 + $0x81] sm:$0xff] %vm438, %v505
        %539 = vst.msk [vmem:[%s526 + $0x91] sm:$0xff] %vm438, %v506
        %540 = vst.msk [vmem:[%s526 + $0x99] sm:$0xff] %vm438, %v507
        %541 = vst.msk [vmem:[%s526 + $0xa9] sm:$0xff] %vm438, %v508
        %542 = vst.msk [vmem:[%s526 + $0xb1] sm:$0xff] %vm438, %v509
        %543 = vst.msk [vmem:[%s526 + $0xc1] sm:$0xff] %vm438, %v510
        %544 = vst.msk [vmem:[%s526 + $0xc9] sm:$0xff] %vm438, %v511
        %545 = vst.msk [vmem:[%s526 + $0xd9] sm:$0xff] %vm438, %v512
        %546 = vst.msk [vmem:[%s526 + $0xe1] sm:$0xff] %vm438, %v513
        %547 = vst.msk [vmem:[%s526 + $0xf1] sm:$0xff] %vm438, %v514
        %548 = vst.msk [vmem:[%s526 + $0xf9] sm:$0xff] %vm438, %v515
        %549 = vst.msk [vmem:[%s526 + $0x109] sm:$0xff] %vm438, %v516
        %550 = vst.msk [vmem:[%s526 + $0x111] sm:$0xff] %vm438, %v517
        %551 = vst.msk [vmem:[%s526 + $0x121] sm:$0xff] %vm438, %v518
        %552 = vst.msk [vmem:[%s526 + $0x129] sm:$0xff] %vm438, %v519
        %553 = vst.msk [vmem:[%s526 + $0x139] sm:$0xff] %vm438, %v520
        %554 = vst.msk [vmem:[%s526 + $0x141] sm:$0xff] %vm438, %v521
        %555 = vst.msk [vmem:[%s526 + $0x151] sm:$0xff] %vm438, %v522
        %556 = vst.msk [vmem:[%s526 + $0x159] sm:$0xff] %vm438, %v523
        %557 = vst.msk [vmem:[%s526 + $0x169] sm:$0xff] %vm438, %v524
        %558 = vst.msk [vmem:[%s526 + $0x171] sm:$0xff] %vm438, %v525
        %v559 = vld [vmem:[#allocation9] sm:$0x1]
        %v561 = vperm.slane %v559, 0
        %v563 = vld [vmem:[#allocation2] sm:$0xff]
        %v564 = vld [vmem:[#allocation2 + $0x8] sm:$0xff]
        %v565 = vld [vmem:[#allocation2 + $0x18] sm:$0xff]
        %v566 = vld [vmem:[#allocation2 + $0x20] sm:$0xff]
        %v567 = vld [vmem:[#allocation2 + $0x30] sm:$0xff]
        %v568 = vld [vmem:[#allocation2 + $0x38] sm:$0xff]
        %v569 = vld [vmem:[#allocation2 + $0x48] sm:$0xff]
        %v570 = vld [vmem:[#allocation2 + $0x50] sm:$0xff]
        %v571 = vld [vmem:[#allocation2 + $0x60] sm:$0xff]
        %v572 = vld [vmem:[#allocation2 + $0x68] sm:$0xff]
        %v573 = vld [vmem:[#allocation2 + $0x78] sm:$0xff]
        %v574 = vld [vmem:[#allocation2 + $0x80] sm:$0xff]
        %v575 = vld [vmem:[#allocation2 + $0x90] sm:$0xff]
        %v576 = vld [vmem:[#allocation2 + $0x98] sm:$0xff]
        %v577 = vld [vmem:[#allocation2 + $0xa8] sm:$0xff]
        %v578 = vld [vmem:[#allocation2 + $0xb0] sm:$0xff]
        %v579 = vld [vmem:[#allocation2 + $0xc0] sm:$0xff]
        %v580 = vld [vmem:[#allocation2 + $0xc8] sm:$0xff]
        %v581 = vld [vmem:[#allocation2 + $0xd8] sm:$0xff]
        %v582 = vld [vmem:[#allocation2 + $0xe0] sm:$0xff]
        %v583 = vld [vmem:[#allocation2 + $0xf0] sm:$0xff]
        %v584 = vld [vmem:[#allocation2 + $0xf8] sm:$0xff]
        %v585 = vld [vmem:[#allocation2 + $0x108] sm:$0xff]
        %v586 = vld [vmem:[#allocation2 + $0x110] sm:$0xff]
        %v587 = vld [vmem:[#allocation2 + $0x120] sm:$0xff]
        %v588 = vld [vmem:[#allocation2 + $0x128] sm:$0xff]
        %v589 = vld [vmem:[#allocation2 + $0x138] sm:$0xff]
        %v590 = vld [vmem:[#allocation2 + $0x140] sm:$0xff]
        %v591 = vld [vmem:[#allocation2 + $0x150] sm:$0xff]
        %v592 = vld [vmem:[#allocation2 + $0x158] sm:$0xff]
        %v593 = vld [vmem:[#allocation2 + $0x168] sm:$0xff]
        %v594 = vld [vmem:[#allocation2 + $0x170] sm:$0xff]
        %v595 = vld [vmem:[#allocation6] sm:$0x7]
        %v597 = vsel %vm438, %v563, 0
        %v600 = vsel %vm438, %v564, 0
        %v603 = vsel %vm438, %v565, 0
        %v606 = vsel %vm438, %v566, 0
        %v609 = vsel %vm438, %v567, 0
        %v612 = vsel %vm438, %v568, 0
        %v615 = vsel %vm438, %v569, 0
        %v618 = vsel %vm438, %v570, 0
        %v621 = vsel %vm438, %v571, 0
        %v624 = vsel %vm438, %v572, 0
        %v627 = vsel %vm438, %v573, 0
        %v630 = vsel %vm438, %v574, 0
        %v633 = vsel %vm438, %v575, 0
        %v636 = vsel %vm438, %v576, 0
        %v639 = vsel %vm438, %v577, 0
        %v642 = vsel %vm438, %v578, 0
        %v645 = vsel %vm438, %v579, 0
        %v648 = vsel %vm438, %v580, 0
        %v651 = vsel %vm438, %v581, 0
        %v654 = vsel %vm438, %v582, 0
        %v657 = vsel %vm438, %v583, 0
        %v660 = vsel %vm438, %v584, 0
        %v663 = vsel %vm438, %v585, 0
        %v666 = vsel %vm438, %v586, 0
        %v669 = vsel %vm438, %v587, 0
        %v672 = vsel %vm438, %v588, 0
        %v675 = vsel %vm438, %v589, 0
        %v678 = vsel %vm438, %v590, 0
        %v681 = vsel %vm438, %v591, 0
        %v684 = vsel %vm438, %v592, 0
        %v687 = vsel %vm438, %v593, 0
        %v690 = vsel %vm438, %v594, 0
        %vm692 = vcmask 1042432
        %v694 = vsel %vm692, %v595, 0
        %696 = vmatpush.msra.mxu0 0.0
        %697 = vmatpush.msra.mxu0 0.0
        %698 = vmatpush.msra.mxu0 0.0
        %699 = vmatpush.msra.mxu0 0.0
        %700 = vmatpush.msra.mxu0 0.0
        %701 = vmatpush.msra.mxu0 0.0
        %702 = vmatpush.msra.mxu0 0.0
        %703 = vmatpush.msra.mxu0 0.0
        %704 = vmatpush.msra.mxu0 0.0
        %705 = vmatpush.msra.mxu0 0.0
        %706 = vmatpush.msra.mxu0 0.0
        %707 = vmatpush.msra.mxu0 0.0
        %708 = vmatpush.msra.mxu0 0.0
        %709 = vmatpush.msra.mxu0 0.0
        %710 = vmatpush.msra.mxu0 0.0
        %711 = vmatpush.msra.mxu0 %v694
        %712 = vmatmul.f32.gmra.mxu0 %v597
        %v713 = vpop.f32.mrf.mxu0
        %v714 = vadd.f32 0.0, %v713
        %715 = vmatmul.f32.gmra.mxu0 %v600
        %v716 = vpop.f32.mrf.mxu0
        %v717 = vadd.f32 0.0, %v716
        %718 = vmatmul.f32.gmra.mxu0 %v603
        %v719 = vpop.f32.mrf.mxu0
        %v720 = vadd.f32 0.0, %v719
        %721 = vmatmul.f32.gmra.mxu0 %v606
        %v722 = vpop.f32.mrf.mxu0
        %v723 = vadd.f32 0.0, %v722
        %724 = vmatmul.f32.gmra.mxu0 %v609
        %v725 = vpop.f32.mrf.mxu0
        %v726 = vadd.f32 0.0, %v725
        %727 = vmatmul.f32.gmra.mxu0 %v612
        %v728 = vpop.f32.mrf.mxu0
        %v729 = vadd.f32 0.0, %v728
        %730 = vmatmul.f32.gmra.mxu0 %v615
        %v731 = vpop.f32.mrf.mxu0
        %v732 = vadd.f32 0.0, %v731
        %733 = vmatmul.f32.gmra.mxu0 %v618
        %v734 = vpop.f32.mrf.mxu0
        %v735 = vadd.f32 0.0, %v734
        %736 = vmatmul.f32.gmra.mxu0 %v621
        %v737 = vpop.f32.mrf.mxu0
        %v738 = vadd.f32 0.0, %v737
        %739 = vmatmul.f32.gmra.mxu0 %v624
        %v740 = vpop.f32.mrf.mxu0
        %v741 = vadd.f32 0.0, %v740
        %742 = vmatmul.f32.gmra.mxu0 %v627
        %v743 = vpop.f32.mrf.mxu0
        %v744 = vadd.f32 0.0, %v743
        %745 = vmatmul.f32.gmra.mxu0 %v630
        %v746 = vpop.f32.mrf.mxu0
        %v747 = vadd.f32 0.0, %v746
        %748 = vmatmul.f32.gmra.mxu0 %v633
        %v749 = vpop.f32.mrf.mxu0
        %v750 = vadd.f32 0.0, %v749
        %751 = vmatmul.f32.gmra.mxu0 %v636
        %v752 = vpop.f32.mrf.mxu0
        %v753 = vadd.f32 0.0, %v752
        %754 = vmatmul.f32.gmra.mxu0 %v639
        %v755 = vpop.f32.mrf.mxu0
        %v756 = vadd.f32 0.0, %v755
        %757 = vmatmul.f32.gmra.mxu0 %v642
        %v758 = vpop.f32.mrf.mxu0
        %v759 = vadd.f32 0.0, %v758
        %760 = vmatmul.f32.gmra.mxu0 %v645
        %v761 = vpop.f32.mrf.mxu0
        %v762 = vadd.f32 0.0, %v761
        %763 = vmatmul.f32.gmra.mxu0 %v648
        %v764 = vpop.f32.mrf.mxu0
        %v765 = vadd.f32 0.0, %v764
        %766 = vmatmul.f32.gmra.mxu0 %v651
        %v767 = vpop.f32.mrf.mxu0
        %v768 = vadd.f32 0.0, %v767
        %769 = vmatmul.f32.gmra.mxu0 %v654
        %v770 = vpop.f32.mrf.mxu0
        %v771 = vadd.f32 0.0, %v770
        %772 = vmatmul.f32.gmra.mxu0 %v657
        %v773 = vpop.f32.mrf.mxu0
        %v774 = vadd.f32 0.0, %v773
        %775 = vmatmul.f32.gmra.mxu0 %v660
        %v776 = vpop.f32.mrf.mxu0
        %v777 = vadd.f32 0.0, %v776
        %778 = vmatmul.f32.gmra.mxu0 %v663
        %v779 = vpop.f32.mrf.mxu0
        %v780 = vadd.f32 0.0, %v779
        %781 = vmatmul.f32.gmra.mxu0 %v666
        %v782 = vpop.f32.mrf.mxu0
        %v783 = vadd.f32 0.0, %v782
        %784 = vmatmul.f32.gmra.mxu0 %v669
        %v785 = vpop.f32.mrf.mxu0
        %v786 = vadd.f32 0.0, %v785
        %787 = vmatmul.f32.gmra.mxu0 %v672
        %v788 = vpop.f32.mrf.mxu0
        %v789 = vadd.f32 0.0, %v788
        %790 = vmatmul.f32.gmra.mxu0 %v675
        %v791 = vpop.f32.mrf.mxu0
        %v792 = vadd.f32 0.0, %v791
        %793 = vmatmul.f32.gmra.mxu0 %v678
        %v794 = vpop.f32.mrf.mxu0
        %v795 = vadd.f32 0.0, %v794
        %796 = vmatmul.f32.gmra.mxu0 %v681
        %v797 = vpop.f32.mrf.mxu0
        %v798 = vadd.f32 0.0, %v797
        %799 = vmatmul.f32.gmra.mxu0 %v684
        %v800 = vpop.f32.mrf.mxu0
        %v801 = vadd.f32 0.0, %v800
        %802 = vmatmul.f32.gmra.mxu0 %v687
        %v803 = vpop.f32.mrf.mxu0
        %v804 = vadd.f32 0.0, %v803
        %805 = vmatmul.f32.gmra.mxu0 %v690
        %v806 = vpop.f32.mrf.mxu0
        %v807 = vadd.f32 0.0, %v806
        %808 = vdwg.mxu0
        %v809 = vadd.f32 %v561, %v714
        %v810 = vadd.f32 %v561, %v717
        %v811 = vadd.f32 %v561, %v720
        %v812 = vadd.f32 %v561, %v723
        %v813 = vadd.f32 %v561, %v726
        %v814 = vadd.f32 %v561, %v729
        %v815 = vadd.f32 %v561, %v732
        %v816 = vadd.f32 %v561, %v735
        %v817 = vadd.f32 %v561, %v738
        %v818 = vadd.f32 %v561, %v741
        %v819 = vadd.f32 %v561, %v744
        %v820 = vadd.f32 %v561, %v747
        %v821 = vadd.f32 %v561, %v750
        %v822 = vadd.f32 %v561, %v753
        %v823 = vadd.f32 %v561, %v756
        %v824 = vadd.f32 %v561, %v759
        %v825 = vadd.f32 %v561, %v762
        %v826 = vadd.f32 %v561, %v765
        %v827 = vadd.f32 %v561, %v768
        %v828 = vadd.f32 %v561, %v771
        %v829 = vadd.f32 %v561, %v774
        %v830 = vadd.f32 %v561, %v777
        %v831 = vadd.f32 %v561, %v780
        %v832 = vadd.f32 %v561, %v783
        %v833 = vadd.f32 %v561, %v786
        %v834 = vadd.f32 %v561, %v789
        %v835 = vadd.f32 %v561, %v792
        %v836 = vadd.f32 %v561, %v795
        %v837 = vadd.f32 %v561, %v798
        %v838 = vadd.f32 %v561, %v801
        %v839 = vadd.f32 %v561, %v804
        %v840 = vadd.f32 %v561, %v807
        %v841 = vld [vmem:[#allocation2 + $0x1] sm:$0xff]
        %v842 = vld [vmem:[#allocation2 + $0x9] sm:$0xff]
        %v843 = vld [vmem:[#allocation2 + $0x19] sm:$0xff]
        %v844 = vld [vmem:[#allocation2 + $0x21] sm:$0xff]
        %v845 = vld [vmem:[#allocation2 + $0x31] sm:$0xff]
        %v846 = vld [vmem:[#allocation2 + $0x39] sm:$0xff]
        %v847 = vld [vmem:[#allocation2 + $0x49] sm:$0xff]
        %v848 = vld [vmem:[#allocation2 + $0x51] sm:$0xff]
        %v849 = vld [vmem:[#allocation2 + $0x61] sm:$0xff]
        %v850 = vld [vmem:[#allocation2 + $0x69] sm:$0xff]
        %v851 = vld [vmem:[#allocation2 + $0x79] sm:$0xff]
        %v852 = vld [vmem:[#allocation2 + $0x81] sm:$0xff]
        %v853 = vld [vmem:[#allocation2 + $0x91] sm:$0xff]
        %v854 = vld [vmem:[#allocation2 + $0x99] sm:$0xff]
        %v855 = vld [vmem:[#allocation2 + $0xa9] sm:$0xff]
        %v856 = vld [vmem:[#allocation2 + $0xb1] sm:$0xff]
        %v857 = vld [vmem:[#allocation2 + $0xc1] sm:$0xff]
        %v858 = vld [vmem:[#allocation2 + $0xc9] sm:$0xff]
        %v859 = vld [vmem:[#allocation2 + $0xd9] sm:$0xff]
        %v860 = vld [vmem:[#allocation2 + $0xe1] sm:$0xff]
        %v861 = vld [vmem:[#allocation2 + $0xf1] sm:$0xff]
        %v862 = vld [vmem:[#allocation2 + $0xf9] sm:$0xff]
        %v863 = vld [vmem:[#allocation2 + $0x109] sm:$0xff]
        %v864 = vld [vmem:[#allocation2 + $0x111] sm:$0xff]
        %v865 = vld [vmem:[#allocation2 + $0x121] sm:$0xff]
        %v866 = vld [vmem:[#allocation2 + $0x129] sm:$0xff]
        %v867 = vld [vmem:[#allocation2 + $0x139] sm:$0xff]
        %v868 = vld [vmem:[#allocation2 + $0x141] sm:$0xff]
        %v869 = vld [vmem:[#allocation2 + $0x151] sm:$0xff]
        %v870 = vld [vmem:[#allocation2 + $0x159] sm:$0xff]
        %v871 = vld [vmem:[#allocation2 + $0x169] sm:$0xff]
        %v872 = vld [vmem:[#allocation2 + $0x171] sm:$0xff]
        %s873 = scalar_lea.vmem [#allocation6], 4
        %v874 = vld [vmem:[%s873] sm:$0x7]
        %v876 = vsel %vm438, %v841, 0
        %v879 = vsel %vm438, %v842, 0
        %v882 = vsel %vm438, %v843, 0
        %v885 = vsel %vm438, %v844, 0
        %v888 = vsel %vm438, %v845, 0
        %v891 = vsel %vm438, %v846, 0
        %v894 = vsel %vm438, %v847, 0
        %v897 = vsel %vm438, %v848, 0
        %v900 = vsel %vm438, %v849, 0
        %v903 = vsel %vm438, %v850, 0
        %v906 = vsel %vm438, %v851, 0
        %v909 = vsel %vm438, %v852, 0
        %v912 = vsel %vm438, %v853, 0
        %v915 = vsel %vm438, %v854, 0
        %v918 = vsel %vm438, %v855, 0
        %v921 = vsel %vm438, %v856, 0
        %v924 = vsel %vm438, %v857, 0
        %v927 = vsel %vm438, %v858, 0
        %v930 = vsel %vm438, %v859, 0
        %v933 = vsel %vm438, %v860, 0
        %v936 = vsel %vm438, %v861, 0
        %v939 = vsel %vm438, %v862, 0
        %v942 = vsel %vm438, %v863, 0
        %v945 = vsel %vm438, %v864, 0
        %v948 = vsel %vm438, %v865, 0
        %v951 = vsel %vm438, %v866, 0
        %v954 = vsel %vm438, %v867, 0
        %v957 = vsel %vm438, %v868, 0
        %v960 = vsel %vm438, %v869, 0
        %v963 = vsel %vm438, %v870, 0
        %v966 = vsel %vm438, %v871, 0
        %v969 = vsel %vm438, %v872, 0
        %v972 = vsel %vm692, %v874, 0
        %974 = vmatpush.msra.mxu0 0.0
        %975 = vmatpush.msra.mxu0 0.0
        %976 = vmatpush.msra.mxu0 0.0
        %977 = vmatpush.msra.mxu0 0.0
        %978 = vmatpush.msra.mxu0 0.0
        %979 = vmatpush.msra.mxu0 0.0
        %980 = vmatpush.msra.mxu0 0.0
        %981 = vmatpush.msra.mxu0 0.0
        %982 = vmatpush.msra.mxu0 0.0
        %983 = vmatpush.msra.mxu0 0.0
        %984 = vmatpush.msra.mxu0 0.0
        %985 = vmatpush.msra.mxu0 0.0
        %986 = vmatpush.msra.mxu0 0.0
        %987 = vmatpush.msra.mxu0 0.0
        %988 = vmatpush.msra.mxu0 0.0
        %989 = vmatpush.msra.mxu0 %v972
        %990 = vmatmul.f32.gmra.mxu0 %v876
        %v991 = vpop.f32.mrf.mxu0
        %v992 = vadd.f32 0.0, %v991
        %993 = vmatmul.f32.gmra.mxu0 %v879
        %v994 = vpop.f32.mrf.mxu0
        %v995 = vadd.f32 0.0, %v994
        %996 = vmatmul.f32.gmra.mxu0 %v882
        %v997 = vpop.f32.mrf.mxu0
        %v998 = vadd.f32 0.0, %v997
        %999 = vmatmul.f32.gmra.mxu0 %v885
        %v1000 = vpop.f32.mrf.mxu0
        %v1001 = vadd.f32 0.0, %v1000
        %1002 = vmatmul.f32.gmra.mxu0 %v888
        %v1003 = vpop.f32.mrf.mxu0
        %v1004 = vadd.f32 0.0, %v1003
        %1005 = vmatmul.f32.gmra.mxu0 %v891
        %v1006 = vpop.f32.mrf.mxu0
        %v1007 = vadd.f32 0.0, %v1006
        %1008 = vmatmul.f32.gmra.mxu0 %v894
        %v1009 = vpop.f32.mrf.mxu0
        %v1010 = vadd.f32 0.0, %v1009
        %1011 = vmatmul.f32.gmra.mxu0 %v897
        %v1012 = vpop.f32.mrf.mxu0
        %v1013 = vadd.f32 0.0, %v1012
        %1014 = vmatmul.f32.gmra.mxu0 %v900
        %v1015 = vpop.f32.mrf.mxu0
        %v1016 = vadd.f32 0.0, %v1015
        %1017 = vmatmul.f32.gmra.mxu0 %v903
        %v1018 = vpop.f32.mrf.mxu0
        %v1019 = vadd.f32 0.0, %v1018
        %1020 = vmatmul.f32.gmra.mxu0 %v906
        %v1021 = vpop.f32.mrf.mxu0
        %v1022 = vadd.f32 0.0, %v1021
        %1023 = vmatmul.f32.gmra.mxu0 %v909
        %v1024 = vpop.f32.mrf.mxu0
        %v1025 = vadd.f32 0.0, %v1024
        %1026 = vmatmul.f32.gmra.mxu0 %v912
        %v1027 = vpop.f32.mrf.mxu0
        %v1028 = vadd.f32 0.0, %v1027
        %1029 = vmatmul.f32.gmra.mxu0 %v915
        %v1030 = vpop.f32.mrf.mxu0
        %v1031 = vadd.f32 0.0, %v1030
        %1032 = vmatmul.f32.gmra.mxu0 %v918
        %v1033 = vpop.f32.mrf.mxu0
        %v1034 = vadd.f32 0.0, %v1033
        %1035 = vmatmul.f32.gmra.mxu0 %v921
        %v1036 = vpop.f32.mrf.mxu0
        %v1037 = vadd.f32 0.0, %v1036
        %1038 = vmatmul.f32.gmra.mxu0 %v924
        %v1039 = vpop.f32.mrf.mxu0
        %v1040 = vadd.f32 0.0, %v1039
        %1041 = vmatmul.f32.gmra.mxu0 %v927
        %v1042 = vpop.f32.mrf.mxu0
        %v1043 = vadd.f32 0.0, %v1042
        %1044 = vmatmul.f32.gmra.mxu0 %v930
        %v1045 = vpop.f32.mrf.mxu0
        %v1046 = vadd.f32 0.0, %v1045
        %1047 = vmatmul.f32.gmra.mxu0 %v933
        %v1048 = vpop.f32.mrf.mxu0
        %v1049 = vadd.f32 0.0, %v1048
        %1050 = vmatmul.f32.gmra.mxu0 %v936
        %v1051 = vpop.f32.mrf.mxu0
        %v1052 = vadd.f32 0.0, %v1051
        %1053 = vmatmul.f32.gmra.mxu0 %v939
        %v1054 = vpop.f32.mrf.mxu0
        %v1055 = vadd.f32 0.0, %v1054
        %1056 = vmatmul.f32.gmra.mxu0 %v942
        %v1057 = vpop.f32.mrf.mxu0
        %v1058 = vadd.f32 0.0, %v1057
        %1059 = vmatmul.f32.gmra.mxu0 %v945
        %v1060 = vpop.f32.mrf.mxu0
        %v1061 = vadd.f32 0.0, %v1060
        %1062 = vmatmul.f32.gmra.mxu0 %v948
        %v1063 = vpop.f32.mrf.mxu0
        %v1064 = vadd.f32 0.0, %v1063
        %1065 = vmatmul.f32.gmra.mxu0 %v951
        %v1066 = vpop.f32.mrf.mxu0
        %v1067 = vadd.f32 0.0, %v1066
        %1068 = vmatmul.f32.gmra.mxu0 %v954
        %v1069 = vpop.f32.mrf.mxu0
        %v1070 = vadd.f32 0.0, %v1069
        %1071 = vmatmul.f32.gmra.mxu0 %v957
        %v1072 = vpop.f32.mrf.mxu0
        %v1073 = vadd.f32 0.0, %v1072
        %1074 = vmatmul.f32.gmra.mxu0 %v960
        %v1075 = vpop.f32.mrf.mxu0
        %v1076 = vadd.f32 0.0, %v1075
        %1077 = vmatmul.f32.gmra.mxu0 %v963
        %v1078 = vpop.f32.mrf.mxu0
        %v1079 = vadd.f32 0.0, %v1078
        %1080 = vmatmul.f32.gmra.mxu0 %v966
        %v1081 = vpop.f32.mrf.mxu0
        %v1082 = vadd.f32 0.0, %v1081
        %1083 = vmatmul.f32.gmra.mxu0 %v969
        %v1084 = vpop.f32.mrf.mxu0
        %v1085 = vadd.f32 0.0, %v1084
        %1086 = vdwg.mxu0
        %v1087 = vadd.f32 %v809, %v992
        %v1088 = vadd.f32 %v810, %v995
        %v1089 = vadd.f32 %v811, %v998
        %v1090 = vadd.f32 %v812, %v1001
        %v1091 = vadd.f32 %v813, %v1004
        %v1092 = vadd.f32 %v814, %v1007
        %v1093 = vadd.f32 %v815, %v1010
        %v1094 = vadd.f32 %v816, %v1013
        %v1095 = vadd.f32 %v817, %v1016
        %v1096 = vadd.f32 %v818, %v1019
        %v1097 = vadd.f32 %v819, %v1022
        %v1098 = vadd.f32 %v820, %v1025
        %v1099 = vadd.f32 %v821, %v1028
        %v1100 = vadd.f32 %v822, %v1031
        %v1101 = vadd.f32 %v823, %v1034
        %v1102 = vadd.f32 %v824, %v1037
        %v1103 = vadd.f32 %v825, %v1040
        %v1104 = vadd.f32 %v826, %v1043
        %v1105 = vadd.f32 %v827, %v1046
        %v1106 = vadd.f32 %v828, %v1049
        %v1107 = vadd.f32 %v829, %v1052
        %v1108 = vadd.f32 %v830, %v1055
        %v1109 = vadd.f32 %v831, %v1058
        %v1110 = vadd.f32 %v832, %v1061
        %v1111 = vadd.f32 %v833, %v1064
        %v1112 = vadd.f32 %v834, %v1067
        %v1113 = vadd.f32 %v835, %v1070
        %v1114 = vadd.f32 %v836, %v1073
        %v1115 = vadd.f32 %v837, %v1076
        %v1116 = vadd.f32 %v838, %v1079
        %v1117 = vadd.f32 %v839, %v1082
        %v1118 = vadd.f32 %v840, %v1085
        %v1119 = vld [vmem:[#allocation2 + $0x2] sm:$0xff]
        %v1120 = vld [vmem:[#allocation2 + $0xa] sm:$0xff]
        %v1121 = vld [vmem:[#allocation2 + $0x1a] sm:$0xff]
        %v1122 = vld [vmem:[#allocation2 + $0x22] sm:$0xff]
        %v1123 = vld [vmem:[#allocation2 + $0x32] sm:$0xff]
        %v1124 = vld [vmem:[#allocation2 + $0x3a] sm:$0xff]
        %v1125 = vld [vmem:[#allocation2 + $0x4a] sm:$0xff]
        %v1126 = vld [vmem:[#allocation2 + $0x52] sm:$0xff]
        %v1127 = vld [vmem:[#allocation2 + $0x62] sm:$0xff]
        %v1128 = vld [vmem:[#allocation2 + $0x6a] sm:$0xff]
        %v1129 = vld [vmem:[#allocation2 + $0x7a] sm:$0xff]
        %v1130 = vld [vmem:[#allocation2 + $0x82] sm:$0xff]
        %v1131 = vld [vmem:[#allocation2 + $0x92] sm:$0xff]
        %v1132 = vld [vmem:[#allocation2 + $0x9a] sm:$0xff]
        %v1133 = vld [vmem:[#allocation2 + $0xaa] sm:$0xff]
        %v1134 = vld [vmem:[#allocation2 + $0xb2] sm:$0xff]
        %v1135 = vld [vmem:[#allocation2 + $0xc2] sm:$0xff]
        %v1136 = vld [vmem:[#allocation2 + $0xca] sm:$0xff]
        %v1137 = vld [vmem:[#allocation2 + $0xda] sm:$0xff]
        %v1138 = vld [vmem:[#allocation2 + $0xe2] sm:$0xff]
        %v1139 = vld [vmem:[#allocation2 + $0xf2] sm:$0xff]
        %v1140 = vld [vmem:[#allocation2 + $0xfa] sm:$0xff]
        %v1141 = vld [vmem:[#allocation2 + $0x10a] sm:$0xff]
        %v1142 = vld [vmem:[#allocation2 + $0x112] sm:$0xff]
        %v1143 = vld [vmem:[#allocation2 + $0x122] sm:$0xff]
        %v1144 = vld [vmem:[#allocation2 + $0x12a] sm:$0xff]
        %v1145 = vld [vmem:[#allocation2 + $0x13a] sm:$0xff]
        %v1146 = vld [vmem:[#allocation2 + $0x142] sm:$0xff]
        %v1147 = vld [vmem:[#allocation2 + $0x152] sm:$0xff]
        %v1148 = vld [vmem:[#allocation2 + $0x15a] sm:$0xff]
        %v1149 = vld [vmem:[#allocation2 + $0x16a] sm:$0xff]
        %v1150 = vld [vmem:[#allocation2 + $0x172] sm:$0xff]
        %s1151 = scalar_lea.vmem [#allocation6], 8
        %v1152 = vld [vmem:[%s1151] sm:$0x7]
        %v1154 = vsel %vm438, %v1119, 0
        %v1157 = vsel %vm438, %v1120, 0
        %v1160 = vsel %vm438, %v1121, 0
        %v1163 = vsel %vm438, %v1122, 0
        %v1166 = vsel %vm438, %v1123, 0
        %v1169 = vsel %vm438, %v1124, 0
        %v1172 = vsel %vm438, %v1125, 0
        %v1175 = vsel %vm438, %v1126, 0
        %v1178 = vsel %vm438, %v1127, 0
        %v1181 = vsel %vm438, %v1128, 0
        %v1184 = vsel %vm438, %v1129, 0
        %v1187 = vsel %vm438, %v1130, 0
        %v1190 = vsel %vm438, %v1131, 0
        %v1193 = vsel %vm438, %v1132, 0
        %v1196 = vsel %vm438, %v1133, 0
        %v1199 = vsel %vm438, %v1134, 0
        %v1202 = vsel %vm438, %v1135, 0
        %v1205 = vsel %vm438, %v1136, 0
        %v1208 = vsel %vm438, %v1137, 0
        %v1211 = vsel %vm438, %v1138, 0
        %v1214 = vsel %vm438, %v1139, 0
        %v1217 = vsel %vm438, %v1140, 0
        %v1220 = vsel %vm438, %v1141, 0
        %v1223 = vsel %vm438, %v1142, 0
        %v1226 = vsel %vm438, %v1143, 0
        %v1229 = vsel %vm438, %v1144, 0
        %v1232 = vsel %vm438, %v1145, 0
        %v1235 = vsel %vm438, %v1146, 0
        %v1238 = vsel %vm438, %v1147, 0
        %v1241 = vsel %vm438, %v1148, 0
        %v1244 = vsel %vm438, %v1149, 0
        %v1247 = vsel %vm438, %v1150, 0
        %v1250 = vsel %vm692, %v1152, 0
        %1252 = vmatpush.msra.mxu0 0.0
        %1253 = vmatpush.msra.mxu0 0.0
        %1254 = vmatpush.msra.mxu0 0.0
        %1255 = vmatpush.msra.mxu0 0.0
        %1256 = vmatpush.msra.mxu0 0.0
        %1257 = vmatpush.msra.mxu0 0.0
        %1258 = vmatpush.msra.mxu0 0.0
        %1259 = vmatpush.msra.mxu0 0.0
        %1260 = vmatpush.msra.mxu0 0.0
        %1261 = vmatpush.msra.mxu0 0.0
        %1262 = vmatpush.msra.mxu0 0.0
        %1263 = vmatpush.msra.mxu0 0.0
        %1264 = vmatpush.msra.mxu0 0.0
        %1265 = vmatpush.msra.mxu0 0.0
        %1266 = vmatpush.msra.mxu0 0.0
        %1267 = vmatpush.msra.mxu0 %v1250
        %1268 = vmatmul.f32.gmra.mxu0 %v1154
        %v1269 = vpop.f32.mrf.mxu0
        %v1270 = vadd.f32 0.0, %v1269
        %1271 = vmatmul.f32.gmra.mxu0 %v1157
        %v1272 = vpop.f32.mrf.mxu0
        %v1273 = vadd.f32 0.0, %v1272
        %1274 = vmatmul.f32.gmra.mxu0 %v1160
        %v1275 = vpop.f32.mrf.mxu0
        %v1276 = vadd.f32 0.0, %v1275
        %1277 = vmatmul.f32.gmra.mxu0 %v1163
        %v1278 = vpop.f32.mrf.mxu0
        %v1279 = vadd.f32 0.0, %v1278
        %1280 = vmatmul.f32.gmra.mxu0 %v1166
        %v1281 = vpop.f32.mrf.mxu0
        %v1282 = vadd.f32 0.0, %v1281
        %1283 = vmatmul.f32.gmra.mxu0 %v1169
        %v1284 = vpop.f32.mrf.mxu0
        %v1285 = vadd.f32 0.0, %v1284
        %1286 = vmatmul.f32.gmra.mxu0 %v1172
        %v1287 = vpop.f32.mrf.mxu0
        %v1288 = vadd.f32 0.0, %v1287
        %1289 = vmatmul.f32.gmra.mxu0 %v1175
        %v1290 = vpop.f32.mrf.mxu0
        %v1291 = vadd.f32 0.0, %v1290
        %1292 = vmatmul.f32.gmra.mxu0 %v1178
        %v1293 = vpop.f32.mrf.mxu0
        %v1294 = vadd.f32 0.0, %v1293
        %1295 = vmatmul.f32.gmra.mxu0 %v1181
        %v1296 = vpop.f32.mrf.mxu0
        %v1297 = vadd.f32 0.0, %v1296
        %1298 = vmatmul.f32.gmra.mxu0 %v1184
        %v1299 = vpop.f32.mrf.mxu0
        %v1300 = vadd.f32 0.0, %v1299
        %1301 = vmatmul.f32.gmra.mxu0 %v1187
        %v1302 = vpop.f32.mrf.mxu0
        %v1303 = vadd.f32 0.0, %v1302
        %1304 = vmatmul.f32.gmra.mxu0 %v1190
        %v1305 = vpop.f32.mrf.mxu0
        %v1306 = vadd.f32 0.0, %v1305
        %1307 = vmatmul.f32.gmra.mxu0 %v1193
        %v1308 = vpop.f32.mrf.mxu0
        %v1309 = vadd.f32 0.0, %v1308
        %1310 = vmatmul.f32.gmra.mxu0 %v1196
        %v1311 = vpop.f32.mrf.mxu0
        %v1312 = vadd.f32 0.0, %v1311
        %1313 = vmatmul.f32.gmra.mxu0 %v1199
        %v1314 = vpop.f32.mrf.mxu0
        %v1315 = vadd.f32 0.0, %v1314
        %1316 = vmatmul.f32.gmra.mxu0 %v1202
        %v1317 = vpop.f32.mrf.mxu0
        %v1318 = vadd.f32 0.0, %v1317
        %1319 = vmatmul.f32.gmra.mxu0 %v1205
        %v1320 = vpop.f32.mrf.mxu0
        %v1321 = vadd.f32 0.0, %v1320
        %1322 = vmatmul.f32.gmra.mxu0 %v1208
        %v1323 = vpop.f32.mrf.mxu0
        %v1324 = vadd.f32 0.0, %v1323
        %1325 = vmatmul.f32.gmra.mxu0 %v1211
        %v1326 = vpop.f32.mrf.mxu0
        %v1327 = vadd.f32 0.0, %v1326
        %1328 = vmatmul.f32.gmra.mxu0 %v1214
        %v1329 = vpop.f32.mrf.mxu0
        %v1330 = vadd.f32 0.0, %v1329
        %1331 = vmatmul.f32.gmra.mxu0 %v1217
        %v1332 = vpop.f32.mrf.mxu0
        %v1333 = vadd.f32 0.0, %v1332
        %1334 = vmatmul.f32.gmra.mxu0 %v1220
        %v1335 = vpop.f32.mrf.mxu0
        %v1336 = vadd.f32 0.0, %v1335
        %1337 = vmatmul.f32.gmra.mxu0 %v1223
        %v1338 = vpop.f32.mrf.mxu0
        %v1339 = vadd.f32 0.0, %v1338
        %1340 = vmatmul.f32.gmra.mxu0 %v1226
        %v1341 = vpop.f32.mrf.mxu0
        %v1342 = vadd.f32 0.0, %v1341
        %1343 = vmatmul.f32.gmra.mxu0 %v1229
        %v1344 = vpop.f32.mrf.mxu0
        %v1345 = vadd.f32 0.0, %v1344
        %1346 = vmatmul.f32.gmra.mxu0 %v1232
        %v1347 = vpop.f32.mrf.mxu0
        %v1348 = vadd.f32 0.0, %v1347
        %1349 = vmatmul.f32.gmra.mxu0 %v1235
        %v1350 = vpop.f32.mrf.mxu0
        %v1351 = vadd.f32 0.0, %v1350
        %1352 = vmatmul.f32.gmra.mxu0 %v1238
        %v1353 = vpop.f32.mrf.mxu0
        %v1354 = vadd.f32 0.0, %v1353
        %1355 = vmatmul.f32.gmra.mxu0 %v1241
        %v1356 = vpop.f32.mrf.mxu0
        %v1357 = vadd.f32 0.0, %v1356
        %1358 = vmatmul.f32.gmra.mxu0 %v1244
        %v1359 = vpop.f32.mrf.mxu0
        %v1360 = vadd.f32 0.0, %v1359
        %1361 = vmatmul.f32.gmra.mxu0 %v1247
        %v1362 = vpop.f32.mrf.mxu0
        %v1363 = vadd.f32 0.0, %v1362
        %1364 = vdwg.mxu0
        %v1365 = vadd.f32 %v1087, %v1270
        %v1366 = vadd.f32 %v1088, %v1273
        %v1367 = vadd.f32 %v1089, %v1276
        %v1368 = vadd.f32 %v1090, %v1279
        %v1369 = vadd.f32 %v1091, %v1282
        %v1370 = vadd.f32 %v1092, %v1285
        %v1371 = vadd.f32 %v1093, %v1288
        %v1372 = vadd.f32 %v1094, %v1291
        %v1373 = vadd.f32 %v1095, %v1294
        %v1374 = vadd.f32 %v1096, %v1297
        %v1375 = vadd.f32 %v1097, %v1300
        %v1376 = vadd.f32 %v1098, %v1303
        %v1377 = vadd.f32 %v1099, %v1306
        %v1378 = vadd.f32 %v1100, %v1309
        %v1379 = vadd.f32 %v1101, %v1312
        %v1380 = vadd.f32 %v1102, %v1315
        %v1381 = vadd.f32 %v1103, %v1318
        %v1382 = vadd.f32 %v1104, %v1321
        %v1383 = vadd.f32 %v1105, %v1324
        %v1384 = vadd.f32 %v1106, %v1327
        %v1385 = vadd.f32 %v1107, %v1330
        %v1386 = vadd.f32 %v1108, %v1333
        %v1387 = vadd.f32 %v1109, %v1336
        %v1388 = vadd.f32 %v1110, %v1339
        %v1389 = vadd.f32 %v1111, %v1342
        %v1390 = vadd.f32 %v1112, %v1345
        %v1391 = vadd.f32 %v1113, %v1348
        %v1392 = vadd.f32 %v1114, %v1351
        %v1393 = vadd.f32 %v1115, %v1354
        %v1394 = vadd.f32 %v1116, %v1357
        %v1395 = vadd.f32 %v1117, %v1360
        %v1396 = vadd.f32 %v1118, %v1363
        %v1397 = vld [vmem:[%s526] sm:$0xff]
        %v1398 = vld [vmem:[%s526 + $0x8] sm:$0xff]
        %v1399 = vld [vmem:[%s526 + $0x18] sm:$0xff]
        %v1400 = vld [vmem:[%s526 + $0x20] sm:$0xff]
        %v1401 = vld [vmem:[%s526 + $0x30] sm:$0xff]
        %v1402 = vld [vmem:[%s526 + $0x38] sm:$0xff]
        %v1403 = vld [vmem:[%s526 + $0x48] sm:$0xff]
        %v1404 = vld [vmem:[%s526 + $0x50] sm:$0xff]
        %v1405 = vld [vmem:[%s526 + $0x60] sm:$0xff]
        %v1406 = vld [vmem:[%s526 + $0x68] sm:$0xff]
        %v1407 = vld [vmem:[%s526 + $0x78] sm:$0xff]
        %v1408 = vld [vmem:[%s526 + $0x80] sm:$0xff]
        %v1409 = vld [vmem:[%s526 + $0x90] sm:$0xff]
        %v1410 = vld [vmem:[%s526 + $0x98] sm:$0xff]
        %v1411 = vld [vmem:[%s526 + $0xa8] sm:$0xff]
        %v1412 = vld [vmem:[%s526 + $0xb0] sm:$0xff]
        %v1413 = vld [vmem:[%s526 + $0xc0] sm:$0xff]
        %v1414 = vld [vmem:[%s526 + $0xc8] sm:$0xff]
        %v1415 = vld [vmem:[%s526 + $0xd8] sm:$0xff]
        %v1416 = vld [vmem:[%s526 + $0xe0] sm:$0xff]
        %v1417 = vld [vmem:[%s526 + $0xf0] sm:$0xff]
        %v1418 = vld [vmem:[%s526 + $0xf8] sm:$0xff]
        %v1419 = vld [vmem:[%s526 + $0x108] sm:$0xff]
        %v1420 = vld [vmem:[%s526 + $0x110] sm:$0xff]
        %v1421 = vld [vmem:[%s526 + $0x120] sm:$0xff]
        %v1422 = vld [vmem:[%s526 + $0x128] sm:$0xff]
        %v1423 = vld [vmem:[%s526 + $0x138] sm:$0xff]
        %v1424 = vld [vmem:[%s526 + $0x140] sm:$0xff]
        %v1425 = vld [vmem:[%s526 + $0x150] sm:$0xff]
        %v1426 = vld [vmem:[%s526 + $0x158] sm:$0xff]
        %v1427 = vld [vmem:[%s526 + $0x168] sm:$0xff]
        %v1428 = vld [vmem:[%s526 + $0x170] sm:$0xff]
        %s1429 = scalar_lea.vmem [#allocation6], 12
        %v1430 = vld [vmem:[%s1429] sm:$0x7]
        %v1432 = vsel %vm438, %v1397, 0
        %v1435 = vsel %vm438, %v1398, 0
        %v1438 = vsel %vm438, %v1399, 0
        %v1441 = vsel %vm438, %v1400, 0
        %v1444 = vsel %vm438, %v1401, 0
        %v1447 = vsel %vm438, %v1402, 0
        %v1450 = vsel %vm438, %v1403, 0
        %v1453 = vsel %vm438, %v1404, 0
        %v1456 = vsel %vm438, %v1405, 0
        %v1459 = vsel %vm438, %v1406, 0
        %v1462 = vsel %vm438, %v1407, 0
        %v1465 = vsel %vm438, %v1408, 0
        %v1468 = vsel %vm438, %v1409, 0
        %v1471 = vsel %vm438, %v1410, 0
        %v1474 = vsel %vm438, %v1411, 0
        %v1477 = vsel %vm438, %v1412, 0
        %v1480 = vsel %vm438, %v1413, 0
        %v1483 = vsel %vm438, %v1414, 0
        %v1486 = vsel %vm438, %v1415, 0
        %v1489 = vsel %vm438, %v1416, 0
        %v1492 = vsel %vm438, %v1417, 0
        %v1495 = vsel %vm438, %v1418, 0
        %v1498 = vsel %vm438, %v1419, 0
        %v1501 = vsel %vm438, %v1420, 0
        %v1504 = vsel %vm438, %v1421, 0
        %v1507 = vsel %vm438, %v1422, 0
        %v1510 = vsel %vm438, %v1423, 0
        %v1513 = vsel %vm438, %v1424, 0
        %v1516 = vsel %vm438, %v1425, 0
        %v1519 = vsel %vm438, %v1426, 0
        %v1522 = vsel %vm438, %v1427, 0
        %v1525 = vsel %vm438, %v1428, 0
        %v1528 = vsel %vm692, %v1430, 0
        %1530 = vmatpush.msra.mxu0 0.0
        %1531 = vmatpush.msra.mxu0 0.0
        %1532 = vmatpush.msra.mxu0 0.0
        %1533 = vmatpush.msra.mxu0 0.0
        %1534 = vmatpush.msra.mxu0 0.0
        %1535 = vmatpush.msra.mxu0 0.0
        %1536 = vmatpush.msra.mxu0 0.0
        %1537 = vmatpush.msra.mxu0 0.0
        %1538 = vmatpush.msra.mxu0 0.0
        %1539 = vmatpush.msra.mxu0 0.0
        %1540 = vmatpush.msra.mxu0 0.0
        %1541 = vmatpush.msra.mxu0 0.0
        %1542 = vmatpush.msra.mxu0 0.0
        %1543 = vmatpush.msra.mxu0 0.0
        %1544 = vmatpush.msra.mxu0 0.0
        %1545 = vmatpush.msra.mxu0 %v1528
        %1546 = vmatmul.f32.gmra.mxu0 %v1432
        %v1547 = vpop.f32.mrf.mxu0
        %v1548 = vadd.f32 0.0, %v1547
        %1549 = vmatmul.f32.gmra.mxu0 %v1435
        %v1550 = vpop.f32.mrf.mxu0
        %v1551 = vadd.f32 0.0, %v1550
        %1552 = vmatmul.f32.gmra.mxu0 %v1438
        %v1553 = vpop.f32.mrf.mxu0
        %v1554 = vadd.f32 0.0, %v1553
        %1555 = vmatmul.f32.gmra.mxu0 %v1441
        %v1556 = vpop.f32.mrf.mxu0
        %v1557 = vadd.f32 0.0, %v1556
        %1558 = vmatmul.f32.gmra.mxu0 %v1444
        %v1559 = vpop.f32.mrf.mxu0
        %v1560 = vadd.f32 0.0, %v1559
        %1561 = vmatmul.f32.gmra.mxu0 %v1447
        %v1562 = vpop.f32.mrf.mxu0
        %v1563 = vadd.f32 0.0, %v1562
        %1564 = vmatmul.f32.gmra.mxu0 %v1450
        %v1565 = vpop.f32.mrf.mxu0
        %v1566 = vadd.f32 0.0, %v1565
        %1567 = vmatmul.f32.gmra.mxu0 %v1453
        %v1568 = vpop.f32.mrf.mxu0
        %v1569 = vadd.f32 0.0, %v1568
        %1570 = vmatmul.f32.gmra.mxu0 %v1456
        %v1571 = vpop.f32.mrf.mxu0
        %v1572 = vadd.f32 0.0, %v1571
        %1573 = vmatmul.f32.gmra.mxu0 %v1459
        %v1574 = vpop.f32.mrf.mxu0
        %v1575 = vadd.f32 0.0, %v1574
        %1576 = vmatmul.f32.gmra.mxu0 %v1462
        %v1577 = vpop.f32.mrf.mxu0
        %v1578 = vadd.f32 0.0, %v1577
        %1579 = vmatmul.f32.gmra.mxu0 %v1465
        %v1580 = vpop.f32.mrf.mxu0
        %v1581 = vadd.f32 0.0, %v1580
        %1582 = vmatmul.f32.gmra.mxu0 %v1468
        %v1583 = vpop.f32.mrf.mxu0
        %v1584 = vadd.f32 0.0, %v1583
        %1585 = vmatmul.f32.gmra.mxu0 %v1471
        %v1586 = vpop.f32.mrf.mxu0
        %v1587 = vadd.f32 0.0, %v1586
        %1588 = vmatmul.f32.gmra.mxu0 %v1474
        %v1589 = vpop.f32.mrf.mxu0
        %v1590 = vadd.f32 0.0, %v1589
        %1591 = vmatmul.f32.gmra.mxu0 %v1477
        %v1592 = vpop.f32.mrf.mxu0
        %v1593 = vadd.f32 0.0, %v1592
        %1594 = vmatmul.f32.gmra.mxu0 %v1480
        %v1595 = vpop.f32.mrf.mxu0
        %v1596 = vadd.f32 0.0, %v1595
        %1597 = vmatmul.f32.gmra.mxu0 %v1483
        %v1598 = vpop.f32.mrf.mxu0
        %v1599 = vadd.f32 0.0, %v1598
        %1600 = vmatmul.f32.gmra.mxu0 %v1486
        %v1601 = vpop.f32.mrf.mxu0
        %v1602 = vadd.f32 0.0, %v1601
        %1603 = vmatmul.f32.gmra.mxu0 %v1489
        %v1604 = vpop.f32.mrf.mxu0
        %v1605 = vadd.f32 0.0, %v1604
        %1606 = vmatmul.f32.gmra.mxu0 %v1492
        %v1607 = vpop.f32.mrf.mxu0
        %v1608 = vadd.f32 0.0, %v1607
        %1609 = vmatmul.f32.gmra.mxu0 %v1495
        %v1610 = vpop.f32.mrf.mxu0
        %v1611 = vadd.f32 0.0, %v1610
        %1612 = vmatmul.f32.gmra.mxu0 %v1498
        %v1613 = vpop.f32.mrf.mxu0
        %v1614 = vadd.f32 0.0, %v1613
        %1615 = vmatmul.f32.gmra.mxu0 %v1501
        %v1616 = vpop.f32.mrf.mxu0
        %v1617 = vadd.f32 0.0, %v1616
        %1618 = vmatmul.f32.gmra.mxu0 %v1504
        %v1619 = vpop.f32.mrf.mxu0
        %v1620 = vadd.f32 0.0, %v1619
        %1621 = vmatmul.f32.gmra.mxu0 %v1507
        %v1622 = vpop.f32.mrf.mxu0
        %v1623 = vadd.f32 0.0, %v1622
        %1624 = vmatmul.f32.gmra.mxu0 %v1510
        %v1625 = vpop.f32.mrf.mxu0
        %v1626 = vadd.f32 0.0, %v1625
        %1627 = vmatmul.f32.gmra.mxu0 %v1513
        %v1628 = vpop.f32.mrf.mxu0
        %v1629 = vadd.f32 0.0, %v1628
        %1630 = vmatmul.f32.gmra.mxu0 %v1516
        %v1631 = vpop.f32.mrf.mxu0
        %v1632 = vadd.f32 0.0, %v1631
        %1633 = vmatmul.f32.gmra.mxu0 %v1519
        %v1634 = vpop.f32.mrf.mxu0
        %v1635 = vadd.f32 0.0, %v1634
        %1636 = vmatmul.f32.gmra.mxu0 %v1522
        %v1637 = vpop.f32.mrf.mxu0
        %v1638 = vadd.f32 0.0, %v1637
        %1639 = vmatmul.f32.gmra.mxu0 %v1525
        %v1640 = vpop.f32.mrf.mxu0
        %v1641 = vadd.f32 0.0, %v1640
        %1642 = vdwg.mxu0
        %v1643 = vadd.f32 %v1365, %v1548
        %v1644 = vadd.f32 %v1366, %v1551
        %v1645 = vadd.f32 %v1367, %v1554
        %v1646 = vadd.f32 %v1368, %v1557
        %v1647 = vadd.f32 %v1369, %v1560
        %v1648 = vadd.f32 %v1370, %v1563
        %v1649 = vadd.f32 %v1371, %v1566
        %v1650 = vadd.f32 %v1372, %v1569
        %v1651 = vadd.f32 %v1373, %v1572
        %v1652 = vadd.f32 %v1374, %v1575
        %v1653 = vadd.f32 %v1375, %v1578
        %v1654 = vadd.f32 %v1376, %v1581
        %v1655 = vadd.f32 %v1377, %v1584
        %v1656 = vadd.f32 %v1378, %v1587
        %v1657 = vadd.f32 %v1379, %v1590
        %v1658 = vadd.f32 %v1380, %v1593
        %v1659 = vadd.f32 %v1381, %v1596
        %v1660 = vadd.f32 %v1382, %v1599
        %v1661 = vadd.f32 %v1383, %v1602
        %v1662 = vadd.f32 %v1384, %v1605
        %v1663 = vadd.f32 %v1385, %v1608
        %v1664 = vadd.f32 %v1386, %v1611
        %v1665 = vadd.f32 %v1387, %v1614
        %v1666 = vadd.f32 %v1388, %v1617
        %v1667 = vadd.f32 %v1389, %v1620
        %v1668 = vadd.f32 %v1390, %v1623
        %v1669 = vadd.f32 %v1391, %v1626
        %v1670 = vadd.f32 %v1392, %v1629
        %v1671 = vadd.f32 %v1393, %v1632
        %v1672 = vadd.f32 %v1394, %v1635
        %v1673 = vadd.f32 %v1395, %v1638
        %v1674 = vadd.f32 %v1396, %v1641
        %v1675 = vld [vmem:[%s526 + $0x1] sm:$0xff]
        %v1676 = vld [vmem:[%s526 + $0x9] sm:$0xff]
        %v1677 = vld [vmem:[%s526 + $0x19] sm:$0xff]
        %v1678 = vld [vmem:[%s526 + $0x21] sm:$0xff]
        %v1679 = vld [vmem:[%s526 + $0x31] sm:$0xff]
        %v1680 = vld [vmem:[%s526 + $0x39] sm:$0xff]
        %v1681 = vld [vmem:[%s526 + $0x49] sm:$0xff]
        %v1682 = vld [vmem:[%s526 + $0x51] sm:$0xff]
        %v1683 = vld [vmem:[%s526 + $0x61] sm:$0xff]
        %v1684 = vld [vmem:[%s526 + $0x69] sm:$0xff]
        %v1685 = vld [vmem:[%s526 + $0x79] sm:$0xff]
        %v1686 = vld [vmem:[%s526 + $0x81] sm:$0xff]
        %v1687 = vld [vmem:[%s526 + $0x91] sm:$0xff]
        %v1688 = vld [vmem:[%s526 + $0x99] sm:$0xff]
        %v1689 = vld [vmem:[%s526 + $0xa9] sm:$0xff]
        %v1690 = vld [vmem:[%s526 + $0xb1] sm:$0xff]
        %v1691 = vld [vmem:[%s526 + $0xc1] sm:$0xff]
        %v1692 = vld [vmem:[%s526 + $0xc9] sm:$0xff]
        %v1693 = vld [vmem:[%s526 + $0xd9] sm:$0xff]
        %v1694 = vld [vmem:[%s526 + $0xe1] sm:$0xff]
        %v1695 = vld [vmem:[%s526 + $0xf1] sm:$0xff]
        %v1696 = vld [vmem:[%s526 + $0xf9] sm:$0xff]
        %v1697 = vld [vmem:[%s526 + $0x109] sm:$0xff]
        %v1698 = vld [vmem:[%s526 + $0x111] sm:$0xff]
        %v1699 = vld [vmem:[%s526 + $0x121] sm:$0xff]
        %v1700 = vld [vmem:[%s526 + $0x129] sm:$0xff]
        %v1701 = vld [vmem:[%s526 + $0x139] sm:$0xff]
        %v1702 = vld [vmem:[%s526 + $0x141] sm:$0xff]
        %v1703 = vld [vmem:[%s526 + $0x151] sm:$0xff]
        %v1704 = vld [vmem:[%s526 + $0x159] sm:$0xff]
        %v1705 = vld [vmem:[%s526 + $0x169] sm:$0xff]
        %v1706 = vld [vmem:[%s526 + $0x171] sm:$0xff]
        %s1707 = scalar_lea.vmem [#allocation6], 16
        %v1708 = vld [vmem:[%s1707] sm:$0x7]
        %v1710 = vsel %vm438, %v1675, 0
        %v1713 = vsel %vm438, %v1676, 0
        %v1716 = vsel %vm438, %v1677, 0
        %v1719 = vsel %vm438, %v1678, 0
        %v1722 = vsel %vm438, %v1679, 0
        %v1725 = vsel %vm438, %v1680, 0
        %v1728 = vsel %vm438, %v1681, 0
        %v1731 = vsel %vm438, %v1682, 0
        %v1734 = vsel %vm438, %v1683, 0
        %v1737 = vsel %vm438, %v1684, 0
        %v1740 = vsel %vm438, %v1685, 0
        %v1743 = vsel %vm438, %v1686, 0
        %v1746 = vsel %vm438, %v1687, 0
        %v1749 = vsel %vm438, %v1688, 0
        %v1752 = vsel %vm438, %v1689, 0
        %v1755 = vsel %vm438, %v1690, 0
        %v1758 = vsel %vm438, %v1691, 0
        %v1761 = vsel %vm438, %v1692, 0
        %v1764 = vsel %vm438, %v1693, 0
        %v1767 = vsel %vm438, %v1694, 0
        %v1770 = vsel %vm438, %v1695, 0
        %v1773 = vsel %vm438, %v1696, 0
        %v1776 = vsel %vm438, %v1697, 0
        %v1779 = vsel %vm438, %v1698, 0
        %v1782 = vsel %vm438, %v1699, 0
        %v1785 = vsel %vm438, %v1700, 0
        %v1788 = vsel %vm438, %v1701, 0
        %v1791 = vsel %vm438, %v1702, 0
        %v1794 = vsel %vm438, %v1703, 0
        %v1797 = vsel %vm438, %v1704, 0
        %v1800 = vsel %vm438, %v1705, 0
        %v1803 = vsel %vm438, %v1706, 0
        %v1806 = vsel %vm692, %v1708, 0
        %1808 = vmatpush.msra.mxu0 0.0
        %1809 = vmatpush.msra.mxu0 0.0
        %1810 = vmatpush.msra.mxu0 0.0
        %1811 = vmatpush.msra.mxu0 0.0
        %1812 = vmatpush.msra.mxu0 0.0
        %1813 = vmatpush.msra.mxu0 0.0
        %1814 = vmatpush.msra.mxu0 0.0
        %1815 = vmatpush.msra.mxu0 0.0
        %1816 = vmatpush.msra.mxu0 0.0
        %1817 = vmatpush.msra.mxu0 0.0
        %1818 = vmatpush.msra.mxu0 0.0
        %1819 = vmatpush.msra.mxu0 0.0
        %1820 = vmatpush.msra.mxu0 0.0
        %1821 = vmatpush.msra.mxu0 0.0
        %1822 = vmatpush.msra.mxu0 0.0
        %1823 = vmatpush.msra.mxu0 %v1806
        %1824 = vmatmul.f32.gmra.mxu0 %v1710
        %v1825 = vpop.f32.mrf.mxu0
        %v1826 = vadd.f32 0.0, %v1825
        %1827 = vmatmul.f32.gmra.mxu0 %v1713
        %v1828 = vpop.f32.mrf.mxu0
        %v1829 = vadd.f32 0.0, %v1828
        %1830 = vmatmul.f32.gmra.mxu0 %v1716
        %v1831 = vpop.f32.mrf.mxu0
        %v1832 = vadd.f32 0.0, %v1831
        %1833 = vmatmul.f32.gmra.mxu0 %v1719
        %v1834 = vpop.f32.mrf.mxu0
        %v1835 = vadd.f32 0.0, %v1834
        %1836 = vmatmul.f32.gmra.mxu0 %v1722
        %v1837 = vpop.f32.mrf.mxu0
        %v1838 = vadd.f32 0.0, %v1837
        %1839 = vmatmul.f32.gmra.mxu0 %v1725
        %v1840 = vpop.f32.mrf.mxu0
        %v1841 = vadd.f32 0.0, %v1840
        %1842 = vmatmul.f32.gmra.mxu0 %v1728
        %v1843 = vpop.f32.mrf.mxu0
        %v1844 = vadd.f32 0.0, %v1843
        %1845 = vmatmul.f32.gmra.mxu0 %v1731
        %v1846 = vpop.f32.mrf.mxu0
        %v1847 = vadd.f32 0.0, %v1846
        %1848 = vmatmul.f32.gmra.mxu0 %v1734
        %v1849 = vpop.f32.mrf.mxu0
        %v1850 = vadd.f32 0.0, %v1849
        %1851 = vmatmul.f32.gmra.mxu0 %v1737
        %v1852 = vpop.f32.mrf.mxu0
        %v1853 = vadd.f32 0.0, %v1852
        %1854 = vmatmul.f32.gmra.mxu0 %v1740
        %v1855 = vpop.f32.mrf.mxu0
        %v1856 = vadd.f32 0.0, %v1855
        %1857 = vmatmul.f32.gmra.mxu0 %v1743
        %v1858 = vpop.f32.mrf.mxu0
        %v1859 = vadd.f32 0.0, %v1858
        %1860 = vmatmul.f32.gmra.mxu0 %v1746
        %v1861 = vpop.f32.mrf.mxu0
        %v1862 = vadd.f32 0.0, %v1861
        %1863 = vmatmul.f32.gmra.mxu0 %v1749
        %v1864 = vpop.f32.mrf.mxu0
        %v1865 = vadd.f32 0.0, %v1864
        %1866 = vmatmul.f32.gmra.mxu0 %v1752
        %v1867 = vpop.f32.mrf.mxu0
        %v1868 = vadd.f32 0.0, %v1867
        %1869 = vmatmul.f32.gmra.mxu0 %v1755
        %v1870 = vpop.f32.mrf.mxu0
        %v1871 = vadd.f32 0.0, %v1870
        %1872 = vmatmul.f32.gmra.mxu0 %v1758
        %v1873 = vpop.f32.mrf.mxu0
        %v1874 = vadd.f32 0.0, %v1873
        %1875 = vmatmul.f32.gmra.mxu0 %v1761
        %v1876 = vpop.f32.mrf.mxu0
        %v1877 = vadd.f32 0.0, %v1876
        %1878 = vmatmul.f32.gmra.mxu0 %v1764
        %v1879 = vpop.f32.mrf.mxu0
        %v1880 = vadd.f32 0.0, %v1879
        %1881 = vmatmul.f32.gmra.mxu0 %v1767
        %v1882 = vpop.f32.mrf.mxu0
        %v1883 = vadd.f32 0.0, %v1882
        %1884 = vmatmul.f32.gmra.mxu0 %v1770
        %v1885 = vpop.f32.mrf.mxu0
        %v1886 = vadd.f32 0.0, %v1885
        %1887 = vmatmul.f32.gmra.mxu0 %v1773
        %v1888 = vpop.f32.mrf.mxu0
        %v1889 = vadd.f32 0.0, %v1888
        %1890 = vmatmul.f32.gmra.mxu0 %v1776
        %v1891 = vpop.f32.mrf.mxu0
        %v1892 = vadd.f32 0.0, %v1891
        %1893 = vmatmul.f32.gmra.mxu0 %v1779
        %v1894 = vpop.f32.mrf.mxu0
        %v1895 = vadd.f32 0.0, %v1894
        %1896 = vmatmul.f32.gmra.mxu0 %v1782
        %v1897 = vpop.f32.mrf.mxu0
        %v1898 = vadd.f32 0.0, %v1897
        %1899 = vmatmul.f32.gmra.mxu0 %v1785
        %v1900 = vpop.f32.mrf.mxu0
        %v1901 = vadd.f32 0.0, %v1900
        %1902 = vmatmul.f32.gmra.mxu0 %v1788
        %v1903 = vpop.f32.mrf.mxu0
        %v1904 = vadd.f32 0.0, %v1903
        %1905 = vmatmul.f32.gmra.mxu0 %v1791
        %v1906 = vpop.f32.mrf.mxu0
        %v1907 = vadd.f32 0.0, %v1906
        %1908 = vmatmul.f32.gmra.mxu0 %v1794
        %v1909 = vpop.f32.mrf.mxu0
        %v1910 = vadd.f32 0.0, %v1909
        %1911 = vmatmul.f32.gmra.mxu0 %v1797
        %v1912 = vpop.f32.mrf.mxu0
        %v1913 = vadd.f32 0.0, %v1912
        %1914 = vmatmul.f32.gmra.mxu0 %v1800
        %v1915 = vpop.f32.mrf.mxu0
        %v1916 = vadd.f32 0.0, %v1915
        %1917 = vmatmul.f32.gmra.mxu0 %v1803
        %v1918 = vpop.f32.mrf.mxu0
        %v1919 = vadd.f32 0.0, %v1918
        %1920 = vdwg.mxu0
        %v1921 = vadd.f32 %v1643, %v1826
        %v1922 = vadd.f32 %v1644, %v1829
        %v1923 = vadd.f32 %v1645, %v1832
        %v1924 = vadd.f32 %v1646, %v1835
        %v1925 = vadd.f32 %v1647, %v1838
        %v1926 = vadd.f32 %v1648, %v1841
        %v1927 = vadd.f32 %v1649, %v1844
        %v1928 = vadd.f32 %v1650, %v1847
        %v1929 = vadd.f32 %v1651, %v1850
        %v1930 = vadd.f32 %v1652, %v1853
        %v1931 = vadd.f32 %v1653, %v1856
        %v1932 = vadd.f32 %v1654, %v1859
        %v1933 = vadd.f32 %v1655, %v1862
        %v1934 = vadd.f32 %v1656, %v1865
        %v1935 = vadd.f32 %v1657, %v1868
        %v1936 = vadd.f32 %v1658, %v1871
        %v1937 = vadd.f32 %v1659, %v1874
        %v1938 = vadd.f32 %v1660, %v1877
        %v1939 = vadd.f32 %v1661, %v1880
        %v1940 = vadd.f32 %v1662, %v1883
        %v1941 = vadd.f32 %v1663, %v1886
        %v1942 = vadd.f32 %v1664, %v1889
        %v1943 = vadd.f32 %v1665, %v1892
        %v1944 = vadd.f32 %v1666, %v1895
        %v1945 = vadd.f32 %v1667, %v1898
        %v1946 = vadd.f32 %v1668, %v1901
        %v1947 = vadd.f32 %v1669, %v1904
        %v1948 = vadd.f32 %v1670, %v1907
        %v1949 = vadd.f32 %v1671, %v1910
        %v1950 = vadd.f32 %v1672, %v1913
        %v1951 = vadd.f32 %v1673, %v1916
        %v1952 = vadd.f32 %v1674, %v1919
        %v1953 = vld [vmem:[%s526 + $0x2] sm:$0xff]
        %v1954 = vld [vmem:[%s526 + $0xa] sm:$0xff]
        %v1955 = vld [vmem:[%s526 + $0x1a] sm:$0xff]
        %v1956 = vld [vmem:[%s526 + $0x22] sm:$0xff]
        %v1957 = vld [vmem:[%s526 + $0x32] sm:$0xff]
        %v1958 = vld [vmem:[%s526 + $0x3a] sm:$0xff]
        %v1959 = vld [vmem:[%s526 + $0x4a] sm:$0xff]
        %v1960 = vld [vmem:[%s526 + $0x52] sm:$0xff]
        %v1961 = vld [vmem:[%s526 + $0x62] sm:$0xff]
        %v1962 = vld [vmem:[%s526 + $0x6a] sm:$0xff]
        %v1963 = vld [vmem:[%s526 + $0x7a] sm:$0xff]
        %v1964 = vld [vmem:[%s526 + $0x82] sm:$0xff]
        %v1965 = vld [vmem:[%s526 + $0x92] sm:$0xff]
        %v1966 = vld [vmem:[%s526 + $0x9a] sm:$0xff]
        %v1967 = vld [vmem:[%s526 + $0xaa] sm:$0xff]
        %v1968 = vld [vmem:[%s526 + $0xb2] sm:$0xff]
        %v1969 = vld [vmem:[%s526 + $0xc2] sm:$0xff]
        %v1970 = vld [vmem:[%s526 + $0xca] sm:$0xff]
        %v1971 = vld [vmem:[%s526 + $0xda] sm:$0xff]
        %v1972 = vld [vmem:[%s526 + $0xe2] sm:$0xff]
        %v1973 = vld [vmem:[%s526 + $0xf2] sm:$0xff]
        %v1974 = vld [vmem:[%s526 + $0xfa] sm:$0xff]
        %v1975 = vld [vmem:[%s526 + $0x10a] sm:$0xff]
        %v1976 = vld [vmem:[%s526 + $0x112] sm:$0xff]
        %v1977 = vld [vmem:[%s526 + $0x122] sm:$0xff]
        %v1978 = vld [vmem:[%s526 + $0x12a] sm:$0xff]
        %v1979 = vld [vmem:[%s526 + $0x13a] sm:$0xff]
        %v1980 = vld [vmem:[%s526 + $0x142] sm:$0xff]
        %v1981 = vld [vmem:[%s526 + $0x152] sm:$0xff]
        %v1982 = vld [vmem:[%s526 + $0x15a] sm:$0xff]
        %v1983 = vld [vmem:[%s526 + $0x16a] sm:$0xff]
        %v1984 = vld [vmem:[%s526 + $0x172] sm:$0xff]
        %s1985 = scalar_lea.vmem [#allocation6], 20
        %v1986 = vld [vmem:[%s1985] sm:$0x7]
        %v1988 = vsel %vm438, %v1953, 0
        %v1991 = vsel %vm438, %v1954, 0
        %v1994 = vsel %vm438, %v1955, 0
        %v1997 = vsel %vm438, %v1956, 0
        %v2000 = vsel %vm438, %v1957, 0
        %v2003 = vsel %vm438, %v1958, 0
        %v2006 = vsel %vm438, %v1959, 0
        %v2009 = vsel %vm438, %v1960, 0
        %v2012 = vsel %vm438, %v1961, 0
        %v2015 = vsel %vm438, %v1962, 0
        %v2018 = vsel %vm438, %v1963, 0
        %v2021 = vsel %vm438, %v1964, 0
        %v2024 = vsel %vm438, %v1965, 0
        %v2027 = vsel %vm438, %v1966, 0
        %v2030 = vsel %vm438, %v1967, 0
        %v2033 = vsel %vm438, %v1968, 0
        %v2036 = vsel %vm438, %v1969, 0
        %v2039 = vsel %vm438, %v1970, 0
        %v2042 = vsel %vm438, %v1971, 0
        %v2045 = vsel %vm438, %v1972, 0
        %v2048 = vsel %vm438, %v1973, 0
        %v2051 = vsel %vm438, %v1974, 0
        %v2054 = vsel %vm438, %v1975, 0
        %v2057 = vsel %vm438, %v1976, 0
        %v2060 = vsel %vm438, %v1977, 0
        %v2063 = vsel %vm438, %v1978, 0
        %v2066 = vsel %vm438, %v1979, 0
        %v2069 = vsel %vm438, %v1980, 0
        %v2072 = vsel %vm438, %v1981, 0
        %v2075 = vsel %vm438, %v1982, 0
        %v2078 = vsel %vm438, %v1983, 0
        %v2081 = vsel %vm438, %v1984, 0
        %v2084 = vsel %vm692, %v1986, 0
        %2086 = vmatpush.msra.mxu0 0.0
        %2087 = vmatpush.msra.mxu0 0.0
        %2088 = vmatpush.msra.mxu0 0.0
        %2089 = vmatpush.msra.mxu0 0.0
        %2090 = vmatpush.msra.mxu0 0.0
        %2091 = vmatpush.msra.mxu0 0.0
        %2092 = vmatpush.msra.mxu0 0.0
        %2093 = vmatpush.msra.mxu0 0.0
        %2094 = vmatpush.msra.mxu0 0.0
        %2095 = vmatpush.msra.mxu0 0.0
        %2096 = vmatpush.msra.mxu0 0.0
        %2097 = vmatpush.msra.mxu0 0.0
        %2098 = vmatpush.msra.mxu0 0.0
        %2099 = vmatpush.msra.mxu0 0.0
        %2100 = vmatpush.msra.mxu0 0.0
        %2101 = vmatpush.msra.mxu0 %v2084
        %2102 = vmatmul.f32.gmra.mxu0 %v1988
        %v2103 = vpop.f32.mrf.mxu0
        %v2104 = vadd.f32 0.0, %v2103
        %2105 = vmatmul.f32.gmra.mxu0 %v1991
        %v2106 = vpop.f32.mrf.mxu0
        %v2107 = vadd.f32 0.0, %v2106
        %2108 = vmatmul.f32.gmra.mxu0 %v1994
        %v2109 = vpop.f32.mrf.mxu0
        %v2110 = vadd.f32 0.0, %v2109
        %2111 = vmatmul.f32.gmra.mxu0 %v1997
        %v2112 = vpop.f32.mrf.mxu0
        %v2113 = vadd.f32 0.0, %v2112
        %2114 = vmatmul.f32.gmra.mxu0 %v2000
        %v2115 = vpop.f32.mrf.mxu0
        %v2116 = vadd.f32 0.0, %v2115
        %2117 = vmatmul.f32.gmra.mxu0 %v2003
        %v2118 = vpop.f32.mrf.mxu0
        %v2119 = vadd.f32 0.0, %v2118
        %2120 = vmatmul.f32.gmra.mxu0 %v2006
        %v2121 = vpop.f32.mrf.mxu0
        %v2122 = vadd.f32 0.0, %v2121
        %2123 = vmatmul.f32.gmra.mxu0 %v2009
        %v2124 = vpop.f32.mrf.mxu0
        %v2125 = vadd.f32 0.0, %v2124
        %2126 = vmatmul.f32.gmra.mxu0 %v2012
        %v2127 = vpop.f32.mrf.mxu0
        %v2128 = vadd.f32 0.0, %v2127
        %2129 = vmatmul.f32.gmra.mxu0 %v2015
        %v2130 = vpop.f32.mrf.mxu0
        %v2131 = vadd.f32 0.0, %v2130
        %2132 = vmatmul.f32.gmra.mxu0 %v2018
        %v2133 = vpop.f32.mrf.mxu0
        %v2134 = vadd.f32 0.0, %v2133
        %2135 = vmatmul.f32.gmra.mxu0 %v2021
        %v2136 = vpop.f32.mrf.mxu0
        %v2137 = vadd.f32 0.0, %v2136
        %2138 = vmatmul.f32.gmra.mxu0 %v2024
        %v2139 = vpop.f32.mrf.mxu0
        %v2140 = vadd.f32 0.0, %v2139
        %2141 = vmatmul.f32.gmra.mxu0 %v2027
        %v2142 = vpop.f32.mrf.mxu0
        %v2143 = vadd.f32 0.0, %v2142
        %2144 = vmatmul.f32.gmra.mxu0 %v2030
        %v2145 = vpop.f32.mrf.mxu0
        %v2146 = vadd.f32 0.0, %v2145
        %2147 = vmatmul.f32.gmra.mxu0 %v2033
        %v2148 = vpop.f32.mrf.mxu0
        %v2149 = vadd.f32 0.0, %v2148
        %2150 = vmatmul.f32.gmra.mxu0 %v2036
        %v2151 = vpop.f32.mrf.mxu0
        %v2152 = vadd.f32 0.0, %v2151
        %2153 = vmatmul.f32.gmra.mxu0 %v2039
        %v2154 = vpop.f32.mrf.mxu0
        %v2155 = vadd.f32 0.0, %v2154
        %2156 = vmatmul.f32.gmra.mxu0 %v2042
        %v2157 = vpop.f32.mrf.mxu0
        %v2158 = vadd.f32 0.0, %v2157
        %2159 = vmatmul.f32.gmra.mxu0 %v2045
        %v2160 = vpop.f32.mrf.mxu0
        %v2161 = vadd.f32 0.0, %v2160
        %2162 = vmatmul.f32.gmra.mxu0 %v2048
        %v2163 = vpop.f32.mrf.mxu0
        %v2164 = vadd.f32 0.0, %v2163
        %2165 = vmatmul.f32.gmra.mxu0 %v2051
        %v2166 = vpop.f32.mrf.mxu0
        %v2167 = vadd.f32 0.0, %v2166
        %2168 = vmatmul.f32.gmra.mxu0 %v2054
        %v2169 = vpop.f32.mrf.mxu0
        %v2170 = vadd.f32 0.0, %v2169
        %2171 = vmatmul.f32.gmra.mxu0 %v2057
        %v2172 = vpop.f32.mrf.mxu0
        %v2173 = vadd.f32 0.0, %v2172
        %2174 = vmatmul.f32.gmra.mxu0 %v2060
        %v2175 = vpop.f32.mrf.mxu0
        %v2176 = vadd.f32 0.0, %v2175
        %2177 = vmatmul.f32.gmra.mxu0 %v2063
        %v2178 = vpop.f32.mrf.mxu0
        %v2179 = vadd.f32 0.0, %v2178
        %2180 = vmatmul.f32.gmra.mxu0 %v2066
        %v2181 = vpop.f32.mrf.mxu0
        %v2182 = vadd.f32 0.0, %v2181
        %2183 = vmatmul.f32.gmra.mxu0 %v2069
        %v2184 = vpop.f32.mrf.mxu0
        %v2185 = vadd.f32 0.0, %v2184
        %2186 = vmatmul.f32.gmra.mxu0 %v2072
        %v2187 = vpop.f32.mrf.mxu0
        %v2188 = vadd.f32 0.0, %v2187
        %2189 = vmatmul.f32.gmra.mxu0 %v2075
        %v2190 = vpop.f32.mrf.mxu0
        %v2191 = vadd.f32 0.0, %v2190
        %2192 = vmatmul.f32.gmra.mxu0 %v2078
        %v2193 = vpop.f32.mrf.mxu0
        %v2194 = vadd.f32 0.0, %v2193
        %2195 = vmatmul.f32.gmra.mxu0 %v2081
        %v2196 = vpop.f32.mrf.mxu0
        %v2197 = vadd.f32 0.0, %v2196
        %2198 = vdwg.mxu0
        %v2199 = vadd.f32 %v1921, %v2104
        %v2200 = vadd.f32 %v1922, %v2107
        %v2201 = vadd.f32 %v1923, %v2110
        %v2202 = vadd.f32 %v1924, %v2113
        %v2203 = vadd.f32 %v1925, %v2116
        %v2204 = vadd.f32 %v1926, %v2119
        %v2205 = vadd.f32 %v1927, %v2122
        %v2206 = vadd.f32 %v1928, %v2125
        %v2207 = vadd.f32 %v1929, %v2128
        %v2208 = vadd.f32 %v1930, %v2131
        %v2209 = vadd.f32 %v1931, %v2134
        %v2210 = vadd.f32 %v1932, %v2137
        %v2211 = vadd.f32 %v1933, %v2140
        %v2212 = vadd.f32 %v1934, %v2143
        %v2213 = vadd.f32 %v1935, %v2146
        %v2214 = vadd.f32 %v1936, %v2149
        %v2215 = vadd.f32 %v1937, %v2152
        %v2216 = vadd.f32 %v1938, %v2155
        %v2217 = vadd.f32 %v1939, %v2158
        %v2218 = vadd.f32 %v1940, %v2161
        %v2219 = vadd.f32 %v1941, %v2164
        %v2220 = vadd.f32 %v1942, %v2167
        %v2221 = vadd.f32 %v1943, %v2170
        %v2222 = vadd.f32 %v1944, %v2173
        %v2223 = vadd.f32 %v1945, %v2176
        %v2224 = vadd.f32 %v1946, %v2179
        %v2225 = vadd.f32 %v1947, %v2182
        %v2226 = vadd.f32 %v1948, %v2185
        %v2227 = vadd.f32 %v1949, %v2188
        %v2228 = vadd.f32 %v1950, %v2191
        %v2229 = vadd.f32 %v1951, %v2194
        %v2230 = vadd.f32 %v1952, %v2197
        %s2231 = scalar_lea.vmem [#allocation2], 48
        %v2232 = vld [vmem:[%s2231] sm:$0xff]
        %v2233 = vld [vmem:[%s2231 + $0x8] sm:$0xff]
        %v2234 = vld [vmem:[%s2231 + $0x18] sm:$0xff]
        %v2235 = vld [vmem:[%s2231 + $0x20] sm:$0xff]
        %v2236 = vld [vmem:[%s2231 + $0x30] sm:$0xff]
        %v2237 = vld [vmem:[%s2231 + $0x38] sm:$0xff]
        %v2238 = vld [vmem:[%s2231 + $0x48] sm:$0xff]
        %v2239 = vld [vmem:[%s2231 + $0x50] sm:$0xff]
        %v2240 = vld [vmem:[%s2231 + $0x60] sm:$0xff]
        %v2241 = vld [vmem:[%s2231 + $0x68] sm:$0xff]
        %v2242 = vld [vmem:[%s2231 + $0x78] sm:$0xff]
        %v2243 = vld [vmem:[%s2231 + $0x80] sm:$0xff]
        %v2244 = vld [vmem:[%s2231 + $0x90] sm:$0xff]
        %v2245 = vld [vmem:[%s2231 + $0x98] sm:$0xff]
        %v2246 = vld [vmem:[%s2231 + $0xa8] sm:$0xff]
        %v2247 = vld [vmem:[%s2231 + $0xb0] sm:$0xff]
        %v2248 = vld [vmem:[%s2231 + $0xc0] sm:$0xff]
        %v2249 = vld [vmem:[%s2231 + $0xc8] sm:$0xff]
        %v2250 = vld [vmem:[%s2231 + $0xd8] sm:$0xff]
        %v2251 = vld [vmem:[%s2231 + $0xe0] sm:$0xff]
        %v2252 = vld [vmem:[%s2231 + $0xf0] sm:$0xff]
        %v2253 = vld [vmem:[%s2231 + $0xf8] sm:$0xff]
        %v2254 = vld [vmem:[%s2231 + $0x108] sm:$0xff]
        %v2255 = vld [vmem:[%s2231 + $0x110] sm:$0xff]
        %v2256 = vld [vmem:[%s2231 + $0x120] sm:$0xff]
        %v2257 = vld [vmem:[%s2231 + $0x128] sm:$0xff]
        %v2258 = vld [vmem:[%s2231 + $0x138] sm:$0xff]
        %v2259 = vld [vmem:[%s2231 + $0x140] sm:$0xff]
        %v2260 = vld [vmem:[%s2231 + $0x150] sm:$0xff]
        %v2261 = vld [vmem:[%s2231 + $0x158] sm:$0xff]
        %v2262 = vld [vmem:[%s2231 + $0x168] sm:$0xff]
        %v2263 = vld [vmem:[%s2231 + $0x170] sm:$0xff]
        %s2264 = scalar_lea.vmem [#allocation6], 24
        %v2265 = vld [vmem:[%s2264] sm:$0x7]
        %v2267 = vsel %vm438, %v2232, 0
        %v2270 = vsel %vm438, %v2233, 0
        %v2273 = vsel %vm438, %v2234, 0
        %v2276 = vsel %vm438, %v2235, 0
        %v2279 = vsel %vm438, %v2236, 0
        %v2282 = vsel %vm438, %v2237, 0
        %v2285 = vsel %vm438, %v2238, 0
        %v2288 = vsel %vm438, %v2239, 0
        %v2291 = vsel %vm438, %v2240, 0
        %v2294 = vsel %vm438, %v2241, 0
        %v2297 = vsel %vm438, %v2242, 0
        %v2300 = vsel %vm438, %v2243, 0
        %v2303 = vsel %vm438, %v2244, 0
        %v2306 = vsel %vm438, %v2245, 0
        %v2309 = vsel %vm438, %v2246, 0
        %v2312 = vsel %vm438, %v2247, 0
        %v2315 = vsel %vm438, %v2248, 0
        %v2318 = vsel %vm438, %v2249, 0
        %v2321 = vsel %vm438, %v2250, 0
        %v2324 = vsel %vm438, %v2251, 0
        %v2327 = vsel %vm438, %v2252, 0
        %v2330 = vsel %vm438, %v2253, 0
        %v2333 = vsel %vm438, %v2254, 0
        %v2336 = vsel %vm438, %v2255, 0
        %v2339 = vsel %vm438, %v2256, 0
        %v2342 = vsel %vm438, %v2257, 0
        %v2345 = vsel %vm438, %v2258, 0
        %v2348 = vsel %vm438, %v2259, 0
        %v2351 = vsel %vm438, %v2260, 0
        %v2354 = vsel %vm438, %v2261, 0
        %v2357 = vsel %vm438, %v2262, 0
        %v2360 = vsel %vm438, %v2263, 0
        %v2363 = vsel %vm692, %v2265, 0
        %2365 = vmatpush.msra.mxu0 0.0
        %2366 = vmatpush.msra.mxu0 0.0
        %2367 = vmatpush.msra.mxu0 0.0
        %2368 = vmatpush.msra.mxu0 0.0
        %2369 = vmatpush.msra.mxu0 0.0
        %2370 = vmatpush.msra.mxu0 0.0
        %2371 = vmatpush.msra.mxu0 0.0
        %2372 = vmatpush.msra.mxu0 0.0
        %2373 = vmatpush.msra.mxu0 0.0
        %2374 = vmatpush.msra.mxu0 0.0
        %2375 = vmatpush.msra.mxu0 0.0
        %2376 = vmatpush.msra.mxu0 0.0
        %2377 = vmatpush.msra.mxu0 0.0
        %2378 = vmatpush.msra.mxu0 0.0
        %2379 = vmatpush.msra.mxu0 0.0
        %2380 = vmatpush.msra.mxu0 %v2363
        %2381 = vmatmul.f32.gmra.mxu0 %v2267
        %v2382 = vpop.f32.mrf.mxu0
        %v2383 = vadd.f32 0.0, %v2382
        %2384 = vmatmul.f32.gmra.mxu0 %v2270
        %v2385 = vpop.f32.mrf.mxu0
        %v2386 = vadd.f32 0.0, %v2385
        %2387 = vmatmul.f32.gmra.mxu0 %v2273
        %v2388 = vpop.f32.mrf.mxu0
        %v2389 = vadd.f32 0.0, %v2388
        %2390 = vmatmul.f32.gmra.mxu0 %v2276
        %v2391 = vpop.f32.mrf.mxu0
        %v2392 = vadd.f32 0.0, %v2391
        %2393 = vmatmul.f32.gmra.mxu0 %v2279
        %v2394 = vpop.f32.mrf.mxu0
        %v2395 = vadd.f32 0.0, %v2394
        %2396 = vmatmul.f32.gmra.mxu0 %v2282
        %v2397 = vpop.f32.mrf.mxu0
        %v2398 = vadd.f32 0.0, %v2397
        %2399 = vmatmul.f32.gmra.mxu0 %v2285
        %v2400 = vpop.f32.mrf.mxu0
        %v2401 = vadd.f32 0.0, %v2400
        %2402 = vmatmul.f32.gmra.mxu0 %v2288
        %v2403 = vpop.f32.mrf.mxu0
        %v2404 = vadd.f32 0.0, %v2403
        %2405 = vmatmul.f32.gmra.mxu0 %v2291
        %v2406 = vpop.f32.mrf.mxu0
        %v2407 = vadd.f32 0.0, %v2406
        %2408 = vmatmul.f32.gmra.mxu0 %v2294
        %v2409 = vpop.f32.mrf.mxu0
        %v2410 = vadd.f32 0.0, %v2409
        %2411 = vmatmul.f32.gmra.mxu0 %v2297
        %v2412 = vpop.f32.mrf.mxu0
        %v2413 = vadd.f32 0.0, %v2412
        %2414 = vmatmul.f32.gmra.mxu0 %v2300
        %v2415 = vpop.f32.mrf.mxu0
        %v2416 = vadd.f32 0.0, %v2415
        %2417 = vmatmul.f32.gmra.mxu0 %v2303
        %v2418 = vpop.f32.mrf.mxu0
        %v2419 = vadd.f32 0.0, %v2418
        %2420 = vmatmul.f32.gmra.mxu0 %v2306
        %v2421 = vpop.f32.mrf.mxu0
        %v2422 = vadd.f32 0.0, %v2421
        %2423 = vmatmul.f32.gmra.mxu0 %v2309
        %v2424 = vpop.f32.mrf.mxu0
        %v2425 = vadd.f32 0.0, %v2424
        %2426 = vmatmul.f32.gmra.mxu0 %v2312
        %v2427 = vpop.f32.mrf.mxu0
        %v2428 = vadd.f32 0.0, %v2427
        %2429 = vmatmul.f32.gmra.mxu0 %v2315
        %v2430 = vpop.f32.mrf.mxu0
        %v2431 = vadd.f32 0.0, %v2430
        %2432 = vmatmul.f32.gmra.mxu0 %v2318
        %v2433 = vpop.f32.mrf.mxu0
        %v2434 = vadd.f32 0.0, %v2433
        %2435 = vmatmul.f32.gmra.mxu0 %v2321
        %v2436 = vpop.f32.mrf.mxu0
        %v2437 = vadd.f32 0.0, %v2436
        %2438 = vmatmul.f32.gmra.mxu0 %v2324
        %v2439 = vpop.f32.mrf.mxu0
        %v2440 = vadd.f32 0.0, %v2439
        %2441 = vmatmul.f32.gmra.mxu0 %v2327
        %v2442 = vpop.f32.mrf.mxu0
        %v2443 = vadd.f32 0.0, %v2442
        %2444 = vmatmul.f32.gmra.mxu0 %v2330
        %v2445 = vpop.f32.mrf.mxu0
        %v2446 = vadd.f32 0.0, %v2445
        %2447 = vmatmul.f32.gmra.mxu0 %v2333
        %v2448 = vpop.f32.mrf.mxu0
        %v2449 = vadd.f32 0.0, %v2448
        %2450 = vmatmul.f32.gmra.mxu0 %v2336
        %v2451 = vpop.f32.mrf.mxu0
        %v2452 = vadd.f32 0.0, %v2451
        %2453 = vmatmul.f32.gmra.mxu0 %v2339
        %v2454 = vpop.f32.mrf.mxu0
        %v2455 = vadd.f32 0.0, %v2454
        %2456 = vmatmul.f32.gmra.mxu0 %v2342
        %v2457 = vpop.f32.mrf.mxu0
        %v2458 = vadd.f32 0.0, %v2457
        %2459 = vmatmul.f32.gmra.mxu0 %v2345
        %v2460 = vpop.f32.mrf.mxu0
        %v2461 = vadd.f32 0.0, %v2460
        %2462 = vmatmul.f32.gmra.mxu0 %v2348
        %v2463 = vpop.f32.mrf.mxu0
        %v2464 = vadd.f32 0.0, %v2463
        %2465 = vmatmul.f32.gmra.mxu0 %v2351
        %v2466 = vpop.f32.mrf.mxu0
        %v2467 = vadd.f32 0.0, %v2466
        %2468 = vmatmul.f32.gmra.mxu0 %v2354
        %v2469 = vpop.f32.mrf.mxu0
        %v2470 = vadd.f32 0.0, %v2469
        %2471 = vmatmul.f32.gmra.mxu0 %v2357
        %v2472 = vpop.f32.mrf.mxu0
        %v2473 = vadd.f32 0.0, %v2472
        %2474 = vmatmul.f32.gmra.mxu0 %v2360
        %v2475 = vpop.f32.mrf.mxu0
        %v2476 = vadd.f32 0.0, %v2475
        %2477 = vdwg.mxu0
        %v2478 = vadd.f32 %v2199, %v2383
        %v2479 = vadd.f32 %v2200, %v2386
        %v2480 = vadd.f32 %v2201, %v2389
        %v2481 = vadd.f32 %v2202, %v2392
        %v2482 = vadd.f32 %v2203, %v2395
        %v2483 = vadd.f32 %v2204, %v2398
        %v2484 = vadd.f32 %v2205, %v2401
        %v2485 = vadd.f32 %v2206, %v2404
        %v2486 = vadd.f32 %v2207, %v2407
        %v2487 = vadd.f32 %v2208, %v2410
        %v2488 = vadd.f32 %v2209, %v2413
        %v2489 = vadd.f32 %v2210, %v2416
        %v2490 = vadd.f32 %v2211, %v2419
        %v2491 = vadd.f32 %v2212, %v2422
        %v2492 = vadd.f32 %v2213, %v2425
        %v2493 = vadd.f32 %v2214, %v2428
        %v2494 = vadd.f32 %v2215, %v2431
        %v2495 = vadd.f32 %v2216, %v2434
        %v2496 = vadd.f32 %v2217, %v2437
        %v2497 = vadd.f32 %v2218, %v2440
        %v2498 = vadd.f32 %v2219, %v2443
        %v2499 = vadd.f32 %v2220, %v2446
        %v2500 = vadd.f32 %v2221, %v2449
        %v2501 = vadd.f32 %v2222, %v2452
        %v2502 = vadd.f32 %v2223, %v2455
        %v2503 = vadd.f32 %v2224, %v2458
        %v2504 = vadd.f32 %v2225, %v2461
        %v2505 = vadd.f32 %v2226, %v2464
        %v2506 = vadd.f32 %v2227, %v2467
        %v2507 = vadd.f32 %v2228, %v2470
        %v2508 = vadd.f32 %v2229, %v2473
        %v2509 = vadd.f32 %v2230, %v2476
        %v2510 = vld [vmem:[%s2231 + $0x1] sm:$0xff]
        %v2511 = vld [vmem:[%s2231 + $0x9] sm:$0xff]
        %v2512 = vld [vmem:[%s2231 + $0x19] sm:$0xff]
        %v2513 = vld [vmem:[%s2231 + $0x21] sm:$0xff]
        %v2514 = vld [vmem:[%s2231 + $0x31] sm:$0xff]
        %v2515 = vld [vmem:[%s2231 + $0x39] sm:$0xff]
        %v2516 = vld [vmem:[%s2231 + $0x49] sm:$0xff]
        %v2517 = vld [vmem:[%s2231 + $0x51] sm:$0xff]
        %v2518 = vld [vmem:[%s2231 + $0x61] sm:$0xff]
        %v2519 = vld [vmem:[%s2231 + $0x69] sm:$0xff]
        %v2520 = vld [vmem:[%s2231 + $0x79] sm:$0xff]
        %v2521 = vld [vmem:[%s2231 + $0x81] sm:$0xff]
        %v2522 = vld [vmem:[%s2231 + $0x91] sm:$0xff]
        %v2523 = vld [vmem:[%s2231 + $0x99] sm:$0xff]
        %v2524 = vld [vmem:[%s2231 + $0xa9] sm:$0xff]
        %v2525 = vld [vmem:[%s2231 + $0xb1] sm:$0xff]
        %v2526 = vld [vmem:[%s2231 + $0xc1] sm:$0xff]
        %v2527 = vld [vmem:[%s2231 + $0xc9] sm:$0xff]
        %v2528 = vld [vmem:[%s2231 + $0xd9] sm:$0xff]
        %v2529 = vld [vmem:[%s2231 + $0xe1] sm:$0xff]
        %v2530 = vld [vmem:[%s2231 + $0xf1] sm:$0xff]
        %v2531 = vld [vmem:[%s2231 + $0xf9] sm:$0xff]
        %v2532 = vld [vmem:[%s2231 + $0x109] sm:$0xff]
        %v2533 = vld [vmem:[%s2231 + $0x111] sm:$0xff]
        %v2534 = vld [vmem:[%s2231 + $0x121] sm:$0xff]
        %v2535 = vld [vmem:[%s2231 + $0x129] sm:$0xff]
        %v2536 = vld [vmem:[%s2231 + $0x139] sm:$0xff]
        %v2537 = vld [vmem:[%s2231 + $0x141] sm:$0xff]
        %v2538 = vld [vmem:[%s2231 + $0x151] sm:$0xff]
        %v2539 = vld [vmem:[%s2231 + $0x159] sm:$0xff]
        %v2540 = vld [vmem:[%s2231 + $0x169] sm:$0xff]
        %v2541 = vld [vmem:[%s2231 + $0x171] sm:$0xff]
        %s2542 = scalar_lea.vmem [#allocation6], 28
        %v2543 = vld [vmem:[%s2542] sm:$0x7]
        %v2545 = vsel %vm438, %v2510, 0
        %v2548 = vsel %vm438, %v2511, 0
        %v2551 = vsel %vm438, %v2512, 0
        %v2554 = vsel %vm438, %v2513, 0
        %v2557 = vsel %vm438, %v2514, 0
        %v2560 = vsel %vm438, %v2515, 0
        %v2563 = vsel %vm438, %v2516, 0
        %v2566 = vsel %vm438, %v2517, 0
        %v2569 = vsel %vm438, %v2518, 0
        %v2572 = vsel %vm438, %v2519, 0
        %v2575 = vsel %vm438, %v2520, 0
        %v2578 = vsel %vm438, %v2521, 0
        %v2581 = vsel %vm438, %v2522, 0
        %v2584 = vsel %vm438, %v2523, 0
        %v2587 = vsel %vm438, %v2524, 0
        %v2590 = vsel %vm438, %v2525, 0
        %v2593 = vsel %vm438, %v2526, 0
        %v2596 = vsel %vm438, %v2527, 0
        %v2599 = vsel %vm438, %v2528, 0
        %v2602 = vsel %vm438, %v2529, 0
        %v2605 = vsel %vm438, %v2530, 0
        %v2608 = vsel %vm438, %v2531, 0
        %v2611 = vsel %vm438, %v2532, 0
        %v2614 = vsel %vm438, %v2533, 0
        %v2617 = vsel %vm438, %v2534, 0
        %v2620 = vsel %vm438, %v2535, 0
        %v2623 = vsel %vm438, %v2536, 0
        %v2626 = vsel %vm438, %v2537, 0
        %v2629 = vsel %vm438, %v2538, 0
        %v2632 = vsel %vm438, %v2539, 0
        %v2635 = vsel %vm438, %v2540, 0
        %v2638 = vsel %vm438, %v2541, 0
        %v2641 = vsel %vm692, %v2543, 0
        %2643 = vmatpush.msra.mxu0 0.0
        %2644 = vmatpush.msra.mxu0 0.0
        %2645 = vmatpush.msra.mxu0 0.0
        %2646 = vmatpush.msra.mxu0 0.0
        %2647 = vmatpush.msra.mxu0 0.0
        %2648 = vmatpush.msra.mxu0 0.0
        %2649 = vmatpush.msra.mxu0 0.0
        %2650 = vmatpush.msra.mxu0 0.0
        %2651 = vmatpush.msra.mxu0 0.0
        %2652 = vmatpush.msra.mxu0 0.0
        %2653 = vmatpush.msra.mxu0 0.0
        %2654 = vmatpush.msra.mxu0 0.0
        %2655 = vmatpush.msra.mxu0 0.0
        %2656 = vmatpush.msra.mxu0 0.0
        %2657 = vmatpush.msra.mxu0 0.0
        %2658 = vmatpush.msra.mxu0 %v2641
        %2659 = vmatmul.f32.gmra.mxu0 %v2545
        %v2660 = vpop.f32.mrf.mxu0
        %v2661 = vadd.f32 0.0, %v2660
        %2662 = vmatmul.f32.gmra.mxu0 %v2548
        %v2663 = vpop.f32.mrf.mxu0
        %v2664 = vadd.f32 0.0, %v2663
        %2665 = vmatmul.f32.gmra.mxu0 %v2551
        %v2666 = vpop.f32.mrf.mxu0
        %v2667 = vadd.f32 0.0, %v2666
        %2668 = vmatmul.f32.gmra.mxu0 %v2554
        %v2669 = vpop.f32.mrf.mxu0
        %v2670 = vadd.f32 0.0, %v2669
        %2671 = vmatmul.f32.gmra.mxu0 %v2557
        %v2672 = vpop.f32.mrf.mxu0
        %v2673 = vadd.f32 0.0, %v2672
        %2674 = vmatmul.f32.gmra.mxu0 %v2560
        %v2675 = vpop.f32.mrf.mxu0
        %v2676 = vadd.f32 0.0, %v2675
        %2677 = vmatmul.f32.gmra.mxu0 %v2563
        %v2678 = vpop.f32.mrf.mxu0
        %v2679 = vadd.f32 0.0, %v2678
        %2680 = vmatmul.f32.gmra.mxu0 %v2566
        %v2681 = vpop.f32.mrf.mxu0
        %v2682 = vadd.f32 0.0, %v2681
        %2683 = vmatmul.f32.gmra.mxu0 %v2569
        %v2684 = vpop.f32.mrf.mxu0
        %v2685 = vadd.f32 0.0, %v2684
        %2686 = vmatmul.f32.gmra.mxu0 %v2572
        %v2687 = vpop.f32.mrf.mxu0
        %v2688 = vadd.f32 0.0, %v2687
        %2689 = vmatmul.f32.gmra.mxu0 %v2575
        %v2690 = vpop.f32.mrf.mxu0
        %v2691 = vadd.f32 0.0, %v2690
        %2692 = vmatmul.f32.gmra.mxu0 %v2578
        %v2693 = vpop.f32.mrf.mxu0
        %v2694 = vadd.f32 0.0, %v2693
        %2695 = vmatmul.f32.gmra.mxu0 %v2581
        %v2696 = vpop.f32.mrf.mxu0
        %v2697 = vadd.f32 0.0, %v2696
        %2698 = vmatmul.f32.gmra.mxu0 %v2584
        %v2699 = vpop.f32.mrf.mxu0
        %v2700 = vadd.f32 0.0, %v2699
        %2701 = vmatmul.f32.gmra.mxu0 %v2587
        %v2702 = vpop.f32.mrf.mxu0
        %v2703 = vadd.f32 0.0, %v2702
        %2704 = vmatmul.f32.gmra.mxu0 %v2590
        %v2705 = vpop.f32.mrf.mxu0
        %v2706 = vadd.f32 0.0, %v2705
        %2707 = vmatmul.f32.gmra.mxu0 %v2593
        %v2708 = vpop.f32.mrf.mxu0
        %v2709 = vadd.f32 0.0, %v2708
        %2710 = vmatmul.f32.gmra.mxu0 %v2596
        %v2711 = vpop.f32.mrf.mxu0
        %v2712 = vadd.f32 0.0, %v2711
        %2713 = vmatmul.f32.gmra.mxu0 %v2599
        %v2714 = vpop.f32.mrf.mxu0
        %v2715 = vadd.f32 0.0, %v2714
        %2716 = vmatmul.f32.gmra.mxu0 %v2602
        %v2717 = vpop.f32.mrf.mxu0
        %v2718 = vadd.f32 0.0, %v2717
        %2719 = vmatmul.f32.gmra.mxu0 %v2605
        %v2720 = vpop.f32.mrf.mxu0
        %v2721 = vadd.f32 0.0, %v2720
        %2722 = vmatmul.f32.gmra.mxu0 %v2608
        %v2723 = vpop.f32.mrf.mxu0
        %v2724 = vadd.f32 0.0, %v2723
        %2725 = vmatmul.f32.gmra.mxu0 %v2611
        %v2726 = vpop.f32.mrf.mxu0
        %v2727 = vadd.f32 0.0, %v2726
        %2728 = vmatmul.f32.gmra.mxu0 %v2614
        %v2729 = vpop.f32.mrf.mxu0
        %v2730 = vadd.f32 0.0, %v2729
        %2731 = vmatmul.f32.gmra.mxu0 %v2617
        %v2732 = vpop.f32.mrf.mxu0
        %v2733 = vadd.f32 0.0, %v2732
        %2734 = vmatmul.f32.gmra.mxu0 %v2620
        %v2735 = vpop.f32.mrf.mxu0
        %v2736 = vadd.f32 0.0, %v2735
        %2737 = vmatmul.f32.gmra.mxu0 %v2623
        %v2738 = vpop.f32.mrf.mxu0
        %v2739 = vadd.f32 0.0, %v2738
        %2740 = vmatmul.f32.gmra.mxu0 %v2626
        %v2741 = vpop.f32.mrf.mxu0
        %v2742 = vadd.f32 0.0, %v2741
        %2743 = vmatmul.f32.gmra.mxu0 %v2629
        %v2744 = vpop.f32.mrf.mxu0
        %v2745 = vadd.f32 0.0, %v2744
        %2746 = vmatmul.f32.gmra.mxu0 %v2632
        %v2747 = vpop.f32.mrf.mxu0
        %v2748 = vadd.f32 0.0, %v2747
        %2749 = vmatmul.f32.gmra.mxu0 %v2635
        %v2750 = vpop.f32.mrf.mxu0
        %v2751 = vadd.f32 0.0, %v2750
        %2752 = vmatmul.f32.gmra.mxu0 %v2638
        %v2753 = vpop.f32.mrf.mxu0
        %v2754 = vadd.f32 0.0, %v2753
        %2755 = vdwg.mxu0
        %v2756 = vadd.f32 %v2478, %v2661
        %v2757 = vadd.f32 %v2479, %v2664
        %v2758 = vadd.f32 %v2480, %v2667
        %v2759 = vadd.f32 %v2481, %v2670
        %v2760 = vadd.f32 %v2482, %v2673
        %v2761 = vadd.f32 %v2483, %v2676
        %v2762 = vadd.f32 %v2484, %v2679
        %v2763 = vadd.f32 %v2485, %v2682
        %v2764 = vadd.f32 %v2486, %v2685
        %v2765 = vadd.f32 %v2487, %v2688
        %v2766 = vadd.f32 %v2488, %v2691
        %v2767 = vadd.f32 %v2489, %v2694
        %v2768 = vadd.f32 %v2490, %v2697
        %v2769 = vadd.f32 %v2491, %v2700
        %v2770 = vadd.f32 %v2492, %v2703
        %v2771 = vadd.f32 %v2493, %v2706
        %v2772 = vadd.f32 %v2494, %v2709
        %v2773 = vadd.f32 %v2495, %v2712
        %v2774 = vadd.f32 %v2496, %v2715
        %v2775 = vadd.f32 %v2497, %v2718
        %v2776 = vadd.f32 %v2498, %v2721
        %v2777 = vadd.f32 %v2499, %v2724
        %v2778 = vadd.f32 %v2500, %v2727
        %v2779 = vadd.f32 %v2501, %v2730
        %v2780 = vadd.f32 %v2502, %v2733
        %v2781 = vadd.f32 %v2503, %v2736
        %v2782 = vadd.f32 %v2504, %v2739
        %v2783 = vadd.f32 %v2505, %v2742
        %v2784 = vadd.f32 %v2506, %v2745
        %v2785 = vadd.f32 %v2507, %v2748
        %v2786 = vadd.f32 %v2508, %v2751
        %v2787 = vadd.f32 %v2509, %v2754
        %v2788 = vld [vmem:[%s2231 + $0x2] sm:$0xff]
        %v2789 = vld [vmem:[%s2231 + $0xa] sm:$0xff]
        %v2790 = vld [vmem:[%s2231 + $0x1a] sm:$0xff]
        %v2791 = vld [vmem:[%s2231 + $0x22] sm:$0xff]
        %v2792 = vld [vmem:[%s2231 + $0x32] sm:$0xff]
        %v2793 = vld [vmem:[%s2231 + $0x3a] sm:$0xff]
        %v2794 = vld [vmem:[%s2231 + $0x4a] sm:$0xff]
        %v2795 = vld [vmem:[%s2231 + $0x52] sm:$0xff]
        %v2796 = vld [vmem:[%s2231 + $0x62] sm:$0xff]
        %v2797 = vld [vmem:[%s2231 + $0x6a] sm:$0xff]
        %v2798 = vld [vmem:[%s2231 + $0x7a] sm:$0xff]
        %v2799 = vld [vmem:[%s2231 + $0x82] sm:$0xff]
        %v2800 = vld [vmem:[%s2231 + $0x92] sm:$0xff]
        %v2801 = vld [vmem:[%s2231 + $0x9a] sm:$0xff]
        %v2802 = vld [vmem:[%s2231 + $0xaa] sm:$0xff]
        %v2803 = vld [vmem:[%s2231 + $0xb2] sm:$0xff]
        %v2804 = vld [vmem:[%s2231 + $0xc2] sm:$0xff]
        %v2805 = vld [vmem:[%s2231 + $0xca] sm:$0xff]
        %v2806 = vld [vmem:[%s2231 + $0xda] sm:$0xff]
        %v2807 = vld [vmem:[%s2231 + $0xe2] sm:$0xff]
        %v2808 = vld [vmem:[%s2231 + $0xf2] sm:$0xff]
        %v2809 = vld [vmem:[%s2231 + $0xfa] sm:$0xff]
        %v2810 = vld [vmem:[%s2231 + $0x10a] sm:$0xff]
        %v2811 = vld [vmem:[%s2231 + $0x112] sm:$0xff]
        %v2812 = vld [vmem:[%s2231 + $0x122] sm:$0xff]
        %v2813 = vld [vmem:[%s2231 + $0x12a] sm:$0xff]
        %v2814 = vld [vmem:[%s2231 + $0x13a] sm:$0xff]
        %v2815 = vld [vmem:[%s2231 + $0x142] sm:$0xff]
        %v2816 = vld [vmem:[%s2231 + $0x152] sm:$0xff]
        %v2817 = vld [vmem:[%s2231 + $0x15a] sm:$0xff]
        %v2818 = vld [vmem:[%s2231 + $0x16a] sm:$0xff]
        %v2819 = vld [vmem:[%s2231 + $0x172] sm:$0xff]
        %s2820 = scalar_lea.vmem [#allocation6], 32
        %v2821 = vld [vmem:[%s2820] sm:$0x7]
        %v2823 = vsel %vm438, %v2788, 0
        %v2826 = vsel %vm438, %v2789, 0
        %v2829 = vsel %vm438, %v2790, 0
        %v2832 = vsel %vm438, %v2791, 0
        %v2835 = vsel %vm438, %v2792, 0
        %v2838 = vsel %vm438, %v2793, 0
        %v2841 = vsel %vm438, %v2794, 0
        %v2844 = vsel %vm438, %v2795, 0
        %v2847 = vsel %vm438, %v2796, 0
        %v2850 = vsel %vm438, %v2797, 0
        %v2853 = vsel %vm438, %v2798, 0
        %v2856 = vsel %vm438, %v2799, 0
        %v2859 = vsel %vm438, %v2800, 0
        %v2862 = vsel %vm438, %v2801, 0
        %v2865 = vsel %vm438, %v2802, 0
        %v2868 = vsel %vm438, %v2803, 0
        %v2871 = vsel %vm438, %v2804, 0
        %v2874 = vsel %vm438, %v2805, 0
        %v2877 = vsel %vm438, %v2806, 0
        %v2880 = vsel %vm438, %v2807, 0
        %v2883 = vsel %vm438, %v2808, 0
        %v2886 = vsel %vm438, %v2809, 0
        %v2889 = vsel %vm438, %v2810, 0
        %v2892 = vsel %vm438, %v2811, 0
        %v2895 = vsel %vm438, %v2812, 0
        %v2898 = vsel %vm438, %v2813, 0
        %v2901 = vsel %vm438, %v2814, 0
        %v2904 = vsel %vm438, %v2815, 0
        %v2907 = vsel %vm438, %v2816, 0
        %v2910 = vsel %vm438, %v2817, 0
        %v2913 = vsel %vm438, %v2818, 0
        %v2916 = vsel %vm438, %v2819, 0
        %v2919 = vsel %vm692, %v2821, 0
        %2921 = vmatpush.msra.mxu0 0.0
        %2922 = vmatpush.msra.mxu0 0.0
        %2923 = vmatpush.msra.mxu0 0.0
        %2924 = vmatpush.msra.mxu0 0.0
        %2925 = vmatpush.msra.mxu0 0.0
        %2926 = vmatpush.msra.mxu0 0.0
        %2927 = vmatpush.msra.mxu0 0.0
        %2928 = vmatpush.msra.mxu0 0.0
        %2929 = vmatpush.msra.mxu0 0.0
        %2930 = vmatpush.msra.mxu0 0.0
        %2931 = vmatpush.msra.mxu0 0.0
        %2932 = vmatpush.msra.mxu0 0.0
        %2933 = vmatpush.msra.mxu0 0.0
        %2934 = vmatpush.msra.mxu0 0.0
        %2935 = vmatpush.msra.mxu0 0.0
        %2936 = vmatpush.msra.mxu0 %v2919
        %2937 = vmatmul.f32.gmra.mxu0 %v2823
        %v2938 = vpop.f32.mrf.mxu0
        %v2939 = vadd.f32 0.0, %v2938
        %2940 = vmatmul.f32.gmra.mxu0 %v2826
        %v2941 = vpop.f32.mrf.mxu0
        %v2942 = vadd.f32 0.0, %v2941
        %2943 = vmatmul.f32.gmra.mxu0 %v2829
        %v2944 = vpop.f32.mrf.mxu0
        %v2945 = vadd.f32 0.0, %v2944
        %2946 = vmatmul.f32.gmra.mxu0 %v2832
        %v2947 = vpop.f32.mrf.mxu0
        %v2948 = vadd.f32 0.0, %v2947
        %2949 = vmatmul.f32.gmra.mxu0 %v2835
        %v2950 = vpop.f32.mrf.mxu0
        %v2951 = vadd.f32 0.0, %v2950
        %2952 = vmatmul.f32.gmra.mxu0 %v2838
        %v2953 = vpop.f32.mrf.mxu0
        %v2954 = vadd.f32 0.0, %v2953
        %2955 = vmatmul.f32.gmra.mxu0 %v2841
        %v2956 = vpop.f32.mrf.mxu0
        %v2957 = vadd.f32 0.0, %v2956
        %2958 = vmatmul.f32.gmra.mxu0 %v2844
        %v2959 = vpop.f32.mrf.mxu0
        %v2960 = vadd.f32 0.0, %v2959
        %2961 = vmatmul.f32.gmra.mxu0 %v2847
        %v2962 = vpop.f32.mrf.mxu0
        %v2963 = vadd.f32 0.0, %v2962
        %2964 = vmatmul.f32.gmra.mxu0 %v2850
        %v2965 = vpop.f32.mrf.mxu0
        %v2966 = vadd.f32 0.0, %v2965
        %2967 = vmatmul.f32.gmra.mxu0 %v2853
        %v2968 = vpop.f32.mrf.mxu0
        %v2969 = vadd.f32 0.0, %v2968
        %2970 = vmatmul.f32.gmra.mxu0 %v2856
        %v2971 = vpop.f32.mrf.mxu0
        %v2972 = vadd.f32 0.0, %v2971
        %2973 = vmatmul.f32.gmra.mxu0 %v2859
        %v2974 = vpop.f32.mrf.mxu0
        %v2975 = vadd.f32 0.0, %v2974
        %2976 = vmatmul.f32.gmra.mxu0 %v2862
        %v2977 = vpop.f32.mrf.mxu0
        %v2978 = vadd.f32 0.0, %v2977
        %2979 = vmatmul.f32.gmra.mxu0 %v2865
        %v2980 = vpop.f32.mrf.mxu0
        %v2981 = vadd.f32 0.0, %v2980
        %2982 = vmatmul.f32.gmra.mxu0 %v2868
        %v2983 = vpop.f32.mrf.mxu0
        %v2984 = vadd.f32 0.0, %v2983
        %2985 = vmatmul.f32.gmra.mxu0 %v2871
        %v2986 = vpop.f32.mrf.mxu0
        %v2987 = vadd.f32 0.0, %v2986
        %2988 = vmatmul.f32.gmra.mxu0 %v2874
        %v2989 = vpop.f32.mrf.mxu0
        %v2990 = vadd.f32 0.0, %v2989
        %2991 = vmatmul.f32.gmra.mxu0 %v2877
        %v2992 = vpop.f32.mrf.mxu0
        %v2993 = vadd.f32 0.0, %v2992
        %2994 = vmatmul.f32.gmra.mxu0 %v2880
        %v2995 = vpop.f32.mrf.mxu0
        %v2996 = vadd.f32 0.0, %v2995
        %2997 = vmatmul.f32.gmra.mxu0 %v2883
        %v2998 = vpop.f32.mrf.mxu0
        %v2999 = vadd.f32 0.0, %v2998
        %3000 = vmatmul.f32.gmra.mxu0 %v2886
        %v3001 = vpop.f32.mrf.mxu0
        %v3002 = vadd.f32 0.0, %v3001
        %3003 = vmatmul.f32.gmra.mxu0 %v2889
        %v3004 = vpop.f32.mrf.mxu0
        %v3005 = vadd.f32 0.0, %v3004
        %3006 = vmatmul.f32.gmra.mxu0 %v2892
        %v3007 = vpop.f32.mrf.mxu0
        %v3008 = vadd.f32 0.0, %v3007
        %3009 = vmatmul.f32.gmra.mxu0 %v2895
        %v3010 = vpop.f32.mrf.mxu0
        %v3011 = vadd.f32 0.0, %v3010
        %3012 = vmatmul.f32.gmra.mxu0 %v2898
        %v3013 = vpop.f32.mrf.mxu0
        %v3014 = vadd.f32 0.0, %v3013
        %3015 = vmatmul.f32.gmra.mxu0 %v2901
        %v3016 = vpop.f32.mrf.mxu0
        %v3017 = vadd.f32 0.0, %v3016
        %3018 = vmatmul.f32.gmra.mxu0 %v2904
        %v3019 = vpop.f32.mrf.mxu0
        %v3020 = vadd.f32 0.0, %v3019
        %3021 = vmatmul.f32.gmra.mxu0 %v2907
        %v3022 = vpop.f32.mrf.mxu0
        %v3023 = vadd.f32 0.0, %v3022
        %3024 = vmatmul.f32.gmra.mxu0 %v2910
        %v3025 = vpop.f32.mrf.mxu0
        %v3026 = vadd.f32 0.0, %v3025
        %3027 = vmatmul.f32.gmra.mxu0 %v2913
        %v3028 = vpop.f32.mrf.mxu0
        %v3029 = vadd.f32 0.0, %v3028
        %3030 = vmatmul.f32.gmra.mxu0 %v2916
        %v3031 = vpop.f32.mrf.mxu0
        %v3032 = vadd.f32 0.0, %v3031
        %3033 = vdwg.mxu0
        %v3034 = vadd.f32 %v2756, %v2939
        %v3035 = vadd.f32 %v2757, %v2942
        %v3036 = vadd.f32 %v2758, %v2945
        %v3037 = vadd.f32 %v2759, %v2948
        %v3038 = vadd.f32 %v2760, %v2951
        %v3039 = vadd.f32 %v2761, %v2954
        %v3040 = vadd.f32 %v2762, %v2957
        %v3041 = vadd.f32 %v2763, %v2960
        %v3042 = vadd.f32 %v2764, %v2963
        %v3043 = vadd.f32 %v2765, %v2966
        %v3044 = vadd.f32 %v2766, %v2969
        %v3045 = vadd.f32 %v2767, %v2972
        %v3046 = vadd.f32 %v2768, %v2975
        %v3047 = vadd.f32 %v2769, %v2978
        %v3048 = vadd.f32 %v2770, %v2981
        %v3049 = vadd.f32 %v2771, %v2984
        %v3050 = vadd.f32 %v2772, %v2987
        %v3051 = vadd.f32 %v2773, %v2990
        %v3052 = vadd.f32 %v2774, %v2993
        %v3053 = vadd.f32 %v2775, %v2996
        %v3054 = vadd.f32 %v2776, %v2999
        %v3055 = vadd.f32 %v2777, %v3002
        %v3056 = vadd.f32 %v2778, %v3005
        %v3057 = vadd.f32 %v2779, %v3008
        %v3058 = vadd.f32 %v2780, %v3011
        %v3059 = vadd.f32 %v2781, %v3014
        %v3060 = vadd.f32 %v2782, %v3017
        %v3061 = vadd.f32 %v2783, %v3020
        %v3062 = vadd.f32 %v2784, %v3023
        %v3063 = vadd.f32 %v2785, %v3026
        %v3064 = vadd.f32 %v2786, %v3029
        %v3065 = vadd.f32 %v2787, %v3032
        %v3066 = vmax.f32 %v3034, 0.0
        %v3067 = vmax.f32 %v3035, 0.0
        %v3068 = vmax.f32 %v3036, 0.0
        %v3069 = vmax.f32 %v3037, 0.0
        %v3070 = vmax.f32 %v3038, 0.0
        %v3071 = vmax.f32 %v3039, 0.0
        %v3072 = vmax.f32 %v3040, 0.0
        %v3073 = vmax.f32 %v3041, 0.0
        %v3074 = vmax.f32 %v3042, 0.0
        %v3075 = vmax.f32 %v3043, 0.0
        %v3076 = vmax.f32 %v3044, 0.0
        %v3077 = vmax.f32 %v3045, 0.0
        %v3078 = vmax.f32 %v3046, 0.0
        %v3079 = vmax.f32 %v3047, 0.0
        %v3080 = vmax.f32 %v3048, 0.0
        %v3081 = vmax.f32 %v3049, 0.0
        %v3082 = vmax.f32 %v3050, 0.0
        %v3083 = vmax.f32 %v3051, 0.0
        %v3084 = vmax.f32 %v3052, 0.0
        %v3085 = vmax.f32 %v3053, 0.0
        %v3086 = vmax.f32 %v3054, 0.0
        %v3087 = vmax.f32 %v3055, 0.0
        %v3088 = vmax.f32 %v3056, 0.0
        %v3089 = vmax.f32 %v3057, 0.0
        %v3090 = vmax.f32 %v3058, 0.0
        %v3091 = vmax.f32 %v3059, 0.0
        %v3092 = vmax.f32 %v3060, 0.0
        %v3093 = vmax.f32 %v3061, 0.0
        %v3094 = vmax.f32 %v3062, 0.0
        %v3095 = vmax.f32 %v3063, 0.0
        %v3096 = vmax.f32 %v3064, 0.0
        %v3097 = vmax.f32 %v3065, 0.0
        %vm3098 = vcmask 523264
        %3099 = vst.msk [vmem:[#allocation3] sm:$0xff] %vm3098, %v3066
        %3100 = vst.msk [vmem:[#allocation3 + $0x8] sm:$0xff] %vm3098, %v3067
        %3101 = vst.msk [vmem:[#allocation3 + $0x10] sm:$0xff] %vm3098, %v3068
        %3102 = vst.msk [vmem:[#allocation3 + $0x18] sm:$0xff] %vm3098, %v3069
        %3103 = vst.msk [vmem:[#allocation3 + $0x20] sm:$0xff] %vm3098, %v3070
        %3104 = vst.msk [vmem:[#allocation3 + $0x28] sm:$0xff] %vm3098, %v3071
        %3105 = vst.msk [vmem:[#allocation3 + $0x30] sm:$0xff] %vm3098, %v3072
        %3106 = vst.msk [vmem:[#allocation3 + $0x38] sm:$0xff] %vm3098, %v3073
        %3107 = vst.msk [vmem:[#allocation3 + $0x40] sm:$0xff] %vm3098, %v3074
        %3108 = vst.msk [vmem:[#allocation3 + $0x48] sm:$0xff] %vm3098, %v3075
        %3109 = vst.msk [vmem:[#allocation3 + $0x50] sm:$0xff] %vm3098, %v3076
        %3110 = vst.msk [vmem:[#allocation3 + $0x58] sm:$0xff] %vm3098, %v3077
        %3111 = vst.msk [vmem:[#allocation3 + $0x60] sm:$0xff] %vm3098, %v3078
        %3112 = vst.msk [vmem:[#allocation3 + $0x68] sm:$0xff] %vm3098, %v3079
        %3113 = vst.msk [vmem:[#allocation3 + $0x70] sm:$0xff] %vm3098, %v3080
        %3114 = vst.msk [vmem:[#allocation3 + $0x78] sm:$0xff] %vm3098, %v3081
        %3115 = vst.msk [vmem:[#allocation3 + $0x80] sm:$0xff] %vm3098, %v3082
        %3116 = vst.msk [vmem:[#allocation3 + $0x88] sm:$0xff] %vm3098, %v3083
        %3117 = vst.msk [vmem:[#allocation3 + $0x90] sm:$0xff] %vm3098, %v3084
        %3118 = vst.msk [vmem:[#allocation3 + $0x98] sm:$0xff] %vm3098, %v3085
        %3119 = vst.msk [vmem:[#allocation3 + $0xa0] sm:$0xff] %vm3098, %v3086
        %3120 = vst.msk [vmem:[#allocation3 + $0xa8] sm:$0xff] %vm3098, %v3087
        %3121 = vst.msk [vmem:[#allocation3 + $0xb0] sm:$0xff] %vm3098, %v3088
        %3122 = vst.msk [vmem:[#allocation3 + $0xb8] sm:$0xff] %vm3098, %v3089
        %3123 = vst.msk [vmem:[#allocation3 + $0xc0] sm:$0xff] %vm3098, %v3090
        %3124 = vst.msk [vmem:[#allocation3 + $0xc8] sm:$0xff] %vm3098, %v3091
        %3125 = vst.msk [vmem:[#allocation3 + $0xd0] sm:$0xff] %vm3098, %v3092
        %3126 = vst.msk [vmem:[#allocation3 + $0xd8] sm:$0xff] %vm3098, %v3093
        %3127 = vst.msk [vmem:[#allocation3 + $0xe0] sm:$0xff] %vm3098, %v3094
        %3128 = vst.msk [vmem:[#allocation3 + $0xe8] sm:$0xff] %vm3098, %v3095
        %3129 = vst.msk [vmem:[#allocation3 + $0xf0] sm:$0xff] %vm3098, %v3096
        %3130 = vst.msk [vmem:[#allocation3 + $0xf8] sm:$0xff] %vm3098, %v3097
        %v3131 = vld [vmem:[#allocation3] ss:$2 sm:$0xff]
        %s3132 = scalar_lea.vmem [#allocation3], 16
        %v3133 = vld [vmem:[%s3132] ss:$2 sm:$0xff]
        %s3134 = scalar_lea.vmem [#allocation3], 32
        %v3135 = vld [vmem:[%s3134] ss:$2 sm:$0xff]
        %s3136 = scalar_lea.vmem [#allocation3], 48
        %v3137 = vld [vmem:[%s3136] ss:$2 sm:$0xff]
        %s3138 = scalar_lea.vmem [#allocation3], 64
        %v3139 = vld [vmem:[%s3138] ss:$2 sm:$0xff]
        %s3140 = scalar_lea.vmem [#allocation3], 80
        %v3141 = vld [vmem:[%s3140] ss:$2 sm:$0xff]
        %s3142 = scalar_lea.vmem [#allocation3], 96
        %v3143 = vld [vmem:[%s3142] ss:$2 sm:$0xff]
        %s3144 = scalar_lea.vmem [#allocation3], 112
        %v3145 = vld [vmem:[%s3144] ss:$2 sm:$0xff]
        %s3146 = scalar_lea.vmem [#allocation3], 128
        %v3147 = vld [vmem:[%s3146] ss:$2 sm:$0xff]
        %s3148 = scalar_lea.vmem [#allocation3], 144
        %v3149 = vld [vmem:[%s3148] ss:$2 sm:$0xff]
        %s3150 = scalar_lea.vmem [#allocation3], 160
        %v3151 = vld [vmem:[%s3150] ss:$2 sm:$0xff]
        %s3152 = scalar_lea.vmem [#allocation3], 176
        %v3153 = vld [vmem:[%s3152] ss:$2 sm:$0xff]
        %s3154 = scalar_lea.vmem [#allocation3], 192
        %v3155 = vld [vmem:[%s3154] ss:$2 sm:$0xff]
        %s3156 = scalar_lea.vmem [#allocation3], 208
        %v3157 = vld [vmem:[%s3156] ss:$2 sm:$0xff]
        %s3158 = scalar_lea.vmem [#allocation3], 224
        %v3159 = vld [vmem:[%s3158] ss:$2 sm:$0xff]
        %s3160 = scalar_lea.vmem [#allocation3], 240
        %v3161 = vld [vmem:[%s3160] ss:$2 sm:$0xff]
        %s3162 = scalar_lea.vmem [#allocation3], 1
        %v3163 = vld [vmem:[%s3162] ss:$2 sm:$0xff]
        %s3164 = scalar_lea.vmem [#allocation3], 17
        %v3165 = vld [vmem:[%s3164] ss:$2 sm:$0xff]
        %s3166 = scalar_lea.vmem [#allocation3], 33
        %v3167 = vld [vmem:[%s3166] ss:$2 sm:$0xff]
        %s3168 = scalar_lea.vmem [#allocation3], 49
        %v3169 = vld [vmem:[%s3168] ss:$2 sm:$0xff]
        %s3170 = scalar_lea.vmem [#allocation3], 65
        %v3171 = vld [vmem:[%s3170] ss:$2 sm:$0xff]
        %s3172 = scalar_lea.vmem [#allocation3], 81
        %v3173 = vld [vmem:[%s3172] ss:$2 sm:$0xff]
        %s3174 = scalar_lea.vmem [#allocation3], 97
        %v3175 = vld [vmem:[%s3174] ss:$2 sm:$0xff]
        %s3176 = scalar_lea.vmem [#allocation3], 113
        %v3177 = vld [vmem:[%s3176] ss:$2 sm:$0xff]
        %s3178 = scalar_lea.vmem [#allocation3], 129
        %v3179 = vld [vmem:[%s3178] ss:$2 sm:$0xff]
        %s3180 = scalar_lea.vmem [#allocation3], 145
        %v3181 = vld [vmem:[%s3180] ss:$2 sm:$0xff]
        %s3182 = scalar_lea.vmem [#allocation3], 161
        %v3183 = vld [vmem:[%s3182] ss:$2 sm:$0xff]
        %s3184 = scalar_lea.vmem [#allocation3], 177
        %v3185 = vld [vmem:[%s3184] ss:$2 sm:$0xff]
        %s3186 = scalar_lea.vmem [#allocation3], 193
        %v3187 = vld [vmem:[%s3186] ss:$2 sm:$0xff]
        %s3188 = scalar_lea.vmem [#allocation3], 209
        %v3189 = vld [vmem:[%s3188] ss:$2 sm:$0xff]
        %s3190 = scalar_lea.vmem [#allocation3], 225
        %v3191 = vld [vmem:[%s3190] ss:$2 sm:$0xff]
        %s3192 = scalar_lea.vmem [#allocation3], 241
        %v3193 = vld [vmem:[%s3192] ss:$2 sm:$0xff]
        %v3194 = vmax.f32 %v3131, %v3163
        %v3195 = vmax.f32 %v3133, %v3165
        %v3196 = vmax.f32 %v3135, %v3167
        %v3197 = vmax.f32 %v3137, %v3169
        %v3198 = vmax.f32 %v3139, %v3171
        %v3199 = vmax.f32 %v3141, %v3173
        %v3200 = vmax.f32 %v3143, %v3175
        %v3201 = vmax.f32 %v3145, %v3177
        %v3202 = vmax.f32 %v3147, %v3179
        %v3203 = vmax.f32 %v3149, %v3181
        %v3204 = vmax.f32 %v3151, %v3183
        %v3205 = vmax.f32 %v3153, %v3185
        %v3206 = vmax.f32 %v3155, %v3187
        %v3207 = vmax.f32 %v3157, %v3189
        %v3208 = vmax.f32 %v3159, %v3191
        %v3209 = vmax.f32 %v3161, %v3193
        %v3210 = vmax.f32 %v3194, %v3195
        %v3211 = vmax.f32 %v3196, %v3197
        %v3212 = vmax.f32 %v3198, %v3199
        %v3213 = vmax.f32 %v3200, %v3201
        %v3214 = vmax.f32 %v3202, %v3203
        %v3215 = vmax.f32 %v3204, %v3205
        %v3216 = vmax.f32 %v3206, %v3207
        %v3217 = vmax.f32 %v3208, %v3209
        %3218 = vst.msk [vmem:[#allocation4] sm:$0xff] %vm3098, 0.0
        %vm3219 = vcmask 517120
        %3220 = vst.msk [vmem:[#allocation4 + $0x8] sm:$0x3] %vm3219, 0.0
        %3221 = vst.msk [vmem:[#allocation4 + $0x10] sm:$0xff] %vm3098, 0.0
        %3222 = vst.msk [vmem:[#allocation4 + $0x18] sm:$0x3] %vm3219, 0.0
        %3223 = vst.msk [vmem:[#allocation4 + $0x20] sm:$0xff] %vm3098, 0.0
        %3224 = vst.msk [vmem:[#allocation4 + $0x28] sm:$0x3] %vm3219, 0.0
        %3225 = vst.msk [vmem:[#allocation4 + $0x30] sm:$0xff] %vm3098, 0.0
        %3226 = vst.msk [vmem:[#allocation4 + $0x38] sm:$0x3] %vm3219, 0.0
        %3227 = vst.msk [vmem:[#allocation4 + $0x40] sm:$0xff] %vm3098, 0.0
        %3228 = vst.msk [vmem:[#allocation4 + $0x48] sm:$0x3] %vm3219, 0.0
        %3229 = vst.msk [vmem:[#allocation4 + $0x50] sm:$0xff] %vm3098, 0.0
        %3230 = vst.msk [vmem:[#allocation4 + $0x58] sm:$0x3] %vm3219, 0.0
        %3231 = vst.msk [vmem:[#allocation4 + $0x60] sm:$0xff] %vm3098, 0.0
        %3232 = vst.msk [vmem:[#allocation4 + $0x68] sm:$0x3] %vm3219, 0.0
        %3233 = vst.msk [vmem:[#allocation4 + $0x70] sm:$0xff] %vm3098, 0.0
        %3234 = vst.msk [vmem:[#allocation4 + $0x78] sm:$0x3] %vm3219, 0.0
        %3235 = vst.msk [vmem:[#allocation4 + $0x80] sm:$0xff] %vm3098, 0.0
        %3236 = vst.msk [vmem:[#allocation4 + $0x88] sm:$0x3] %vm3219, 0.0
        %3237 = vst.msk [vmem:[#allocation4 + $0x90] sm:$0xff] %vm3098, 0.0
        %3238 = vst.msk [vmem:[#allocation4 + $0x98] sm:$0x3] %vm3219, 0.0
        %s3239 = scalar_lea.vmem [#allocation4], 16
        %3240 = vst.msk [vmem:[%s3239 + $0x1] sm:$0xff] %vm3098, %v3210
        %3241 = vst.msk [vmem:[%s3239 + $0x11] sm:$0xff] %vm3098, %v3211
        %3242 = vst.msk [vmem:[%s3239 + $0x21] sm:$0xff] %vm3098, %v3212
        %3243 = vst.msk [vmem:[%s3239 + $0x31] sm:$0xff] %vm3098, %v3213
        %3244 = vst.msk [vmem:[%s3239 + $0x41] sm:$0xff] %vm3098, %v3214
        %3245 = vst.msk [vmem:[%s3239 + $0x51] sm:$0xff] %vm3098, %v3215
        %3246 = vst.msk [vmem:[%s3239 + $0x61] sm:$0xff] %vm3098, %v3216
        %3247 = vst.msk [vmem:[%s3239 + $0x71] sm:$0xff] %vm3098, %v3217
        %v3248 = vld [vmem:[#allocation12] sm:$0x1]
        %v3250 = vperm.slane %v3248, 0
        %v3252 = vld [vmem:[#allocation4] sm:$0xff]
        %v3253 = vld [vmem:[#allocation4 + $0x10] sm:$0xff]
        %v3254 = vld [vmem:[#allocation4 + $0x20] sm:$0xff]
        %v3255 = vld [vmem:[#allocation4 + $0x30] sm:$0xff]
        %v3256 = vld [vmem:[#allocation4 + $0x40] sm:$0xff]
        %v3257 = vld [vmem:[#allocation4 + $0x50] sm:$0xff]
        %v3258 = vld [vmem:[#allocation4 + $0x60] sm:$0xff]
        %v3259 = vld [vmem:[#allocation4 + $0x70] sm:$0xff]
        %v3260 = vld [vmem:[#allocation11] sm:$0xff]
        %v3261 = vld [vmem:[#allocation11 + $0x8] sm:$0xff]
        %v3262 = vld [vmem:[#allocation11 + $0x10] sm:$0xff]
        %v3263 = vld [vmem:[#allocation11 + $0x18] sm:$0xff]
        %v3264 = vld [vmem:[#allocation11 + $0x20] sm:$0xff]
        %v3265 = vld [vmem:[#allocation11 + $0x28] sm:$0xff]
        %v3266 = vld [vmem:[#allocation11 + $0x30] sm:$0xff]
        %v3267 = vld [vmem:[#allocation11 + $0x38] sm:$0xff]
        %v3269 = vsel %vm3098, %v3252, 0
        %v3272 = vsel %vm3098, %v3253, 0
        %v3275 = vsel %vm3098, %v3254, 0
        %v3278 = vsel %vm3098, %v3255, 0
        %v3281 = vsel %vm3098, %v3256, 0
        %v3284 = vsel %vm3098, %v3257, 0
        %v3287 = vsel %vm3098, %v3258, 0
        %v3290 = vsel %vm3098, %v3259, 0
        %3292 = vmatpush.msra.mxu0 0.0
        %3293 = vmatpush.msra.mxu0 0.0
        %3294 = vmatpush.msra.mxu0 0.0
        %3295 = vmatpush.msra.mxu0 0.0
        %3296 = vmatpush.msra.mxu0 0.0
        %3297 = vmatpush.msra.mxu0 0.0
        %3298 = vmatpush.msra.mxu0 0.0
        %3299 = vmatpush.msra.mxu0 0.0
        %3300 = vmatpush.msra.mxu0 %v3267
        %3301 = vmatpush.msra.mxu0 %v3266
        %3302 = vmatpush.msra.mxu0 %v3265
        %3303 = vmatpush.msra.mxu0 %v3264
        %3304 = vmatpush.msra.mxu0 %v3263
        %3305 = vmatpush.msra.mxu0 %v3262
        %3306 = vmatpush.msra.mxu0 %v3261
        %3307 = vmatpush.msra.mxu0 %v3260
        %3308 = vmatmul.f32.gmra.mxu0 %v3269
        %v3309 = vpop.f32.mrf.mxu0
        %v3310 = vadd.f32 0.0, %v3309
        %3311 = vmatmul.f32.gmra.mxu0 %v3272
        %v3312 = vpop.f32.mrf.mxu0
        %v3313 = vadd.f32 0.0, %v3312
        %3314 = vmatmul.f32.gmra.mxu0 %v3275
        %v3315 = vpop.f32.mrf.mxu0
        %v3316 = vadd.f32 0.0, %v3315
        %3317 = vmatmul.f32.gmra.mxu0 %v3278
        %v3318 = vpop.f32.mrf.mxu0
        %v3319 = vadd.f32 0.0, %v3318
        %3320 = vmatmul.f32.gmra.mxu0 %v3281
        %v3321 = vpop.f32.mrf.mxu0
        %v3322 = vadd.f32 0.0, %v3321
        %3323 = vmatmul.f32.gmra.mxu0 %v3284
        %v3324 = vpop.f32.mrf.mxu0
        %v3325 = vadd.f32 0.0, %v3324
        %3326 = vmatmul.f32.gmra.mxu0 %v3287
        %v3327 = vpop.f32.mrf.mxu0
        %v3328 = vadd.f32 0.0, %v3327
        %3329 = vmatmul.f32.gmra.mxu0 %v3290
        %v3330 = vpop.f32.mrf.mxu0
        %v3331 = vadd.f32 0.0, %v3330
        %3332 = vdwg.mxu0
        %v3333 = vadd.f32 %v3250, %v3310
        %v3334 = vadd.f32 %v3250, %v3313
        %v3335 = vadd.f32 %v3250, %v3316
        %v3336 = vadd.f32 %v3250, %v3319
        %v3337 = vadd.f32 %v3250, %v3322
        %v3338 = vadd.f32 %v3250, %v3325
        %v3339 = vadd.f32 %v3250, %v3328
        %v3340 = vadd.f32 %v3250, %v3331
        %v3341 = vld [vmem:[#allocation4 + $0x1] sm:$0xff]
        %v3342 = vld [vmem:[#allocation4 + $0x11] sm:$0xff]
        %v3343 = vld [vmem:[#allocation4 + $0x21] sm:$0xff]
        %v3344 = vld [vmem:[#allocation4 + $0x31] sm:$0xff]
        %v3345 = vld [vmem:[#allocation4 + $0x41] sm:$0xff]
        %v3346 = vld [vmem:[#allocation4 + $0x51] sm:$0xff]
        %v3347 = vld [vmem:[#allocation4 + $0x61] sm:$0xff]
        %v3348 = vld [vmem:[#allocation4 + $0x71] sm:$0xff]
        %s3349 = scalar_lea.vmem [#allocation11], 64
        %v3350 = vld [vmem:[%s3349] sm:$0xff]
        %v3351 = vld [vmem:[%s3349 + $0x8] sm:$0xff]
        %v3352 = vld [vmem:[%s3349 + $0x10] sm:$0xff]
        %v3353 = vld [vmem:[%s3349 + $0x18] sm:$0xff]
        %v3354 = vld [vmem:[%s3349 + $0x20] sm:$0xff]
        %v3355 = vld [vmem:[%s3349 + $0x28] sm:$0xff]
        %v3356 = vld [vmem:[%s3349 + $0x30] sm:$0xff]
        %v3357 = vld [vmem:[%s3349 + $0x38] sm:$0xff]
        %v3359 = vsel %vm3098, %v3341, 0
        %v3362 = vsel %vm3098, %v3342, 0
        %v3365 = vsel %vm3098, %v3343, 0
        %v3368 = vsel %vm3098, %v3344, 0
        %v3371 = vsel %vm3098, %v3345, 0
        %v3374 = vsel %vm3098, %v3346, 0
        %v3377 = vsel %vm3098, %v3347, 0
        %v3380 = vsel %vm3098, %v3348, 0
        %3382 = vmatpush.msra.mxu0 0.0
        %3383 = vmatpush.msra.mxu0 0.0
        %3384 = vmatpush.msra.mxu0 0.0
        %3385 = vmatpush.msra.mxu0 0.0
        %3386 = vmatpush.msra.mxu0 0.0
        %3387 = vmatpush.msra.mxu0 0.0
        %3388 = vmatpush.msra.mxu0 0.0
        %3389 = vmatpush.msra.mxu0 0.0
        %3390 = vmatpush.msra.mxu0 %v3357
        %3391 = vmatpush.msra.mxu0 %v3356
        %3392 = vmatpush.msra.mxu0 %v3355
        %3393 = vmatpush.msra.mxu0 %v3354
        %3394 = vmatpush.msra.mxu0 %v3353
        %3395 = vmatpush.msra.mxu0 %v3352
        %3396 = vmatpush.msra.mxu0 %v3351
        %3397 = vmatpush.msra.mxu0 %v3350
        %3398 = vmatmul.f32.gmra.mxu0 %v3359
        %v3399 = vpop.f32.mrf.mxu0
        %v3400 = vadd.f32 0.0, %v3399
        %3401 = vmatmul.f32.gmra.mxu0 %v3362
        %v3402 = vpop.f32.mrf.mxu0
        %v3403 = vadd.f32 0.0, %v3402
        %3404 = vmatmul.f32.gmra.mxu0 %v3365
        %v3405 = vpop.f32.mrf.mxu0
        %v3406 = vadd.f32 0.0, %v3405
        %3407 = vmatmul.f32.gmra.mxu0 %v3368
        %v3408 = vpop.f32.mrf.mxu0
        %v3409 = vadd.f32 0.0, %v3408
        %3410 = vmatmul.f32.gmra.mxu0 %v3371
        %v3411 = vpop.f32.mrf.mxu0
        %v3412 = vadd.f32 0.0, %v3411
        %3413 = vmatmul.f32.gmra.mxu0 %v3374
        %v3414 = vpop.f32.mrf.mxu0
        %v3415 = vadd.f32 0.0, %v3414
        %3416 = vmatmul.f32.gmra.mxu0 %v3377
        %v3417 = vpop.f32.mrf.mxu0
        %v3418 = vadd.f32 0.0, %v3417
        %3419 = vmatmul.f32.gmra.mxu0 %v3380
        %v3420 = vpop.f32.mrf.mxu0
        %v3421 = vadd.f32 0.0, %v3420
        %3422 = vdwg.mxu0
        %v3423 = vadd.f32 %v3333, %v3400
        %v3424 = vadd.f32 %v3334, %v3403
        %v3425 = vadd.f32 %v3335, %v3406
        %v3426 = vadd.f32 %v3336, %v3409
        %v3427 = vadd.f32 %v3337, %v3412
        %v3428 = vadd.f32 %v3338, %v3415
        %v3429 = vadd.f32 %v3339, %v3418
        %v3430 = vadd.f32 %v3340, %v3421
        %v3431 = vld [vmem:[#allocation4 + $0x2] sm:$0xff]
        %v3432 = vld [vmem:[#allocation4 + $0x12] sm:$0xff]
        %v3433 = vld [vmem:[#allocation4 + $0x22] sm:$0xff]
        %v3434 = vld [vmem:[#allocation4 + $0x32] sm:$0xff]
        %v3435 = vld [vmem:[#allocation4 + $0x42] sm:$0xff]
        %v3436 = vld [vmem:[#allocation4 + $0x52] sm:$0xff]
        %v3437 = vld [vmem:[#allocation4 + $0x62] sm:$0xff]
        %v3438 = vld [vmem:[#allocation4 + $0x72] sm:$0xff]
        %s3439 = scalar_lea.vmem [#allocation11], 128
        %v3440 = vld [vmem:[%s3439] sm:$0xff]
        %v3441 = vld [vmem:[%s3439 + $0x8] sm:$0xff]
        %v3442 = vld [vmem:[%s3439 + $0x10] sm:$0xff]
        %v3443 = vld [vmem:[%s3439 + $0x18] sm:$0xff]
        %v3444 = vld [vmem:[%s3439 + $0x20] sm:$0xff]
        %v3445 = vld [vmem:[%s3439 + $0x28] sm:$0xff]
        %v3446 = vld [vmem:[%s3439 + $0x30] sm:$0xff]
        %v3447 = vld [vmem:[%s3439 + $0x38] sm:$0xff]
        %v3449 = vsel %vm3098, %v3431, 0
        %v3452 = vsel %vm3098, %v3432, 0
        %v3455 = vsel %vm3098, %v3433, 0
        %v3458 = vsel %vm3098, %v3434, 0
        %v3461 = vsel %vm3098, %v3435, 0
        %v3464 = vsel %vm3098, %v3436, 0
        %v3467 = vsel %vm3098, %v3437, 0
        %v3470 = vsel %vm3098, %v3438, 0
        %3472 = vmatpush.msra.mxu0 0.0
        %3473 = vmatpush.msra.mxu0 0.0
        %3474 = vmatpush.msra.mxu0 0.0
        %3475 = vmatpush.msra.mxu0 0.0
        %3476 = vmatpush.msra.mxu0 0.0
        %3477 = vmatpush.msra.mxu0 0.0
        %3478 = vmatpush.msra.mxu0 0.0
        %3479 = vmatpush.msra.mxu0 0.0
        %3480 = vmatpush.msra.mxu0 %v3447
        %3481 = vmatpush.msra.mxu0 %v3446
        %3482 = vmatpush.msra.mxu0 %v3445
        %3483 = vmatpush.msra.mxu0 %v3444
        %3484 = vmatpush.msra.mxu0 %v3443
        %3485 = vmatpush.msra.mxu0 %v3442
        %3486 = vmatpush.msra.mxu0 %v3441
        %3487 = vmatpush.msra.mxu0 %v3440
        %3488 = vmatmul.f32.gmra.mxu0 %v3449
        %v3489 = vpop.f32.mrf.mxu0
        %v3490 = vadd.f32 0.0, %v3489
        %3491 = vmatmul.f32.gmra.mxu0 %v3452
        %v3492 = vpop.f32.mrf.mxu0
        %v3493 = vadd.f32 0.0, %v3492
        %3494 = vmatmul.f32.gmra.mxu0 %v3455
        %v3495 = vpop.f32.mrf.mxu0
        %v3496 = vadd.f32 0.0, %v3495
        %3497 = vmatmul.f32.gmra.mxu0 %v3458
        %v3498 = vpop.f32.mrf.mxu0
        %v3499 = vadd.f32 0.0, %v3498
        %3500 = vmatmul.f32.gmra.mxu0 %v3461
        %v3501 = vpop.f32.mrf.mxu0
        %v3502 = vadd.f32 0.0, %v3501
        %3503 = vmatmul.f32.gmra.mxu0 %v3464
        %v3504 = vpop.f32.mrf.mxu0
        %v3505 = vadd.f32 0.0, %v3504
        %3506 = vmatmul.f32.gmra.mxu0 %v3467
        %v3507 = vpop.f32.mrf.mxu0
        %v3508 = vadd.f32 0.0, %v3507
        %3509 = vmatmul.f32.gmra.mxu0 %v3470
        %v3510 = vpop.f32.mrf.mxu0
        %v3511 = vadd.f32 0.0, %v3510
        %3512 = vdwg.mxu0
        %v3513 = vadd.f32 %v3423, %v3490
        %v3514 = vadd.f32 %v3424, %v3493
        %v3515 = vadd.f32 %v3425, %v3496
        %v3516 = vadd.f32 %v3426, %v3499
        %v3517 = vadd.f32 %v3427, %v3502
        %v3518 = vadd.f32 %v3428, %v3505
        %v3519 = vadd.f32 %v3429, %v3508
        %v3520 = vadd.f32 %v3430, %v3511
        %v3521 = vld [vmem:[%s3239] sm:$0xff]
        %v3522 = vld [vmem:[%s3239 + $0x10] sm:$0xff]
        %v3523 = vld [vmem:[%s3239 + $0x20] sm:$0xff]
        %v3524 = vld [vmem:[%s3239 + $0x30] sm:$0xff]
        %v3525 = vld [vmem:[%s3239 + $0x40] sm:$0xff]
        %v3526 = vld [vmem:[%s3239 + $0x50] sm:$0xff]
        %v3527 = vld [vmem:[%s3239 + $0x60] sm:$0xff]
        %v3528 = vld [vmem:[%s3239 + $0x70] sm:$0xff]
        %s3529 = scalar_lea.vmem [#allocation11], 192
        %v3530 = vld [vmem:[%s3529] sm:$0xff]
        %v3531 = vld [vmem:[%s3529 + $0x8] sm:$0xff]
        %v3532 = vld [vmem:[%s3529 + $0x10] sm:$0xff]
        %v3533 = vld [vmem:[%s3529 + $0x18] sm:$0xff]
        %v3534 = vld [vmem:[%s3529 + $0x20] sm:$0xff]
        %v3535 = vld [vmem:[%s3529 + $0x28] sm:$0xff]
        %v3536 = vld [vmem:[%s3529 + $0x30] sm:$0xff]
        %v3537 = vld [vmem:[%s3529 + $0x38] sm:$0xff]
        %v3539 = vsel %vm3098, %v3521, 0
        %v3542 = vsel %vm3098, %v3522, 0
        %v3545 = vsel %vm3098, %v3523, 0
        %v3548 = vsel %vm3098, %v3524, 0
        %v3551 = vsel %vm3098, %v3525, 0
        %v3554 = vsel %vm3098, %v3526, 0
        %v3557 = vsel %vm3098, %v3527, 0
        %v3560 = vsel %vm3098, %v3528, 0
        %3562 = vmatpush.msra.mxu0 0.0
        %3563 = vmatpush.msra.mxu0 0.0
        %3564 = vmatpush.msra.mxu0 0.0
        %3565 = vmatpush.msra.mxu0 0.0
        %3566 = vmatpush.msra.mxu0 0.0
        %3567 = vmatpush.msra.mxu0 0.0
        %3568 = vmatpush.msra.mxu0 0.0
        %3569 = vmatpush.msra.mxu0 0.0
        %3570 = vmatpush.msra.mxu0 %v3537
        %3571 = vmatpush.msra.mxu0 %v3536
        %3572 = vmatpush.msra.mxu0 %v3535
        %3573 = vmatpush.msra.mxu0 %v3534
        %3574 = vmatpush.msra.mxu0 %v3533
        %3575 = vmatpush.msra.mxu0 %v3532
        %3576 = vmatpush.msra.mxu0 %v3531
        %3577 = vmatpush.msra.mxu0 %v3530
        %3578 = vmatmul.f32.gmra.mxu0 %v3539
        %v3579 = vpop.f32.mrf.mxu0
        %v3580 = vadd.f32 0.0, %v3579
        %3581 = vmatmul.f32.gmra.mxu0 %v3542
        %v3582 = vpop.f32.mrf.mxu0
        %v3583 = vadd.f32 0.0, %v3582
        %3584 = vmatmul.f32.gmra.mxu0 %v3545
        %v3585 = vpop.f32.mrf.mxu0
        %v3586 = vadd.f32 0.0, %v3585
        %3587 = vmatmul.f32.gmra.mxu0 %v3548
        %v3588 = vpop.f32.mrf.mxu0
        %v3589 = vadd.f32 0.0, %v3588
        %3590 = vmatmul.f32.gmra.mxu0 %v3551
        %v3591 = vpop.f32.mrf.mxu0
        %v3592 = vadd.f32 0.0, %v3591
        %3593 = vmatmul.f32.gmra.mxu0 %v3554
        %v3594 = vpop.f32.mrf.mxu0
        %v3595 = vadd.f32 0.0, %v3594
        %3596 = vmatmul.f32.gmra.mxu0 %v3557
        %v3597 = vpop.f32.mrf.mxu0
        %v3598 = vadd.f32 0.0, %v3597
        %3599 = vmatmul.f32.gmra.mxu0 %v3560
        %v3600 = vpop.f32.mrf.mxu0
        %v3601 = vadd.f32 0.0, %v3600
        %3602 = vdwg.mxu0
        %v3603 = vadd.f32 %v3513, %v3580
        %v3604 = vadd.f32 %v3514, %v3583
        %v3605 = vadd.f32 %v3515, %v3586
        %v3606 = vadd.f32 %v3516, %v3589
        %v3607 = vadd.f32 %v3517, %v3592
        %v3608 = vadd.f32 %v3518, %v3595
        %v3609 = vadd.f32 %v3519, %v3598
        %v3610 = vadd.f32 %v3520, %v3601
        %v3611 = vld [vmem:[%s3239 + $0x1] sm:$0xff]
        %v3612 = vld [vmem:[%s3239 + $0x11] sm:$0xff]
        %v3613 = vld [vmem:[%s3239 + $0x21] sm:$0xff]
        %v3614 = vld [vmem:[%s3239 + $0x31] sm:$0xff]
        %v3615 = vld [vmem:[%s3239 + $0x41] sm:$0xff]
        %v3616 = vld [vmem:[%s3239 + $0x51] sm:$0xff]
        %v3617 = vld [vmem:[%s3239 + $0x61] sm:$0xff]
        %v3618 = vld [vmem:[%s3239 + $0x71] sm:$0xff]
        %s3619 = scalar_lea.vmem [#allocation11], 256
        %v3620 = vld [vmem:[%s3619] sm:$0xff]
        %v3621 = vld [vmem:[%s3619 + $0x8] sm:$0xff]
        %v3622 = vld [vmem:[%s3619 + $0x10] sm:$0xff]
        %v3623 = vld [vmem:[%s3619 + $0x18] sm:$0xff]
        %v3624 = vld [vmem:[%s3619 + $0x20] sm:$0xff]
        %v3625 = vld [vmem:[%s3619 + $0x28] sm:$0xff]
        %v3626 = vld [vmem:[%s3619 + $0x30] sm:$0xff]
        %v3627 = vld [vmem:[%s3619 + $0x38] sm:$0xff]
        %v3629 = vsel %vm3098, %v3611, 0
        %v3632 = vsel %vm3098, %v3612, 0
        %v3635 = vsel %vm3098, %v3613, 0
        %v3638 = vsel %vm3098, %v3614, 0
        %v3641 = vsel %vm3098, %v3615, 0
        %v3644 = vsel %vm3098, %v3616, 0
        %v3647 = vsel %vm3098, %v3617, 0
        %v3650 = vsel %vm3098, %v3618, 0
        %3652 = vmatpush.msra.mxu0 0.0
        %3653 = vmatpush.msra.mxu0 0.0
        %3654 = vmatpush.msra.mxu0 0.0
        %3655 = vmatpush.msra.mxu0 0.0
        %3656 = vmatpush.msra.mxu0 0.0
        %3657 = vmatpush.msra.mxu0 0.0
        %3658 = vmatpush.msra.mxu0 0.0
        %3659 = vmatpush.msra.mxu0 0.0
        %3660 = vmatpush.msra.mxu0 %v3627
        %3661 = vmatpush.msra.mxu0 %v3626
        %3662 = vmatpush.msra.mxu0 %v3625
        %3663 = vmatpush.msra.mxu0 %v3624
        %3664 = vmatpush.msra.mxu0 %v3623
        %3665 = vmatpush.msra.mxu0 %v3622
        %3666 = vmatpush.msra.mxu0 %v3621
        %3667 = vmatpush.msra.mxu0 %v3620
        %3668 = vmatmul.f32.gmra.mxu0 %v3629
        %v3669 = vpop.f32.mrf.mxu0
        %v3670 = vadd.f32 0.0, %v3669
        %3671 = vmatmul.f32.gmra.mxu0 %v3632
        %v3672 = vpop.f32.mrf.mxu0
        %v3673 = vadd.f32 0.0, %v3672
        %3674 = vmatmul.f32.gmra.mxu0 %v3635
        %v3675 = vpop.f32.mrf.mxu0
        %v3676 = vadd.f32 0.0, %v3675
        %3677 = vmatmul.f32.gmra.mxu0 %v3638
        %v3678 = vpop.f32.mrf.mxu0
        %v3679 = vadd.f32 0.0, %v3678
        %3680 = vmatmul.f32.gmra.mxu0 %v3641
        %v3681 = vpop.f32.mrf.mxu0
        %v3682 = vadd.f32 0.0, %v3681
        %3683 = vmatmul.f32.gmra.mxu0 %v3644
        %v3684 = vpop.f32.mrf.mxu0
        %v3685 = vadd.f32 0.0, %v3684
        %3686 = vmatmul.f32.gmra.mxu0 %v3647
        %v3687 = vpop.f32.mrf.mxu0
        %v3688 = vadd.f32 0.0, %v3687
        %3689 = vmatmul.f32.gmra.mxu0 %v3650
        %v3690 = vpop.f32.mrf.mxu0
        %v3691 = vadd.f32 0.0, %v3690
        %3692 = vdwg.mxu0
        %v3693 = vadd.f32 %v3603, %v3670
        %v3694 = vadd.f32 %v3604, %v3673
        %v3695 = vadd.f32 %v3605, %v3676
        %v3696 = vadd.f32 %v3606, %v3679
        %v3697 = vadd.f32 %v3607, %v3682
        %v3698 = vadd.f32 %v3608, %v3685
        %v3699 = vadd.f32 %v3609, %v3688
        %v3700 = vadd.f32 %v3610, %v3691
        %v3701 = vld [vmem:[%s3239 + $0x2] sm:$0xff]
        %v3702 = vld [vmem:[%s3239 + $0x12] sm:$0xff]
        %v3703 = vld [vmem:[%s3239 + $0x22] sm:$0xff]
        %v3704 = vld [vmem:[%s3239 + $0x32] sm:$0xff]
        %v3705 = vld [vmem:[%s3239 + $0x42] sm:$0xff]
        %v3706 = vld [vmem:[%s3239 + $0x52] sm:$0xff]
        %v3707 = vld [vmem:[%s3239 + $0x62] sm:$0xff]
        %v3708 = vld [vmem:[%s3239 + $0x72] sm:$0xff]
        %s3709 = scalar_lea.vmem [#allocation11], 320
        %v3710 = vld [vmem:[%s3709] sm:$0xff]
        %v3711 = vld [vmem:[%s3709 + $0x8] sm:$0xff]
        %v3712 = vld [vmem:[%s3709 + $0x10] sm:$0xff]
        %v3713 = vld [vmem:[%s3709 + $0x18] sm:$0xff]
        %v3714 = vld [vmem:[%s3709 + $0x20] sm:$0xff]
        %v3715 = vld [vmem:[%s3709 + $0x28] sm:$0xff]
        %v3716 = vld [vmem:[%s3709 + $0x30] sm:$0xff]
        %v3717 = vld [vmem:[%s3709 + $0x38] sm:$0xff]
        %v3719 = vsel %vm3098, %v3701, 0
        %v3722 = vsel %vm3098, %v3702, 0
        %v3725 = vsel %vm3098, %v3703, 0
        %v3728 = vsel %vm3098, %v3704, 0
        %v3731 = vsel %vm3098, %v3705, 0
        %v3734 = vsel %vm3098, %v3706, 0
        %v3737 = vsel %vm3098, %v3707, 0
        %v3740 = vsel %vm3098, %v3708, 0
        %3742 = vmatpush.msra.mxu0 0.0
        %3743 = vmatpush.msra.mxu0 0.0
        %3744 = vmatpush.msra.mxu0 0.0
        %3745 = vmatpush.msra.mxu0 0.0
        %3746 = vmatpush.msra.mxu0 0.0
        %3747 = vmatpush.msra.mxu0 0.0
        %3748 = vmatpush.msra.mxu0 0.0
        %3749 = vmatpush.msra.mxu0 0.0
        %3750 = vmatpush.msra.mxu0 %v3717
        %3751 = vmatpush.msra.mxu0 %v3716
        %3752 = vmatpush.msra.mxu0 %v3715
        %3753 = vmatpush.msra.mxu0 %v3714
        %3754 = vmatpush.msra.mxu0 %v3713
        %3755 = vmatpush.msra.mxu0 %v3712
        %3756 = vmatpush.msra.mxu0 %v3711
        %3757 = vmatpush.msra.mxu0 %v3710
        %3758 = vmatmul.f32.gmra.mxu0 %v3719
        %v3759 = vpop.f32.mrf.mxu0
        %v3760 = vadd.f32 0.0, %v3759
        %3761 = vmatmul.f32.gmra.mxu0 %v3722
        %v3762 = vpop.f32.mrf.mxu0
        %v3763 = vadd.f32 0.0, %v3762
        %3764 = vmatmul.f32.gmra.mxu0 %v3725
        %v3765 = vpop.f32.mrf.mxu0
        %v3766 = vadd.f32 0.0, %v3765
        %3767 = vmatmul.f32.gmra.mxu0 %v3728
        %v3768 = vpop.f32.mrf.mxu0
        %v3769 = vadd.f32 0.0, %v3768
        %3770 = vmatmul.f32.gmra.mxu0 %v3731
        %v3771 = vpop.f32.mrf.mxu0
        %v3772 = vadd.f32 0.0, %v3771
        %3773 = vmatmul.f32.gmra.mxu0 %v3734
        %v3774 = vpop.f32.mrf.mxu0
        %v3775 = vadd.f32 0.0, %v3774
        %3776 = vmatmul.f32.gmra.mxu0 %v3737
        %v3777 = vpop.f32.mrf.mxu0
        %v3778 = vadd.f32 0.0, %v3777
        %3779 = vmatmul.f32.gmra.mxu0 %v3740
        %v3780 = vpop.f32.mrf.mxu0
        %v3781 = vadd.f32 0.0, %v3780
        %3782 = vdwg.mxu0
        %v3783 = vadd.f32 %v3693, %v3760
        %v3784 = vadd.f32 %v3694, %v3763
        %v3785 = vadd.f32 %v3695, %v3766
        %v3786 = vadd.f32 %v3696, %v3769
        %v3787 = vadd.f32 %v3697, %v3772
        %v3788 = vadd.f32 %v3698, %v3775
        %v3789 = vadd.f32 %v3699, %v3778
        %v3790 = vadd.f32 %v3700, %v3781
        %s3791 = scalar_lea.vmem [#allocation4], 32
        %v3792 = vld [vmem:[%s3791] sm:$0xff]
        %v3793 = vld [vmem:[%s3791 + $0x10] sm:$0xff]
        %v3794 = vld [vmem:[%s3791 + $0x20] sm:$0xff]
        %v3795 = vld [vmem:[%s3791 + $0x30] sm:$0xff]
        %v3796 = vld [vmem:[%s3791 + $0x40] sm:$0xff]
        %v3797 = vld [vmem:[%s3791 + $0x50] sm:$0xff]
        %v3798 = vld [vmem:[%s3791 + $0x60] sm:$0xff]
        %v3799 = vld [vmem:[%s3791 + $0x70] sm:$0xff]
        %s3800 = scalar_lea.vmem [#allocation11], 384
        %v3801 = vld [vmem:[%s3800] sm:$0xff]
        %v3802 = vld [vmem:[%s3800 + $0x8] sm:$0xff]
        %v3803 = vld [vmem:[%s3800 + $0x10] sm:$0xff]
        %v3804 = vld [vmem:[%s3800 + $0x18] sm:$0xff]
        %v3805 = vld [vmem:[%s3800 + $0x20] sm:$0xff]
        %v3806 = vld [vmem:[%s3800 + $0x28] sm:$0xff]
        %v3807 = vld [vmem:[%s3800 + $0x30] sm:$0xff]
        %v3808 = vld [vmem:[%s3800 + $0x38] sm:$0xff]
        %v3810 = vsel %vm3098, %v3792, 0
        %v3813 = vsel %vm3098, %v3793, 0
        %v3816 = vsel %vm3098, %v3794, 0
        %v3819 = vsel %vm3098, %v3795, 0
        %v3822 = vsel %vm3098, %v3796, 0
        %v3825 = vsel %vm3098, %v3797, 0
        %v3828 = vsel %vm3098, %v3798, 0
        %v3831 = vsel %vm3098, %v3799, 0
        %3833 = vmatpush.msra.mxu0 0.0
        %3834 = vmatpush.msra.mxu0 0.0
        %3835 = vmatpush.msra.mxu0 0.0
        %3836 = vmatpush.msra.mxu0 0.0
        %3837 = vmatpush.msra.mxu0 0.0
        %3838 = vmatpush.msra.mxu0 0.0
        %3839 = vmatpush.msra.mxu0 0.0
        %3840 = vmatpush.msra.mxu0 0.0
        %3841 = vmatpush.msra.mxu0 %v3808
        %3842 = vmatpush.msra.mxu0 %v3807
        %3843 = vmatpush.msra.mxu0 %v3806
        %3844 = vmatpush.msra.mxu0 %v3805
        %3845 = vmatpush.msra.mxu0 %v3804
        %3846 = vmatpush.msra.mxu0 %v3803
        %3847 = vmatpush.msra.mxu0 %v3802
        %3848 = vmatpush.msra.mxu0 %v3801
        %3849 = vmatmul.f32.gmra.mxu0 %v3810
        %v3850 = vpop.f32.mrf.mxu0
        %v3851 = vadd.f32 0.0, %v3850
        %3852 = vmatmul.f32.gmra.mxu0 %v3813
        %v3853 = vpop.f32.mrf.mxu0
        %v3854 = vadd.f32 0.0, %v3853
        %3855 = vmatmul.f32.gmra.mxu0 %v3816
        %v3856 = vpop.f32.mrf.mxu0
        %v3857 = vadd.f32 0.0, %v3856
        %3858 = vmatmul.f32.gmra.mxu0 %v3819
        %v3859 = vpop.f32.mrf.mxu0
        %v3860 = vadd.f32 0.0, %v3859
        %3861 = vmatmul.f32.gmra.mxu0 %v3822
        %v3862 = vpop.f32.mrf.mxu0
        %v3863 = vadd.f32 0.0, %v3862
        %3864 = vmatmul.f32.gmra.mxu0 %v3825
        %v3865 = vpop.f32.mrf.mxu0
        %v3866 = vadd.f32 0.0, %v3865
        %3867 = vmatmul.f32.gmra.mxu0 %v3828
        %v3868 = vpop.f32.mrf.mxu0
        %v3869 = vadd.f32 0.0, %v3868
        %3870 = vmatmul.f32.gmra.mxu0 %v3831
        %v3871 = vpop.f32.mrf.mxu0
        %v3872 = vadd.f32 0.0, %v3871
        %3873 = vdwg.mxu0
        %v3874 = vadd.f32 %v3783, %v3851
        %v3875 = vadd.f32 %v3784, %v3854
        %v3876 = vadd.f32 %v3785, %v3857
        %v3877 = vadd.f32 %v3786, %v3860
        %v3878 = vadd.f32 %v3787, %v3863
        %v3879 = vadd.f32 %v3788, %v3866
        %v3880 = vadd.f32 %v3789, %v3869
        %v3881 = vadd.f32 %v3790, %v3872
        %v3882 = vld [vmem:[%s3791 + $0x1] sm:$0xff]
        %v3883 = vld [vmem:[%s3791 + $0x11] sm:$0xff]
        %v3884 = vld [vmem:[%s3791 + $0x21] sm:$0xff]
        %v3885 = vld [vmem:[%s3791 + $0x31] sm:$0xff]
        %v3886 = vld [vmem:[%s3791 + $0x41] sm:$0xff]
        %v3887 = vld [vmem:[%s3791 + $0x51] sm:$0xff]
        %v3888 = vld [vmem:[%s3791 + $0x61] sm:$0xff]
        %v3889 = vld [vmem:[%s3791 + $0x71] sm:$0xff]
        %s3890 = scalar_lea.vmem [#allocation11], 448
        %v3891 = vld [vmem:[%s3890] sm:$0xff]
        %v3892 = vld [vmem:[%s3890 + $0x8] sm:$0xff]
        %v3893 = vld [vmem:[%s3890 + $0x10] sm:$0xff]
        %v3894 = vld [vmem:[%s3890 + $0x18] sm:$0xff]
        %v3895 = vld [vmem:[%s3890 + $0x20] sm:$0xff]
        %v3896 = vld [vmem:[%s3890 + $0x28] sm:$0xff]
        %v3897 = vld [vmem:[%s3890 + $0x30] sm:$0xff]
        %v3898 = vld [vmem:[%s3890 + $0x38] sm:$0xff]
        %v3900 = vsel %vm3098, %v3882, 0
        %v3903 = vsel %vm3098, %v3883, 0
        %v3906 = vsel %vm3098, %v3884, 0
        %v3909 = vsel %vm3098, %v3885, 0
        %v3912 = vsel %vm3098, %v3886, 0
        %v3915 = vsel %vm3098, %v3887, 0
        %v3918 = vsel %vm3098, %v3888, 0
        %v3921 = vsel %vm3098, %v3889, 0
        %3923 = vmatpush.msra.mxu0 0.0
        %3924 = vmatpush.msra.mxu0 0.0
        %3925 = vmatpush.msra.mxu0 0.0
        %3926 = vmatpush.msra.mxu0 0.0
        %3927 = vmatpush.msra.mxu0 0.0
        %3928 = vmatpush.msra.mxu0 0.0
        %3929 = vmatpush.msra.mxu0 0.0
        %3930 = vmatpush.msra.mxu0 0.0
        %3931 = vmatpush.msra.mxu0 %v3898
        %3932 = vmatpush.msra.mxu0 %v3897
        %3933 = vmatpush.msra.mxu0 %v3896
        %3934 = vmatpush.msra.mxu0 %v3895
        %3935 = vmatpush.msra.mxu0 %v3894
        %3936 = vmatpush.msra.mxu0 %v3893
        %3937 = vmatpush.msra.mxu0 %v3892
        %3938 = vmatpush.msra.mxu0 %v3891
        %3939 = vmatmul.f32.gmra.mxu0 %v3900
        %v3940 = vpop.f32.mrf.mxu0
        %v3941 = vadd.f32 0.0, %v3940
        %3942 = vmatmul.f32.gmra.mxu0 %v3903
        %v3943 = vpop.f32.mrf.mxu0
        %v3944 = vadd.f32 0.0, %v3943
        %3945 = vmatmul.f32.gmra.mxu0 %v3906
        %v3946 = vpop.f32.mrf.mxu0
        %v3947 = vadd.f32 0.0, %v3946
        %3948 = vmatmul.f32.gmra.mxu0 %v3909
        %v3949 = vpop.f32.mrf.mxu0
        %v3950 = vadd.f32 0.0, %v3949
        %3951 = vmatmul.f32.gmra.mxu0 %v3912
        %v3952 = vpop.f32.mrf.mxu0
        %v3953 = vadd.f32 0.0, %v3952
        %3954 = vmatmul.f32.gmra.mxu0 %v3915
        %v3955 = vpop.f32.mrf.mxu0
        %v3956 = vadd.f32 0.0, %v3955
        %3957 = vmatmul.f32.gmra.mxu0 %v3918
        %v3958 = vpop.f32.mrf.mxu0
        %v3959 = vadd.f32 0.0, %v3958
        %3960 = vmatmul.f32.gmra.mxu0 %v3921
        %v3961 = vpop.f32.mrf.mxu0
        %v3962 = vadd.f32 0.0, %v3961
        %3963 = vdwg.mxu0
        %v3964 = vadd.f32 %v3874, %v3941
        %v3965 = vadd.f32 %v3875, %v3944
        %v3966 = vadd.f32 %v3876, %v3947
        %v3967 = vadd.f32 %v3877, %v3950
        %v3968 = vadd.f32 %v3878, %v3953
        %v3969 = vadd.f32 %v3879, %v3956
        %v3970 = vadd.f32 %v3880, %v3959
        %v3971 = vadd.f32 %v3881, %v3962
        %v3972 = vld [vmem:[%s3791 + $0x2] sm:$0xff]
        %v3973 = vld [vmem:[%s3791 + $0x12] sm:$0xff]
        %v3974 = vld [vmem:[%s3791 + $0x22] sm:$0xff]
        %v3975 = vld [vmem:[%s3791 + $0x32] sm:$0xff]
        %v3976 = vld [vmem:[%s3791 + $0x42] sm:$0xff]
        %v3977 = vld [vmem:[%s3791 + $0x52] sm:$0xff]
        %v3978 = vld [vmem:[%s3791 + $0x62] sm:$0xff]
        %v3979 = vld [vmem:[%s3791 + $0x72] sm:$0xff]
        %s3980 = scalar_lea.vmem [#allocation11], 512
        %v3981 = vld [vmem:[%s3980] sm:$0xff]
        %v3982 = vld [vmem:[%s3980 + $0x8] sm:$0xff]
        %v3983 = vld [vmem:[%s3980 + $0x10] sm:$0xff]
        %v3984 = vld [vmem:[%s3980 + $0x18] sm:$0xff]
        %v3985 = vld [vmem:[%s3980 + $0x20] sm:$0xff]
        %v3986 = vld [vmem:[%s3980 + $0x28] sm:$0xff]
        %v3987 = vld [vmem:[%s3980 + $0x30] sm:$0xff]
        %v3988 = vld [vmem:[%s3980 + $0x38] sm:$0xff]
        %v3990 = vsel %vm3098, %v3972, 0
        %v3993 = vsel %vm3098, %v3973, 0
        %v3996 = vsel %vm3098, %v3974, 0
        %v3999 = vsel %vm3098, %v3975, 0
        %v4002 = vsel %vm3098, %v3976, 0
        %v4005 = vsel %vm3098, %v3977, 0
        %v4008 = vsel %vm3098, %v3978, 0
        %v4011 = vsel %vm3098, %v3979, 0
        %4013 = vmatpush.msra.mxu0 0.0
        %4014 = vmatpush.msra.mxu0 0.0
        %4015 = vmatpush.msra.mxu0 0.0
        %4016 = vmatpush.msra.mxu0 0.0
        %4017 = vmatpush.msra.mxu0 0.0
        %4018 = vmatpush.msra.mxu0 0.0
        %4019 = vmatpush.msra.mxu0 0.0
        %4020 = vmatpush.msra.mxu0 0.0
        %4021 = vmatpush.msra.mxu0 %v3988
        %4022 = vmatpush.msra.mxu0 %v3987
        %4023 = vmatpush.msra.mxu0 %v3986
        %4024 = vmatpush.msra.mxu0 %v3985
        %4025 = vmatpush.msra.mxu0 %v3984
        %4026 = vmatpush.msra.mxu0 %v3983
        %4027 = vmatpush.msra.mxu0 %v3982
        %4028 = vmatpush.msra.mxu0 %v3981
        %4029 = vmatmul.f32.gmra.mxu0 %v3990
        %v4030 = vpop.f32.mrf.mxu0
        %v4031 = vadd.f32 0.0, %v4030
        %4032 = vmatmul.f32.gmra.mxu0 %v3993
        %v4033 = vpop.f32.mrf.mxu0
        %v4034 = vadd.f32 0.0, %v4033
        %4035 = vmatmul.f32.gmra.mxu0 %v3996
        %v4036 = vpop.f32.mrf.mxu0
        %v4037 = vadd.f32 0.0, %v4036
        %4038 = vmatmul.f32.gmra.mxu0 %v3999
        %v4039 = vpop.f32.mrf.mxu0
        %v4040 = vadd.f32 0.0, %v4039
        %4041 = vmatmul.f32.gmra.mxu0 %v4002
        %v4042 = vpop.f32.mrf.mxu0
        %v4043 = vadd.f32 0.0, %v4042
        %4044 = vmatmul.f32.gmra.mxu0 %v4005
        %v4045 = vpop.f32.mrf.mxu0
        %v4046 = vadd.f32 0.0, %v4045
        %4047 = vmatmul.f32.gmra.mxu0 %v4008
        %v4048 = vpop.f32.mrf.mxu0
        %v4049 = vadd.f32 0.0, %v4048
        %4050 = vmatmul.f32.gmra.mxu0 %v4011
        %v4051 = vpop.f32.mrf.mxu0
        %v4052 = vadd.f32 0.0, %v4051
        %4053 = vdwg.mxu0
        %v4054 = vadd.f32 %v3964, %v4031
        %v4055 = vadd.f32 %v3965, %v4034
        %v4056 = vadd.f32 %v3966, %v4037
        %v4057 = vadd.f32 %v3967, %v4040
        %v4058 = vadd.f32 %v3968, %v4043
        %v4059 = vadd.f32 %v3969, %v4046
        %v4060 = vadd.f32 %v3970, %v4049
        %v4061 = vadd.f32 %v3971, %v4052
        %v4062 = vmax.f32 %v4054, 0.0
        %v4063 = vmax.f32 %v4055, 0.0
        %v4064 = vmax.f32 %v4056, 0.0
        %v4065 = vmax.f32 %v4057, 0.0
        %v4066 = vmax.f32 %v4058, 0.0
        %v4067 = vmax.f32 %v4059, 0.0
        %v4068 = vmax.f32 %v4060, 0.0
        %v4069 = vmax.f32 %v4061, 0.0
        %4070 = vst [vmem:[#allocation5] sm:$0xff] %v4062
        %4071 = vst [vmem:[#allocation5 + $0x8] sm:$0xff] %v4063
        %4072 = vst [vmem:[#allocation5 + $0x10] sm:$0xff] %v4064
        %4073 = vst [vmem:[#allocation5 + $0x18] sm:$0xff] %v4065
        %4074 = vst [vmem:[#allocation5 + $0x20] sm:$0xff] %v4066
        %4075 = vst [vmem:[#allocation5 + $0x28] sm:$0xff] %v4067
        %4076 = vst [vmem:[#allocation5 + $0x30] sm:$0xff] %v4068
        %4077 = vst [vmem:[#allocation5 + $0x38] sm:$0xff] %v4069
        %v4078 = vld [vmem:[#allocation5] ss:$2 sm:$0xf]
        %s4079 = scalar_lea.vmem [#allocation5], 8
        %v4080 = vld [vmem:[%s4079] ss:$2 sm:$0xf]
        %s4081 = scalar_lea.vmem [#allocation5], 16
        %v4082 = vld [vmem:[%s4081] ss:$2 sm:$0xf]
        %s4083 = scalar_lea.vmem [#allocation5], 24
        %v4084 = vld [vmem:[%s4083] ss:$2 sm:$0xf]
        %s4085 = scalar_lea.vmem [#allocation5], 32
        %v4086 = vld [vmem:[%s4085] ss:$2 sm:$0xf]
        %s4087 = scalar_lea.vmem [#allocation5], 40
        %v4088 = vld [vmem:[%s4087] ss:$2 sm:$0xf]
        %s4089 = scalar_lea.vmem [#allocation5], 48
        %v4090 = vld [vmem:[%s4089] ss:$2 sm:$0xf]
        %s4091 = scalar_lea.vmem [#allocation5], 56
        %v4092 = vld [vmem:[%s4091] ss:$2 sm:$0xf]
        %s4093 = scalar_lea.vmem [#allocation5], 1
        %v4094 = vld [vmem:[%s4093] ss:$2 sm:$0xf]
        %s4095 = scalar_lea.vmem [#allocation5], 9
        %v4096 = vld [vmem:[%s4095] ss:$2 sm:$0xf]
        %s4097 = scalar_lea.vmem [#allocation5], 17
        %v4098 = vld [vmem:[%s4097] ss:$2 sm:$0xf]
        %s4099 = scalar_lea.vmem [#allocation5], 25
        %v4100 = vld [vmem:[%s4099] ss:$2 sm:$0xf]
        %s4101 = scalar_lea.vmem [#allocation5], 33
        %v4102 = vld [vmem:[%s4101] ss:$2 sm:$0xf]
        %s4103 = scalar_lea.vmem [#allocation5], 41
        %v4104 = vld [vmem:[%s4103] ss:$2 sm:$0xf]
        %s4105 = scalar_lea.vmem [#allocation5], 49
        %v4106 = vld [vmem:[%s4105] ss:$2 sm:$0xf]
        %s4107 = scalar_lea.vmem [#allocation5], 57
        %v4108 = vld [vmem:[%s4107] ss:$2 sm:$0xf]
        %v4109 = vmax.f32 %v4078, %v4094
        %v4110 = vmax.f32 %v4080, %v4096
        %v4111 = vmax.f32 %v4082, %v4098
        %v4112 = vmax.f32 %v4084, %v4100
        %v4113 = vmax.f32 %v4086, %v4102
        %v4114 = vmax.f32 %v4088, %v4104
        %v4115 = vmax.f32 %v4090, %v4106
        %v4116 = vmax.f32 %v4092, %v4108
        %v4117 = vmax.f32 %v4109, %v4110
        %v4118 = vmax.f32 %v4111, %v4112
        %v4119 = vmax.f32 %v4113, %v4114
        %v4120 = vmax.f32 %v4115, %v4116
        %v4121 = vld [vmem:[#allocation15] sm:$0x3]
        %v4122 = vld [vmem:[#allocation14] sm:$0xff]
        %v4123 = vld [vmem:[#allocation14 + $0x8] sm:$0xff]
        %v4124 = vld [vmem:[#allocation14 + $0x10] sm:$0xff]
        %v4125 = vld [vmem:[#allocation14 + $0x18] sm:$0xff]
        %v4126 = vld [vmem:[#allocation14 + $0x20] sm:$0xff]
        %v4127 = vld [vmem:[#allocation14 + $0x28] sm:$0xff]
        %v4128 = vld [vmem:[#allocation14 + $0x30] sm:$0xff]
        %v4129 = vld [vmem:[#allocation14 + $0x38] sm:$0xff]
        %v4130 = vld [vmem:[#allocation14 + $0x40] sm:$0xff]
        %v4131 = vld [vmem:[#allocation14 + $0x48] sm:$0xff]
        %v4132 = vld [vmem:[#allocation14 + $0x50] sm:$0xff]
        %v4133 = vld [vmem:[#allocation14 + $0x58] sm:$0xff]
        %v4134 = vld [vmem:[#allocation14 + $0x60] sm:$0xff]
        %v4135 = vld [vmem:[#allocation14 + $0x68] sm:$0xff]
        %v4136 = vld [vmem:[#allocation14 + $0x70] sm:$0xff]
        %v4137 = vld [vmem:[#allocation14 + $0x78] sm:$0xff]
        %v4138 = vld [vmem:[#allocation14 + $0x80] sm:$0xff]
        %v4139 = vld [vmem:[#allocation14 + $0x88] sm:$0xff]
        %v4140 = vld [vmem:[#allocation14 + $0x90] sm:$0xff]
        %v4141 = vld [vmem:[#allocation14 + $0x98] sm:$0xff]
        %v4142 = vld [vmem:[#allocation14 + $0xa0] sm:$0xff]
        %v4143 = vld [vmem:[#allocation14 + $0xa8] sm:$0xff]
        %v4144 = vld [vmem:[#allocation14 + $0xb0] sm:$0xff]
        %v4145 = vld [vmem:[#allocation14 + $0xb8] sm:$0xff]
        %v4146 = vld [vmem:[#allocation14 + $0xc0] sm:$0xff]
        %v4147 = vld [vmem:[#allocation14 + $0xc8] sm:$0xff]
        %v4148 = vld [vmem:[#allocation14 + $0xd0] sm:$0xff]
        %v4149 = vld [vmem:[#allocation14 + $0xd8] sm:$0xff]
        %v4150 = vld [vmem:[#allocation14 + $0xe0] sm:$0xff]
        %v4151 = vld [vmem:[#allocation14 + $0xe8] sm:$0xff]
        %v4152 = vld [vmem:[#allocation14 + $0xf0] sm:$0xff]
        %v4153 = vld [vmem:[#allocation14 + $0xf8] sm:$0xff]
        %4154 = vmatpush.msra.mxu0 %v4152
        %4155 = vmatpush.msra.mxu0 %v4150
        %4156 = vmatpush.msra.mxu0 %v4148
        %4157 = vmatpush.msra.mxu0 %v4146
        %4158 = vmatpush.msra.mxu0 %v4144
        %4159 = vmatpush.msra.mxu0 %v4142
        %4160 = vmatpush.msra.mxu0 %v4140
        %4161 = vmatpush.msra.mxu0 %v4138
        %4162 = vmatpush.msra.mxu0 %v4136
        %4163 = vmatpush.msra.mxu0 %v4134
        %4164 = vmatpush.msra.mxu0 %v4132
        %4165 = vmatpush.msra.mxu0 %v4130
        %4166 = vmatpush.msra.mxu0 %v4128
        %4167 = vmatpush.msra.mxu0 %v4126
        %4168 = vmatpush.msra.mxu0 %v4124
        %4169 = vmatpush.msra.mxu0 %v4122
        %4170 = vmatmul.f32.gmra.mxu0 %v4117
        %v4171 = vpop.f32.mrf.mxu0
        %v4172 = vadd.f32 0.0, %v4171
        %4173 = vdwg.mxu0
        %4174 = vmatpush.msra.mxu0 %v4153
        %4175 = vmatpush.msra.mxu0 %v4151
        %4176 = vmatpush.msra.mxu0 %v4149
        %4177 = vmatpush.msra.mxu0 %v4147
        %4178 = vmatpush.msra.mxu0 %v4145
        %4179 = vmatpush.msra.mxu0 %v4143
        %4180 = vmatpush.msra.mxu0 %v4141
        %4181 = vmatpush.msra.mxu0 %v4139
        %4182 = vmatpush.msra.mxu0 %v4137
        %4183 = vmatpush.msra.mxu0 %v4135
        %4184 = vmatpush.msra.mxu0 %v4133
        %4185 = vmatpush.msra.mxu0 %v4131
        %4186 = vmatpush.msra.mxu0 %v4129
        %4187 = vmatpush.msra.mxu0 %v4127
        %4188 = vmatpush.msra.mxu0 %v4125
        %4189 = vmatpush.msra.mxu0 %v4123
        %4190 = vmatmul.f32.gmra.mxu0 %v4117
        %v4191 = vpop.f32.mrf.mxu0
        %v4192 = vadd.f32 0.0, %v4191
        %4193 = vdwg.mxu0
        %v4196 = vrot.slane %v4192, 7
        %vm4197 = vcmask 1040384
        %v4198 = vsel %vm4197, %v4172, %v4196
        %v4200 = vadd.f32 %v4121, %v4198
        %s4201 = scalar_lea.vmem [#allocation14], 256
        %v4202 = vld [vmem:[%s4201] sm:$0xff]
        %v4203 = vld [vmem:[%s4201 + $0x8] sm:$0xff]
        %v4204 = vld [vmem:[%s4201 + $0x10] sm:$0xff]
        %v4205 = vld [vmem:[%s4201 + $0x18] sm:$0xff]
        %v4206 = vld [vmem:[%s4201 + $0x20] sm:$0xff]
        %v4207 = vld [vmem:[%s4201 + $0x28] sm:$0xff]
        %v4208 = vld [vmem:[%s4201 + $0x30] sm:$0xff]
        %v4209 = vld [vmem:[%s4201 + $0x38] sm:$0xff]
        %v4210 = vld [vmem:[%s4201 + $0x40] sm:$0xff]
        %v4211 = vld [vmem:[%s4201 + $0x48] sm:$0xff]
        %v4212 = vld [vmem:[%s4201 + $0x50] sm:$0xff]
        %v4213 = vld [vmem:[%s4201 + $0x58] sm:$0xff]
        %v4214 = vld [vmem:[%s4201 + $0x60] sm:$0xff]
        %v4215 = vld [vmem:[%s4201 + $0x68] sm:$0xff]
        %v4216 = vld [vmem:[%s4201 + $0x70] sm:$0xff]
        %v4217 = vld [vmem:[%s4201 + $0x78] sm:$0xff]
        %v4218 = vld [vmem:[%s4201 + $0x80] sm:$0xff]
        %v4219 = vld [vmem:[%s4201 + $0x88] sm:$0xff]
        %v4220 = vld [vmem:[%s4201 + $0x90] sm:$0xff]
        %v4221 = vld [vmem:[%s4201 + $0x98] sm:$0xff]
        %v4222 = vld [vmem:[%s4201 + $0xa0] sm:$0xff]
        %v4223 = vld [vmem:[%s4201 + $0xa8] sm:$0xff]
        %v4224 = vld [vmem:[%s4201 + $0xb0] sm:$0xff]
        %v4225 = vld [vmem:[%s4201 + $0xb8] sm:$0xff]
        %v4226 = vld [vmem:[%s4201 + $0xc0] sm:$0xff]
        %v4227 = vld [vmem:[%s4201 + $0xc8] sm:$0xff]
        %v4228 = vld [vmem:[%s4201 + $0xd0] sm:$0xff]
        %v4229 = vld [vmem:[%s4201 + $0xd8] sm:$0xff]
        %v4230 = vld [vmem:[%s4201 + $0xe0] sm:$0xff]
        %v4231 = vld [vmem:[%s4201 + $0xe8] sm:$0xff]
        %v4232 = vld [vmem:[%s4201 + $0xf0] sm:$0xff]
        %v4233 = vld [vmem:[%s4201 + $0xf8] sm:$0xff]
        %v4235 = vrot.slane %v4117, 1
        %4237 = vmatpush.msra.mxu0 %v4232
        %4238 = vmatpush.msra.mxu0 %v4230
        %4239 = vmatpush.msra.mxu0 %v4228
        %4240 = vmatpush.msra.mxu0 %v4226
        %4241 = vmatpush.msra.mxu0 %v4224
        %4242 = vmatpush.msra.mxu0 %v4222
        %4243 = vmatpush.msra.mxu0 %v4220
        %4244 = vmatpush.msra.mxu0 %v4218
        %4245 = vmatpush.msra.mxu0 %v4216
        %4246 = vmatpush.msra.mxu0 %v4214
        %4247 = vmatpush.msra.mxu0 %v4212
        %4248 = vmatpush.msra.mxu0 %v4210
        %4249 = vmatpush.msra.mxu0 %v4208
        %4250 = vmatpush.msra.mxu0 %v4206
        %4251 = vmatpush.msra.mxu0 %v4204
        %4252 = vmatpush.msra.mxu0 %v4202
        %4253 = vmatmul.f32.gmra.mxu0 %v4235
        %v4254 = vpop.f32.mrf.mxu0
        %v4255 = vadd.f32 0.0, %v4254
        %4256 = vdwg.mxu0
        %4257 = vmatpush.msra.mxu0 %v4233
        %4258 = vmatpush.msra.mxu0 %v4231
        %4259 = vmatpush.msra.mxu0 %v4229
        %4260 = vmatpush.msra.mxu0 %v4227
        %4261 = vmatpush.msra.mxu0 %v4225
        %4262 = vmatpush.msra.mxu0 %v4223
        %4263 = vmatpush.msra.mxu0 %v4221
        %4264 = vmatpush.msra.mxu0 %v4219
        %4265 = vmatpush.msra.mxu0 %v4217
        %4266 = vmatpush.msra.mxu0 %v4215
        %4267 = vmatpush.msra.mxu0 %v4213
        %4268 = vmatpush.msra.mxu0 %v4211
        %4269 = vmatpush.msra.mxu0 %v4209
        %4270 = vmatpush.msra.mxu0 %v4207
        %4271 = vmatpush.msra.mxu0 %v4205
        %4272 = vmatpush.msra.mxu0 %v4203
        %4273 = vmatmul.f32.gmra.mxu0 %v4235
        %v4274 = vpop.f32.mrf.mxu0
        %v4275 = vadd.f32 0.0, %v4274
        %4276 = vdwg.mxu0
        %v4279 = vrot.slane %v4275, 7
        %v4280 = vsel %vm4197, %v4255, %v4279
        %v4282 = vadd.f32 %v4200, %v4280
        %s4283 = scalar_lea.vmem [#allocation14], 512
        %v4284 = vld [vmem:[%s4283] sm:$0xff]
        %v4285 = vld [vmem:[%s4283 + $0x8] sm:$0xff]
        %v4286 = vld [vmem:[%s4283 + $0x10] sm:$0xff]
        %v4287 = vld [vmem:[%s4283 + $0x18] sm:$0xff]
        %v4288 = vld [vmem:[%s4283 + $0x20] sm:$0xff]
        %v4289 = vld [vmem:[%s4283 + $0x28] sm:$0xff]
        %v4290 = vld [vmem:[%s4283 + $0x30] sm:$0xff]
        %v4291 = vld [vmem:[%s4283 + $0x38] sm:$0xff]
        %v4292 = vld [vmem:[%s4283 + $0x40] sm:$0xff]
        %v4293 = vld [vmem:[%s4283 + $0x48] sm:$0xff]
        %v4294 = vld [vmem:[%s4283 + $0x50] sm:$0xff]
        %v4295 = vld [vmem:[%s4283 + $0x58] sm:$0xff]
        %v4296 = vld [vmem:[%s4283 + $0x60] sm:$0xff]
        %v4297 = vld [vmem:[%s4283 + $0x68] sm:$0xff]
        %v4298 = vld [vmem:[%s4283 + $0x70] sm:$0xff]
        %v4299 = vld [vmem:[%s4283 + $0x78] sm:$0xff]
        %v4300 = vld [vmem:[%s4283 + $0x80] sm:$0xff]
        %v4301 = vld [vmem:[%s4283 + $0x88] sm:$0xff]
        %v4302 = vld [vmem:[%s4283 + $0x90] sm:$0xff]
        %v4303 = vld [vmem:[%s4283 + $0x98] sm:$0xff]
        %v4304 = vld [vmem:[%s4283 + $0xa0] sm:$0xff]
        %v4305 = vld [vmem:[%s4283 + $0xa8] sm:$0xff]
        %v4306 = vld [vmem:[%s4283 + $0xb0] sm:$0xff]
        %v4307 = vld [vmem:[%s4283 + $0xb8] sm:$0xff]
        %v4308 = vld [vmem:[%s4283 + $0xc0] sm:$0xff]
        %v4309 = vld [vmem:[%s4283 + $0xc8] sm:$0xff]
        %v4310 = vld [vmem:[%s4283 + $0xd0] sm:$0xff]
        %v4311 = vld [vmem:[%s4283 + $0xd8] sm:$0xff]
        %v4312 = vld [vmem:[%s4283 + $0xe0] sm:$0xff]
        %v4313 = vld [vmem:[%s4283 + $0xe8] sm:$0xff]
        %v4314 = vld [vmem:[%s4283 + $0xf0] sm:$0xff]
        %v4315 = vld [vmem:[%s4283 + $0xf8] sm:$0xff]
        %v4316 = vrot.slane %v4117, 2
        %4318 = vmatpush.msra.mxu0 %v4314
        %4319 = vmatpush.msra.mxu0 %v4312
        %4320 = vmatpush.msra.mxu0 %v4310
        %4321 = vmatpush.msra.mxu0 %v4308
        %4322 = vmatpush.msra.mxu0 %v4306
        %4323 = vmatpush.msra.mxu0 %v4304
        %4324 = vmatpush.msra.mxu0 %v4302
        %4325 = vmatpush.msra.mxu0 %v4300
        %4326 = vmatpush.msra.mxu0 %v4298
        %4327 = vmatpush.msra.mxu0 %v4296
        %4328 = vmatpush.msra.mxu0 %v4294
        %4329 = vmatpush.msra.mxu0 %v4292
        %4330 = vmatpush.msra.mxu0 %v4290
        %4331 = vmatpush.msra.mxu0 %v4288
        %4332 = vmatpush.msra.mxu0 %v4286
        %4333 = vmatpush.msra.mxu0 %v4284
        %4334 = vmatmul.f32.gmra.mxu0 %v4316
        %v4335 = vpop.f32.mrf.mxu0
        %v4336 = vadd.f32 0.0, %v4335
        %4337 = vdwg.mxu0
        %4338 = vmatpush.msra.mxu0 %v4315
        %4339 = vmatpush.msra.mxu0 %v4313
        %4340 = vmatpush.msra.mxu0 %v4311
        %4341 = vmatpush.msra.mxu0 %v4309
        %4342 = vmatpush.msra.mxu0 %v4307
        %4343 = vmatpush.msra.mxu0 %v4305
        %4344 = vmatpush.msra.mxu0 %v4303
        %4345 = vmatpush.msra.mxu0 %v4301
        %4346 = vmatpush.msra.mxu0 %v4299
        %4347 = vmatpush.msra.mxu0 %v4297
        %4348 = vmatpush.msra.mxu0 %v4295
        %4349 = vmatpush.msra.mxu0 %v4293
        %4350 = vmatpush.msra.mxu0 %v4291
        %4351 = vmatpush.msra.mxu0 %v4289
        %4352 = vmatpush.msra.mxu0 %v4287
        %4353 = vmatpush.msra.mxu0 %v4285
        %4354 = vmatmul.f32.gmra.mxu0 %v4316
        %v4355 = vpop.f32.mrf.mxu0
        %v4356 = vadd.f32 0.0, %v4355
        %4357 = vdwg.mxu0
        %v4360 = vrot.slane %v4356, 7
        %v4361 = vsel %vm4197, %v4336, %v4360
        %v4363 = vadd.f32 %v4282, %v4361
        %s4364 = scalar_lea.vmem [#allocation14], 768
        %v4365 = vld [vmem:[%s4364] sm:$0xff]
        %v4366 = vld [vmem:[%s4364 + $0x8] sm:$0xff]
        %v4367 = vld [vmem:[%s4364 + $0x10] sm:$0xff]
        %v4368 = vld [vmem:[%s4364 + $0x18] sm:$0xff]
        %v4369 = vld [vmem:[%s4364 + $0x20] sm:$0xff]
        %v4370 = vld [vmem:[%s4364 + $0x28] sm:$0xff]
        %v4371 = vld [vmem:[%s4364 + $0x30] sm:$0xff]
        %v4372 = vld [vmem:[%s4364 + $0x38] sm:$0xff]
        %v4373 = vld [vmem:[%s4364 + $0x40] sm:$0xff]
        %v4374 = vld [vmem:[%s4364 + $0x48] sm:$0xff]
        %v4375 = vld [vmem:[%s4364 + $0x50] sm:$0xff]
        %v4376 = vld [vmem:[%s4364 + $0x58] sm:$0xff]
        %v4377 = vld [vmem:[%s4364 + $0x60] sm:$0xff]
        %v4378 = vld [vmem:[%s4364 + $0x68] sm:$0xff]
        %v4379 = vld [vmem:[%s4364 + $0x70] sm:$0xff]
        %v4380 = vld [vmem:[%s4364 + $0x78] sm:$0xff]
        %v4381 = vld [vmem:[%s4364 + $0x80] sm:$0xff]
        %v4382 = vld [vmem:[%s4364 + $0x88] sm:$0xff]
        %v4383 = vld [vmem:[%s4364 + $0x90] sm:$0xff]
        %v4384 = vld [vmem:[%s4364 + $0x98] sm:$0xff]
        %v4385 = vld [vmem:[%s4364 + $0xa0] sm:$0xff]
        %v4386 = vld [vmem:[%s4364 + $0xa8] sm:$0xff]
        %v4387 = vld [vmem:[%s4364 + $0xb0] sm:$0xff]
        %v4388 = vld [vmem:[%s4364 + $0xb8] sm:$0xff]
        %v4389 = vld [vmem:[%s4364 + $0xc0] sm:$0xff]
        %v4390 = vld [vmem:[%s4364 + $0xc8] sm:$0xff]
        %v4391 = vld [vmem:[%s4364 + $0xd0] sm:$0xff]
        %v4392 = vld [vmem:[%s4364 + $0xd8] sm:$0xff]
        %v4393 = vld [vmem:[%s4364 + $0xe0] sm:$0xff]
        %v4394 = vld [vmem:[%s4364 + $0xe8] sm:$0xff]
        %v4395 = vld [vmem:[%s4364 + $0xf0] sm:$0xff]
        %v4396 = vld [vmem:[%s4364 + $0xf8] sm:$0xff]
        %v4397 = vrot.slane %v4117, 3
        %4399 = vmatpush.msra.mxu0 %v4395
        %4400 = vmatpush.msra.mxu0 %v4393
        %4401 = vmatpush.msra.mxu0 %v4391
        %4402 = vmatpush.msra.mxu0 %v4389
        %4403 = vmatpush.msra.mxu0 %v4387
        %4404 = vmatpush.msra.mxu0 %v4385
        %4405 = vmatpush.msra.mxu0 %v4383
        %4406 = vmatpush.msra.mxu0 %v4381
        %4407 = vmatpush.msra.mxu0 %v4379
        %4408 = vmatpush.msra.mxu0 %v4377
        %4409 = vmatpush.msra.mxu0 %v4375
        %4410 = vmatpush.msra.mxu0 %v4373
        %4411 = vmatpush.msra.mxu0 %v4371
        %4412 = vmatpush.msra.mxu0 %v4369
        %4413 = vmatpush.msra.mxu0 %v4367
        %4414 = vmatpush.msra.mxu0 %v4365
        %4415 = vmatmul.f32.gmra.mxu0 %v4397
        %v4416 = vpop.f32.mrf.mxu0
        %v4417 = vadd.f32 0.0, %v4416
        %4418 = vdwg.mxu0
        %4419 = vmatpush.msra.mxu0 %v4396
        %4420 = vmatpush.msra.mxu0 %v4394
        %4421 = vmatpush.msra.mxu0 %v4392
        %4422 = vmatpush.msra.mxu0 %v4390
        %4423 = vmatpush.msra.mxu0 %v4388
        %4424 = vmatpush.msra.mxu0 %v4386
        %4425 = vmatpush.msra.mxu0 %v4384
        %4426 = vmatpush.msra.mxu0 %v4382
        %4427 = vmatpush.msra.mxu0 %v4380
        %4428 = vmatpush.msra.mxu0 %v4378
        %4429 = vmatpush.msra.mxu0 %v4376
        %4430 = vmatpush.msra.mxu0 %v4374
        %4431 = vmatpush.msra.mxu0 %v4372
        %4432 = vmatpush.msra.mxu0 %v4370
        %4433 = vmatpush.msra.mxu0 %v4368
        %4434 = vmatpush.msra.mxu0 %v4366
        %4435 = vmatmul.f32.gmra.mxu0 %v4397
        %v4436 = vpop.f32.mrf.mxu0
        %v4437 = vadd.f32 0.0, %v4436
        %4438 = vdwg.mxu0
        %v4441 = vrot.slane %v4437, 7
        %v4442 = vsel %vm4197, %v4417, %v4441
        %v4444 = vadd.f32 %v4363, %v4442
        %s4445 = scalar_lea.vmem [#allocation14], 1024
        %v4446 = vld [vmem:[%s4445] sm:$0xff]
        %v4447 = vld [vmem:[%s4445 + $0x8] sm:$0xff]
        %v4448 = vld [vmem:[%s4445 + $0x10] sm:$0xff]
        %v4449 = vld [vmem:[%s4445 + $0x18] sm:$0xff]
        %v4450 = vld [vmem:[%s4445 + $0x20] sm:$0xff]
        %v4451 = vld [vmem:[%s4445 + $0x28] sm:$0xff]
        %v4452 = vld [vmem:[%s4445 + $0x30] sm:$0xff]
        %v4453 = vld [vmem:[%s4445 + $0x38] sm:$0xff]
        %v4454 = vld [vmem:[%s4445 + $0x40] sm:$0xff]
        %v4455 = vld [vmem:[%s4445 + $0x48] sm:$0xff]
        %v4456 = vld [vmem:[%s4445 + $0x50] sm:$0xff]
        %v4457 = vld [vmem:[%s4445 + $0x58] sm:$0xff]
        %v4458 = vld [vmem:[%s4445 + $0x60] sm:$0xff]
        %v4459 = vld [vmem:[%s4445 + $0x68] sm:$0xff]
        %v4460 = vld [vmem:[%s4445 + $0x70] sm:$0xff]
        %v4461 = vld [vmem:[%s4445 + $0x78] sm:$0xff]
        %v4462 = vld [vmem:[%s4445 + $0x80] sm:$0xff]
        %v4463 = vld [vmem:[%s4445 + $0x88] sm:$0xff]
        %v4464 = vld [vmem:[%s4445 + $0x90] sm:$0xff]
        %v4465 = vld [vmem:[%s4445 + $0x98] sm:$0xff]
        %v4466 = vld [vmem:[%s4445 + $0xa0] sm:$0xff]
        %v4467 = vld [vmem:[%s4445 + $0xa8] sm:$0xff]
        %v4468 = vld [vmem:[%s4445 + $0xb0] sm:$0xff]
        %v4469 = vld [vmem:[%s4445 + $0xb8] sm:$0xff]
        %v4470 = vld [vmem:[%s4445 + $0xc0] sm:$0xff]
        %v4471 = vld [vmem:[%s4445 + $0xc8] sm:$0xff]
        %v4472 = vld [vmem:[%s4445 + $0xd0] sm:$0xff]
        %v4473 = vld [vmem:[%s4445 + $0xd8] sm:$0xff]
        %v4474 = vld [vmem:[%s4445 + $0xe0] sm:$0xff]
        %v4475 = vld [vmem:[%s4445 + $0xe8] sm:$0xff]
        %v4476 = vld [vmem:[%s4445 + $0xf0] sm:$0xff]
        %v4477 = vld [vmem:[%s4445 + $0xf8] sm:$0xff]
        %4478 = vmatpush.msra.mxu0 %v4476
        %4479 = vmatpush.msra.mxu0 %v4474
        %4480 = vmatpush.msra.mxu0 %v4472
        %4481 = vmatpush.msra.mxu0 %v4470
        %4482 = vmatpush.msra.mxu0 %v4468
        %4483 = vmatpush.msra.mxu0 %v4466
        %4484 = vmatpush.msra.mxu0 %v4464
        %4485 = vmatpush.msra.mxu0 %v4462
        %4486 = vmatpush.msra.mxu0 %v4460
        %4487 = vmatpush.msra.mxu0 %v4458
        %4488 = vmatpush.msra.mxu0 %v4456
        %4489 = vmatpush.msra.mxu0 %v4454
        %4490 = vmatpush.msra.mxu0 %v4452
        %4491 = vmatpush.msra.mxu0 %v4450
        %4492 = vmatpush.msra.mxu0 %v4448
        %4493 = vmatpush.msra.mxu0 %v4446
        %4494 = vmatmul.f32.gmra.mxu0 %v4118
        %v4495 = vpop.f32.mrf.mxu0
        %v4496 = vadd.f32 0.0, %v4495
        %4497 = vdwg.mxu0
        %4498 = vmatpush.msra.mxu0 %v4477
        %4499 = vmatpush.msra.mxu0 %v4475
        %4500 = vmatpush.msra.mxu0 %v4473
        %4501 = vmatpush.msra.mxu0 %v4471
        %4502 = vmatpush.msra.mxu0 %v4469
        %4503 = vmatpush.msra.mxu0 %v4467
        %4504 = vmatpush.msra.mxu0 %v4465
        %4505 = vmatpush.msra.mxu0 %v4463
        %4506 = vmatpush.msra.mxu0 %v4461
        %4507 = vmatpush.msra.mxu0 %v4459
        %4508 = vmatpush.msra.mxu0 %v4457
        %4509 = vmatpush.msra.mxu0 %v4455
        %4510 = vmatpush.msra.mxu0 %v4453
        %4511 = vmatpush.msra.mxu0 %v4451
        %4512 = vmatpush.msra.mxu0 %v4449
        %4513 = vmatpush.msra.mxu0 %v4447
        %4514 = vmatmul.f32.gmra.mxu0 %v4118
        %v4515 = vpop.f32.mrf.mxu0
        %v4516 = vadd.f32 0.0, %v4515
        %4517 = vdwg.mxu0
        %v4520 = vrot.slane %v4516, 7
        %v4521 = vsel %vm4197, %v4496, %v4520
        %v4523 = vadd.f32 %v4444, %v4521
        %s4524 = scalar_lea.vmem [#allocation14], 1280
        %v4525 = vld [vmem:[%s4524] sm:$0xff]
        %v4526 = vld [vmem:[%s4524 + $0x8] sm:$0xff]
        %v4527 = vld [vmem:[%s4524 + $0x10] sm:$0xff]
        %v4528 = vld [vmem:[%s4524 + $0x18] sm:$0xff]
        %v4529 = vld [vmem:[%s4524 + $0x20] sm:$0xff]
        %v4530 = vld [vmem:[%s4524 + $0x28] sm:$0xff]
        %v4531 = vld [vmem:[%s4524 + $0x30] sm:$0xff]
        %v4532 = vld [vmem:[%s4524 + $0x38] sm:$0xff]
        %v4533 = vld [vmem:[%s4524 + $0x40] sm:$0xff]
        %v4534 = vld [vmem:[%s4524 + $0x48] sm:$0xff]
        %v4535 = vld [vmem:[%s4524 + $0x50] sm:$0xff]
        %v4536 = vld [vmem:[%s4524 + $0x58] sm:$0xff]
        %v4537 = vld [vmem:[%s4524 + $0x60] sm:$0xff]
        %v4538 = vld [vmem:[%s4524 + $0x68] sm:$0xff]
        %v4539 = vld [vmem:[%s4524 + $0x70] sm:$0xff]
        %v4540 = vld [vmem:[%s4524 + $0x78] sm:$0xff]
        %v4541 = vld [vmem:[%s4524 + $0x80] sm:$0xff]
        %v4542 = vld [vmem:[%s4524 + $0x88] sm:$0xff]
        %v4543 = vld [vmem:[%s4524 + $0x90] sm:$0xff]
        %v4544 = vld [vmem:[%s4524 + $0x98] sm:$0xff]
        %v4545 = vld [vmem:[%s4524 + $0xa0] sm:$0xff]
        %v4546 = vld [vmem:[%s4524 + $0xa8] sm:$0xff]
        %v4547 = vld [vmem:[%s4524 + $0xb0] sm:$0xff]
        %v4548 = vld [vmem:[%s4524 + $0xb8] sm:$0xff]
        %v4549 = vld [vmem:[%s4524 + $0xc0] sm:$0xff]
        %v4550 = vld [vmem:[%s4524 + $0xc8] sm:$0xff]
        %v4551 = vld [vmem:[%s4524 + $0xd0] sm:$0xff]
        %v4552 = vld [vmem:[%s4524 + $0xd8] sm:$0xff]
        %v4553 = vld [vmem:[%s4524 + $0xe0] sm:$0xff]
        %v4554 = vld [vmem:[%s4524 + $0xe8] sm:$0xff]
        %v4555 = vld [vmem:[%s4524 + $0xf0] sm:$0xff]
        %v4556 = vld [vmem:[%s4524 + $0xf8] sm:$0xff]
        %v4558 = vrot.slane %v4118, 1
        %4560 = vmatpush.msra.mxu0 %v4555
        %4561 = vmatpush.msra.mxu0 %v4553
        %4562 = vmatpush.msra.mxu0 %v4551
        %4563 = vmatpush.msra.mxu0 %v4549
        %4564 = vmatpush.msra.mxu0 %v4547
        %4565 = vmatpush.msra.mxu0 %v4545
        %4566 = vmatpush.msra.mxu0 %v4543
        %4567 = vmatpush.msra.mxu0 %v4541
        %4568 = vmatpush.msra.mxu0 %v4539
        %4569 = vmatpush.msra.mxu0 %v4537
        %4570 = vmatpush.msra.mxu0 %v4535
        %4571 = vmatpush.msra.mxu0 %v4533
        %4572 = vmatpush.msra.mxu0 %v4531
        %4573 = vmatpush.msra.mxu0 %v4529
        %4574 = vmatpush.msra.mxu0 %v4527
        %4575 = vmatpush.msra.mxu0 %v4525
        %4576 = vmatmul.f32.gmra.mxu0 %v4558
        %v4577 = vpop.f32.mrf.mxu0
        %v4578 = vadd.f32 0.0, %v4577
        %4579 = vdwg.mxu0
        %4580 = vmatpush.msra.mxu0 %v4556
        %4581 = vmatpush.msra.mxu0 %v4554
        %4582 = vmatpush.msra.mxu0 %v4552
        %4583 = vmatpush.msra.mxu0 %v4550
        %4584 = vmatpush.msra.mxu0 %v4548
        %4585 = vmatpush.msra.mxu0 %v4546
        %4586 = vmatpush.msra.mxu0 %v4544
        %4587 = vmatpush.msra.mxu0 %v4542
        %4588 = vmatpush.msra.mxu0 %v4540
        %4589 = vmatpush.msra.mxu0 %v4538
        %4590 = vmatpush.msra.mxu0 %v4536
        %4591 = vmatpush.msra.mxu0 %v4534
        %4592 = vmatpush.msra.mxu0 %v4532
        %4593 = vmatpush.msra.mxu0 %v4530
        %4594 = vmatpush.msra.mxu0 %v4528
        %4595 = vmatpush.msra.mxu0 %v4526
        %4596 = vmatmul.f32.gmra.mxu0 %v4558
        %v4597 = vpop.f32.mrf.mxu0
        %v4598 = vadd.f32 0.0, %v4597
        %4599 = vdwg.mxu0
        %v4602 = vrot.slane %v4598, 7
        %v4603 = vsel %vm4197, %v4578, %v4602
        %v4605 = vadd.f32 %v4523, %v4603
        %s4606 = scalar_lea.vmem [#allocation14], 1536
        %v4607 = vld [vmem:[%s4606] sm:$0xff]
        %v4608 = vld [vmem:[%s4606 + $0x8] sm:$0xff]
        %v4609 = vld [vmem:[%s4606 + $0x10] sm:$0xff]
        %v4610 = vld [vmem:[%s4606 + $0x18] sm:$0xff]
        %v4611 = vld [vmem:[%s4606 + $0x20] sm:$0xff]
        %v4612 = vld [vmem:[%s4606 + $0x28] sm:$0xff]
        %v4613 = vld [vmem:[%s4606 + $0x30] sm:$0xff]
        %v4614 = vld [vmem:[%s4606 + $0x38] sm:$0xff]
        %v4615 = vld [vmem:[%s4606 + $0x40] sm:$0xff]
        %v4616 = vld [vmem:[%s4606 + $0x48] sm:$0xff]
        %v4617 = vld [vmem:[%s4606 + $0x50] sm:$0xff]
        %v4618 = vld [vmem:[%s4606 + $0x58] sm:$0xff]
        %v4619 = vld [vmem:[%s4606 + $0x60] sm:$0xff]
        %v4620 = vld [vmem:[%s4606 + $0x68] sm:$0xff]
        %v4621 = vld [vmem:[%s4606 + $0x70] sm:$0xff]
        %v4622 = vld [vmem:[%s4606 + $0x78] sm:$0xff]
        %v4623 = vld [vmem:[%s4606 + $0x80] sm:$0xff]
        %v4624 = vld [vmem:[%s4606 + $0x88] sm:$0xff]
        %v4625 = vld [vmem:[%s4606 + $0x90] sm:$0xff]
        %v4626 = vld [vmem:[%s4606 + $0x98] sm:$0xff]
        %v4627 = vld [vmem:[%s4606 + $0xa0] sm:$0xff]
        %v4628 = vld [vmem:[%s4606 + $0xa8] sm:$0xff]
        %v4629 = vld [vmem:[%s4606 + $0xb0] sm:$0xff]
        %v4630 = vld [vmem:[%s4606 + $0xb8] sm:$0xff]
        %v4631 = vld [vmem:[%s4606 + $0xc0] sm:$0xff]
        %v4632 = vld [vmem:[%s4606 + $0xc8] sm:$0xff]
        %v4633 = vld [vmem:[%s4606 + $0xd0] sm:$0xff]
        %v4634 = vld [vmem:[%s4606 + $0xd8] sm:$0xff]
        %v4635 = vld [vmem:[%s4606 + $0xe0] sm:$0xff]
        %v4636 = vld [vmem:[%s4606 + $0xe8] sm:$0xff]
        %v4637 = vld [vmem:[%s4606 + $0xf0] sm:$0xff]
        %v4638 = vld [vmem:[%s4606 + $0xf8] sm:$0xff]
        %v4639 = vrot.slane %v4118, 2
        %4641 = vmatpush.msra.mxu0 %v4637
        %4642 = vmatpush.msra.mxu0 %v4635
        %4643 = vmatpush.msra.mxu0 %v4633
        %4644 = vmatpush.msra.mxu0 %v4631
        %4645 = vmatpush.msra.mxu0 %v4629
        %4646 = vmatpush.msra.mxu0 %v4627
        %4647 = vmatpush.msra.mxu0 %v4625
        %4648 = vmatpush.msra.mxu0 %v4623
        %4649 = vmatpush.msra.mxu0 %v4621
        %4650 = vmatpush.msra.mxu0 %v4619
        %4651 = vmatpush.msra.mxu0 %v4617
        %4652 = vmatpush.msra.mxu0 %v4615
        %4653 = vmatpush.msra.mxu0 %v4613
        %4654 = vmatpush.msra.mxu0 %v4611
        %4655 = vmatpush.msra.mxu0 %v4609
        %4656 = vmatpush.msra.mxu0 %v4607
        %4657 = vmatmul.f32.gmra.mxu0 %v4639
        %v4658 = vpop.f32.mrf.mxu0
        %v4659 = vadd.f32 0.0, %v4658
        %4660 = vdwg.mxu0
        %4661 = vmatpush.msra.mxu0 %v4638
        %4662 = vmatpush.msra.mxu0 %v4636
        %4663 = vmatpush.msra.mxu0 %v4634
        %4664 = vmatpush.msra.mxu0 %v4632
        %4665 = vmatpush.msra.mxu0 %v4630
        %4666 = vmatpush.msra.mxu0 %v4628
        %4667 = vmatpush.msra.mxu0 %v4626
        %4668 = vmatpush.msra.mxu0 %v4624
        %4669 = vmatpush.msra.mxu0 %v4622
        %4670 = vmatpush.msra.mxu0 %v4620
        %4671 = vmatpush.msra.mxu0 %v4618
        %4672 = vmatpush.msra.mxu0 %v4616
        %4673 = vmatpush.msra.mxu0 %v4614
        %4674 = vmatpush.msra.mxu0 %v4612
        %4675 = vmatpush.msra.mxu0 %v4610
        %4676 = vmatpush.msra.mxu0 %v4608
        %4677 = vmatmul.f32.gmra.mxu0 %v4639
        %v4678 = vpop.f32.mrf.mxu0
        %v4679 = vadd.f32 0.0, %v4678
        %4680 = vdwg.mxu0
        %v4683 = vrot.slane %v4679, 7
        %v4684 = vsel %vm4197, %v4659, %v4683
        %v4686 = vadd.f32 %v4605, %v4684
        %s4687 = scalar_lea.vmem [#allocation14], 1792
        %v4688 = vld [vmem:[%s4687] sm:$0xff]
        %v4689 = vld [vmem:[%s4687 + $0x8] sm:$0xff]
        %v4690 = vld [vmem:[%s4687 + $0x10] sm:$0xff]
        %v4691 = vld [vmem:[%s4687 + $0x18] sm:$0xff]
        %v4692 = vld [vmem:[%s4687 + $0x20] sm:$0xff]
        %v4693 = vld [vmem:[%s4687 + $0x28] sm:$0xff]
        %v4694 = vld [vmem:[%s4687 + $0x30] sm:$0xff]
        %v4695 = vld [vmem:[%s4687 + $0x38] sm:$0xff]
        %v4696 = vld [vmem:[%s4687 + $0x40] sm:$0xff]
        %v4697 = vld [vmem:[%s4687 + $0x48] sm:$0xff]
        %v4698 = vld [vmem:[%s4687 + $0x50] sm:$0xff]
        %v4699 = vld [vmem:[%s4687 + $0x58] sm:$0xff]
        %v4700 = vld [vmem:[%s4687 + $0x60] sm:$0xff]
        %v4701 = vld [vmem:[%s4687 + $0x68] sm:$0xff]
        %v4702 = vld [vmem:[%s4687 + $0x70] sm:$0xff]
        %v4703 = vld [vmem:[%s4687 + $0x78] sm:$0xff]
        %v4704 = vld [vmem:[%s4687 + $0x80] sm:$0xff]
        %v4705 = vld [vmem:[%s4687 + $0x88] sm:$0xff]
        %v4706 = vld [vmem:[%s4687 + $0x90] sm:$0xff]
        %v4707 = vld [vmem:[%s4687 + $0x98] sm:$0xff]
        %v4708 = vld [vmem:[%s4687 + $0xa0] sm:$0xff]
        %v4709 = vld [vmem:[%s4687 + $0xa8] sm:$0xff]
        %v4710 = vld [vmem:[%s4687 + $0xb0] sm:$0xff]
        %v4711 = vld [vmem:[%s4687 + $0xb8] sm:$0xff]
        %v4712 = vld [vmem:[%s4687 + $0xc0] sm:$0xff]
        %v4713 = vld [vmem:[%s4687 + $0xc8] sm:$0xff]
        %v4714 = vld [vmem:[%s4687 + $0xd0] sm:$0xff]
        %v4715 = vld [vmem:[%s4687 + $0xd8] sm:$0xff]
        %v4716 = vld [vmem:[%s4687 + $0xe0] sm:$0xff]
        %v4717 = vld [vmem:[%s4687 + $0xe8] sm:$0xff]
        %v4718 = vld [vmem:[%s4687 + $0xf0] sm:$0xff]
        %v4719 = vld [vmem:[%s4687 + $0xf8] sm:$0xff]
        %v4720 = vrot.slane %v4118, 3
        %4722 = vmatpush.msra.mxu0 %v4718
        %4723 = vmatpush.msra.mxu0 %v4716
        %4724 = vmatpush.msra.mxu0 %v4714
        %4725 = vmatpush.msra.mxu0 %v4712
        %4726 = vmatpush.msra.mxu0 %v4710
        %4727 = vmatpush.msra.mxu0 %v4708
        %4728 = vmatpush.msra.mxu0 %v4706
        %4729 = vmatpush.msra.mxu0 %v4704
        %4730 = vmatpush.msra.mxu0 %v4702
        %4731 = vmatpush.msra.mxu0 %v4700
        %4732 = vmatpush.msra.mxu0 %v4698
        %4733 = vmatpush.msra.mxu0 %v4696
        %4734 = vmatpush.msra.mxu0 %v4694
        %4735 = vmatpush.msra.mxu0 %v4692
        %4736 = vmatpush.msra.mxu0 %v4690
        %4737 = vmatpush.msra.mxu0 %v4688
        %4738 = vmatmul.f32.gmra.mxu0 %v4720
        %v4739 = vpop.f32.mrf.mxu0
        %v4740 = vadd.f32 0.0, %v4739
        %4741 = vdwg.mxu0
        %4742 = vmatpush.msra.mxu0 %v4719
        %4743 = vmatpush.msra.mxu0 %v4717
        %4744 = vmatpush.msra.mxu0 %v4715
        %4745 = vmatpush.msra.mxu0 %v4713
        %4746 = vmatpush.msra.mxu0 %v4711
        %4747 = vmatpush.msra.mxu0 %v4709
        %4748 = vmatpush.msra.mxu0 %v4707
        %4749 = vmatpush.msra.mxu0 %v4705
        %4750 = vmatpush.msra.mxu0 %v4703
        %4751 = vmatpush.msra.mxu0 %v4701
        %4752 = vmatpush.msra.mxu0 %v4699
        %4753 = vmatpush.msra.mxu0 %v4697
        %4754 = vmatpush.msra.mxu0 %v4695
        %4755 = vmatpush.msra.mxu0 %v4693
        %4756 = vmatpush.msra.mxu0 %v4691
        %4757 = vmatpush.msra.mxu0 %v4689
        %4758 = vmatmul.f32.gmra.mxu0 %v4720
        %v4759 = vpop.f32.mrf.mxu0
        %v4760 = vadd.f32 0.0, %v4759
        %4761 = vdwg.mxu0
        %v4764 = vrot.slane %v4760, 7
        %v4765 = vsel %vm4197, %v4740, %v4764
        %v4767 = vadd.f32 %v4686, %v4765
        %s4768 = scalar_lea.vmem [#allocation14], 2048
        %v4769 = vld [vmem:[%s4768] sm:$0xff]
        %v4770 = vld [vmem:[%s4768 + $0x8] sm:$0xff]
        %v4771 = vld [vmem:[%s4768 + $0x10] sm:$0xff]
        %v4772 = vld [vmem:[%s4768 + $0x18] sm:$0xff]
        %v4773 = vld [vmem:[%s4768 + $0x20] sm:$0xff]
        %v4774 = vld [vmem:[%s4768 + $0x28] sm:$0xff]
        %v4775 = vld [vmem:[%s4768 + $0x30] sm:$0xff]
        %v4776 = vld [vmem:[%s4768 + $0x38] sm:$0xff]
        %v4777 = vld [vmem:[%s4768 + $0x40] sm:$0xff]
        %v4778 = vld [vmem:[%s4768 + $0x48] sm:$0xff]
        %v4779 = vld [vmem:[%s4768 + $0x50] sm:$0xff]
        %v4780 = vld [vmem:[%s4768 + $0x58] sm:$0xff]
        %v4781 = vld [vmem:[%s4768 + $0x60] sm:$0xff]
        %v4782 = vld [vmem:[%s4768 + $0x68] sm:$0xff]
        %v4783 = vld [vmem:[%s4768 + $0x70] sm:$0xff]
        %v4784 = vld [vmem:[%s4768 + $0x78] sm:$0xff]
        %v4785 = vld [vmem:[%s4768 + $0x80] sm:$0xff]
        %v4786 = vld [vmem:[%s4768 + $0x88] sm:$0xff]
        %v4787 = vld [vmem:[%s4768 + $0x90] sm:$0xff]
        %v4788 = vld [vmem:[%s4768 + $0x98] sm:$0xff]
        %v4789 = vld [vmem:[%s4768 + $0xa0] sm:$0xff]
        %v4790 = vld [vmem:[%s4768 + $0xa8] sm:$0xff]
        %v4791 = vld [vmem:[%s4768 + $0xb0] sm:$0xff]
        %v4792 = vld [vmem:[%s4768 + $0xb8] sm:$0xff]
        %v4793 = vld [vmem:[%s4768 + $0xc0] sm:$0xff]
        %v4794 = vld [vmem:[%s4768 + $0xc8] sm:$0xff]
        %v4795 = vld [vmem:[%s4768 + $0xd0] sm:$0xff]
        %v4796 = vld [vmem:[%s4768 + $0xd8] sm:$0xff]
        %v4797 = vld [vmem:[%s4768 + $0xe0] sm:$0xff]
        %v4798 = vld [vmem:[%s4768 + $0xe8] sm:$0xff]
        %v4799 = vld [vmem:[%s4768 + $0xf0] sm:$0xff]
        %v4800 = vld [vmem:[%s4768 + $0xf8] sm:$0xff]
        %4801 = vmatpush.msra.mxu0 %v4799
        %4802 = vmatpush.msra.mxu0 %v4797
        %4803 = vmatpush.msra.mxu0 %v4795
        %4804 = vmatpush.msra.mxu0 %v4793
        %4805 = vmatpush.msra.mxu0 %v4791
        %4806 = vmatpush.msra.mxu0 %v4789
        %4807 = vmatpush.msra.mxu0 %v4787
        %4808 = vmatpush.msra.mxu0 %v4785
        %4809 = vmatpush.msra.mxu0 %v4783
        %4810 = vmatpush.msra.mxu0 %v4781
        %4811 = vmatpush.msra.mxu0 %v4779
        %4812 = vmatpush.msra.mxu0 %v4777
        %4813 = vmatpush.msra.mxu0 %v4775
        %4814 = vmatpush.msra.mxu0 %v4773
        %4815 = vmatpush.msra.mxu0 %v4771
        %4816 = vmatpush.msra.mxu0 %v4769
        %4817 = vmatmul.f32.gmra.mxu0 %v4119
        %v4818 = vpop.f32.mrf.mxu0
        %v4819 = vadd.f32 0.0, %v4818
        %4820 = vdwg.mxu0
        %4821 = vmatpush.msra.mxu0 %v4800
        %4822 = vmatpush.msra.mxu0 %v4798
        %4823 = vmatpush.msra.mxu0 %v4796
        %4824 = vmatpush.msra.mxu0 %v4794
        %4825 = vmatpush.msra.mxu0 %v4792
        %4826 = vmatpush.msra.mxu0 %v4790
        %4827 = vmatpush.msra.mxu0 %v4788
        %4828 = vmatpush.msra.mxu0 %v4786
        %4829 = vmatpush.msra.mxu0 %v4784
        %4830 = vmatpush.msra.mxu0 %v4782
        %4831 = vmatpush.msra.mxu0 %v4780
        %4832 = vmatpush.msra.mxu0 %v4778
        %4833 = vmatpush.msra.mxu0 %v4776
        %4834 = vmatpush.msra.mxu0 %v4774
        %4835 = vmatpush.msra.mxu0 %v4772
        %4836 = vmatpush.msra.mxu0 %v4770
        %4837 = vmatmul.f32.gmra.mxu0 %v4119
        %v4838 = vpop.f32.mrf.mxu0
        %v4839 = vadd.f32 0.0, %v4838
        %4840 = vdwg.mxu0
        %v4843 = vrot.slane %v4839, 7
        %v4844 = vsel %vm4197, %v4819, %v4843
        %v4846 = vadd.f32 %v4767, %v4844
        %s4847 = scalar_lea.vmem [#allocation14], 2304
        %v4848 = vld [vmem:[%s4847] sm:$0xff]
        %v4849 = vld [vmem:[%s4847 + $0x8] sm:$0xff]
        %v4850 = vld [vmem:[%s4847 + $0x10] sm:$0xff]
        %v4851 = vld [vmem:[%s4847 + $0x18] sm:$0xff]
        %v4852 = vld [vmem:[%s4847 + $0x20] sm:$0xff]
        %v4853 = vld [vmem:[%s4847 + $0x28] sm:$0xff]
        %v4854 = vld [vmem:[%s4847 + $0x30] sm:$0xff]
        %v4855 = vld [vmem:[%s4847 + $0x38] sm:$0xff]
        %v4856 = vld [vmem:[%s4847 + $0x40] sm:$0xff]
        %v4857 = vld [vmem:[%s4847 + $0x48] sm:$0xff]
        %v4858 = vld [vmem:[%s4847 + $0x50] sm:$0xff]
        %v4859 = vld [vmem:[%s4847 + $0x58] sm:$0xff]
        %v4860 = vld [vmem:[%s4847 + $0x60] sm:$0xff]
        %v4861 = vld [vmem:[%s4847 + $0x68] sm:$0xff]
        %v4862 = vld [vmem:[%s4847 + $0x70] sm:$0xff]
        %v4863 = vld [vmem:[%s4847 + $0x78] sm:$0xff]
        %v4864 = vld [vmem:[%s4847 + $0x80] sm:$0xff]
        %v4865 = vld [vmem:[%s4847 + $0x88] sm:$0xff]
        %v4866 = vld [vmem:[%s4847 + $0x90] sm:$0xff]
        %v4867 = vld [vmem:[%s4847 + $0x98] sm:$0xff]
        %v4868 = vld [vmem:[%s4847 + $0xa0] sm:$0xff]
        %v4869 = vld [vmem:[%s4847 + $0xa8] sm:$0xff]
        %v4870 = vld [vmem:[%s4847 + $0xb0] sm:$0xff]
        %v4871 = vld [vmem:[%s4847 + $0xb8] sm:$0xff]
        %v4872 = vld [vmem:[%s4847 + $0xc0] sm:$0xff]
        %v4873 = vld [vmem:[%s4847 + $0xc8] sm:$0xff]
        %v4874 = vld [vmem:[%s4847 + $0xd0] sm:$0xff]
        %v4875 = vld [vmem:[%s4847 + $0xd8] sm:$0xff]
        %v4876 = vld [vmem:[%s4847 + $0xe0] sm:$0xff]
        %v4877 = vld [vmem:[%s4847 + $0xe8] sm:$0xff]
        %v4878 = vld [vmem:[%s4847 + $0xf0] sm:$0xff]
        %v4879 = vld [vmem:[%s4847 + $0xf8] sm:$0xff]
        %v4881 = vrot.slane %v4119, 1
        %4883 = vmatpush.msra.mxu0 %v4878
        %4884 = vmatpush.msra.mxu0 %v4876
        %4885 = vmatpush.msra.mxu0 %v4874
        %4886 = vmatpush.msra.mxu0 %v4872
        %4887 = vmatpush.msra.mxu0 %v4870
        %4888 = vmatpush.msra.mxu0 %v4868
        %4889 = vmatpush.msra.mxu0 %v4866
        %4890 = vmatpush.msra.mxu0 %v4864
        %4891 = vmatpush.msra.mxu0 %v4862
        %4892 = vmatpush.msra.mxu0 %v4860
        %4893 = vmatpush.msra.mxu0 %v4858
        %4894 = vmatpush.msra.mxu0 %v4856
        %4895 = vmatpush.msra.mxu0 %v4854
        %4896 = vmatpush.msra.mxu0 %v4852
        %4897 = vmatpush.msra.mxu0 %v4850
        %4898 = vmatpush.msra.mxu0 %v4848
        %4899 = vmatmul.f32.gmra.mxu0 %v4881
        %v4900 = vpop.f32.mrf.mxu0
        %v4901 = vadd.f32 0.0, %v4900
        %4902 = vdwg.mxu0
        %4903 = vmatpush.msra.mxu0 %v4879
        %4904 = vmatpush.msra.mxu0 %v4877
        %4905 = vmatpush.msra.mxu0 %v4875
        %4906 = vmatpush.msra.mxu0 %v4873
        %4907 = vmatpush.msra.mxu0 %v4871
        %4908 = vmatpush.msra.mxu0 %v4869
        %4909 = vmatpush.msra.mxu0 %v4867
        %4910 = vmatpush.msra.mxu0 %v4865
        %4911 = vmatpush.msra.mxu0 %v4863
        %4912 = vmatpush.msra.mxu0 %v4861
        %4913 = vmatpush.msra.mxu0 %v4859
        %4914 = vmatpush.msra.mxu0 %v4857
        %4915 = vmatpush.msra.mxu0 %v4855
        %4916 = vmatpush.msra.mxu0 %v4853
        %4917 = vmatpush.msra.mxu0 %v4851
        %4918 = vmatpush.msra.mxu0 %v4849
        %4919 = vmatmul.f32.gmra.mxu0 %v4881
        %v4920 = vpop.f32.mrf.mxu0
        %v4921 = vadd.f32 0.0, %v4920
        %4922 = vdwg.mxu0
        %v4925 = vrot.slane %v4921, 7
        %v4926 = vsel %vm4197, %v4901, %v4925
        %v4928 = vadd.f32 %v4846, %v4926
        %s4929 = scalar_lea.vmem [#allocation14], 2560
        %v4930 = vld [vmem:[%s4929] sm:$0xff]
        %v4931 = vld [vmem:[%s4929 + $0x8] sm:$0xff]
        %v4932 = vld [vmem:[%s4929 + $0x10] sm:$0xff]
        %v4933 = vld [vmem:[%s4929 + $0x18] sm:$0xff]
        %v4934 = vld [vmem:[%s4929 + $0x20] sm:$0xff]
        %v4935 = vld [vmem:[%s4929 + $0x28] sm:$0xff]
        %v4936 = vld [vmem:[%s4929 + $0x30] sm:$0xff]
        %v4937 = vld [vmem:[%s4929 + $0x38] sm:$0xff]
        %v4938 = vld [vmem:[%s4929 + $0x40] sm:$0xff]
        %v4939 = vld [vmem:[%s4929 + $0x48] sm:$0xff]
        %v4940 = vld [vmem:[%s4929 + $0x50] sm:$0xff]
        %v4941 = vld [vmem:[%s4929 + $0x58] sm:$0xff]
        %v4942 = vld [vmem:[%s4929 + $0x60] sm:$0xff]
        %v4943 = vld [vmem:[%s4929 + $0x68] sm:$0xff]
        %v4944 = vld [vmem:[%s4929 + $0x70] sm:$0xff]
        %v4945 = vld [vmem:[%s4929 + $0x78] sm:$0xff]
        %v4946 = vld [vmem:[%s4929 + $0x80] sm:$0xff]
        %v4947 = vld [vmem:[%s4929 + $0x88] sm:$0xff]
        %v4948 = vld [vmem:[%s4929 + $0x90] sm:$0xff]
        %v4949 = vld [vmem:[%s4929 + $0x98] sm:$0xff]
        %v4950 = vld [vmem:[%s4929 + $0xa0] sm:$0xff]
        %v4951 = vld [vmem:[%s4929 + $0xa8] sm:$0xff]
        %v4952 = vld [vmem:[%s4929 + $0xb0] sm:$0xff]
        %v4953 = vld [vmem:[%s4929 + $0xb8] sm:$0xff]
        %v4954 = vld [vmem:[%s4929 + $0xc0] sm:$0xff]
        %v4955 = vld [vmem:[%s4929 + $0xc8] sm:$0xff]
        %v4956 = vld [vmem:[%s4929 + $0xd0] sm:$0xff]
        %v4957 = vld [vmem:[%s4929 + $0xd8] sm:$0xff]
        %v4958 = vld [vmem:[%s4929 + $0xe0] sm:$0xff]
        %v4959 = vld [vmem:[%s4929 + $0xe8] sm:$0xff]
        %v4960 = vld [vmem:[%s4929 + $0xf0] sm:$0xff]
        %v4961 = vld [vmem:[%s4929 + $0xf8] sm:$0xff]
        %v4962 = vrot.slane %v4119, 2
        %4964 = vmatpush.msra.mxu0 %v4960
        %4965 = vmatpush.msra.mxu0 %v4958
        %4966 = vmatpush.msra.mxu0 %v4956
        %4967 = vmatpush.msra.mxu0 %v4954
        %4968 = vmatpush.msra.mxu0 %v4952
        %4969 = vmatpush.msra.mxu0 %v4950
        %4970 = vmatpush.msra.mxu0 %v4948
        %4971 = vmatpush.msra.mxu0 %v4946
        %4972 = vmatpush.msra.mxu0 %v4944
        %4973 = vmatpush.msra.mxu0 %v4942
        %4974 = vmatpush.msra.mxu0 %v4940
        %4975 = vmatpush.msra.mxu0 %v4938
        %4976 = vmatpush.msra.mxu0 %v4936
        %4977 = vmatpush.msra.mxu0 %v4934
        %4978 = vmatpush.msra.mxu0 %v4932
        %4979 = vmatpush.msra.mxu0 %v4930
        %4980 = vmatmul.f32.gmra.mxu0 %v4962
        %v4981 = vpop.f32.mrf.mxu0
        %v4982 = vadd.f32 0.0, %v4981
        %4983 = vdwg.mxu0
        %4984 = vmatpush.msra.mxu0 %v4961
        %4985 = vmatpush.msra.mxu0 %v4959
        %4986 = vmatpush.msra.mxu0 %v4957
        %4987 = vmatpush.msra.mxu0 %v4955
        %4988 = vmatpush.msra.mxu0 %v4953
        %4989 = vmatpush.msra.mxu0 %v4951
        %4990 = vmatpush.msra.mxu0 %v4949
        %4991 = vmatpush.msra.mxu0 %v4947
        %4992 = vmatpush.msra.mxu0 %v4945
        %4993 = vmatpush.msra.mxu0 %v4943
        %4994 = vmatpush.msra.mxu0 %v4941
        %4995 = vmatpush.msra.mxu0 %v4939
        %4996 = vmatpush.msra.mxu0 %v4937
        %4997 = vmatpush.msra.mxu0 %v4935
        %4998 = vmatpush.msra.mxu0 %v4933
        %4999 = vmatpush.msra.mxu0 %v4931
        %5000 = vmatmul.f32.gmra.mxu0 %v4962
        %v5001 = vpop.f32.mrf.mxu0
        %v5002 = vadd.f32 0.0, %v5001
        %5003 = vdwg.mxu0
        %v5006 = vrot.slane %v5002, 7
        %v5007 = vsel %vm4197, %v4982, %v5006
        %v5009 = vadd.f32 %v4928, %v5007
        %s5010 = scalar_lea.vmem [#allocation14], 2816
        %v5011 = vld [vmem:[%s5010] sm:$0xff]
        %v5012 = vld [vmem:[%s5010 + $0x8] sm:$0xff]
        %v5013 = vld [vmem:[%s5010 + $0x10] sm:$0xff]
        %v5014 = vld [vmem:[%s5010 + $0x18] sm:$0xff]
        %v5015 = vld [vmem:[%s5010 + $0x20] sm:$0xff]
        %v5016 = vld [vmem:[%s5010 + $0x28] sm:$0xff]
        %v5017 = vld [vmem:[%s5010 + $0x30] sm:$0xff]
        %v5018 = vld [vmem:[%s5010 + $0x38] sm:$0xff]
        %v5019 = vld [vmem:[%s5010 + $0x40] sm:$0xff]
        %v5020 = vld [vmem:[%s5010 + $0x48] sm:$0xff]
        %v5021 = vld [vmem:[%s5010 + $0x50] sm:$0xff]
        %v5022 = vld [vmem:[%s5010 + $0x58] sm:$0xff]
        %v5023 = vld [vmem:[%s5010 + $0x60] sm:$0xff]
        %v5024 = vld [vmem:[%s5010 + $0x68] sm:$0xff]
        %v5025 = vld [vmem:[%s5010 + $0x70] sm:$0xff]
        %v5026 = vld [vmem:[%s5010 + $0x78] sm:$0xff]
        %v5027 = vld [vmem:[%s5010 + $0x80] sm:$0xff]
        %v5028 = vld [vmem:[%s5010 + $0x88] sm:$0xff]
        %v5029 = vld [vmem:[%s5010 + $0x90] sm:$0xff]
        %v5030 = vld [vmem:[%s5010 + $0x98] sm:$0xff]
        %v5031 = vld [vmem:[%s5010 + $0xa0] sm:$0xff]
        %v5032 = vld [vmem:[%s5010 + $0xa8] sm:$0xff]
        %v5033 = vld [vmem:[%s5010 + $0xb0] sm:$0xff]
        %v5034 = vld [vmem:[%s5010 + $0xb8] sm:$0xff]
        %v5035 = vld [vmem:[%s5010 + $0xc0] sm:$0xff]
        %v5036 = vld [vmem:[%s5010 + $0xc8] sm:$0xff]
        %v5037 = vld [vmem:[%s5010 + $0xd0] sm:$0xff]
        %v5038 = vld [vmem:[%s5010 + $0xd8] sm:$0xff]
        %v5039 = vld [vmem:[%s5010 + $0xe0] sm:$0xff]
        %v5040 = vld [vmem:[%s5010 + $0xe8] sm:$0xff]
        %v5041 = vld [vmem:[%s5010 + $0xf0] sm:$0xff]
        %v5042 = vld [vmem:[%s5010 + $0xf8] sm:$0xff]
        %v5043 = vrot.slane %v4119, 3
        %5045 = vmatpush.msra.mxu0 %v5041
        %5046 = vmatpush.msra.mxu0 %v5039
        %5047 = vmatpush.msra.mxu0 %v5037
        %5048 = vmatpush.msra.mxu0 %v5035
        %5049 = vmatpush.msra.mxu0 %v5033
        %5050 = vmatpush.msra.mxu0 %v5031
        %5051 = vmatpush.msra.mxu0 %v5029
        %5052 = vmatpush.msra.mxu0 %v5027
        %5053 = vmatpush.msra.mxu0 %v5025
        %5054 = vmatpush.msra.mxu0 %v5023
        %5055 = vmatpush.msra.mxu0 %v5021
        %5056 = vmatpush.msra.mxu0 %v5019
        %5057 = vmatpush.msra.mxu0 %v5017
        %5058 = vmatpush.msra.mxu0 %v5015
        %5059 = vmatpush.msra.mxu0 %v5013
        %5060 = vmatpush.msra.mxu0 %v5011
        %5061 = vmatmul.f32.gmra.mxu0 %v5043
        %v5062 = vpop.f32.mrf.mxu0
        %v5063 = vadd.f32 0.0, %v5062
        %5064 = vdwg.mxu0
        %5065 = vmatpush.msra.mxu0 %v5042
        %5066 = vmatpush.msra.mxu0 %v5040
        %5067 = vmatpush.msra.mxu0 %v5038
        %5068 = vmatpush.msra.mxu0 %v5036
        %5069 = vmatpush.msra.mxu0 %v5034
        %5070 = vmatpush.msra.mxu0 %v5032
        %5071 = vmatpush.msra.mxu0 %v5030
        %5072 = vmatpush.msra.mxu0 %v5028
        %5073 = vmatpush.msra.mxu0 %v5026
        %5074 = vmatpush.msra.mxu0 %v5024
        %5075 = vmatpush.msra.mxu0 %v5022
        %5076 = vmatpush.msra.mxu0 %v5020
        %5077 = vmatpush.msra.mxu0 %v5018
        %5078 = vmatpush.msra.mxu0 %v5016
        %5079 = vmatpush.msra.mxu0 %v5014
        %5080 = vmatpush.msra.mxu0 %v5012
        %5081 = vmatmul.f32.gmra.mxu0 %v5043
        %v5082 = vpop.f32.mrf.mxu0
        %v5083 = vadd.f32 0.0, %v5082
        %5084 = vdwg.mxu0
        %v5087 = vrot.slane %v5083, 7
        %v5088 = vsel %vm4197, %v5063, %v5087
        %v5090 = vadd.f32 %v5009, %v5088
        %s5091 = scalar_lea.vmem [#allocation14], 3072
        %v5092 = vld [vmem:[%s5091] sm:$0xff]
        %v5093 = vld [vmem:[%s5091 + $0x8] sm:$0xff]
        %v5094 = vld [vmem:[%s5091 + $0x10] sm:$0xff]
        %v5095 = vld [vmem:[%s5091 + $0x18] sm:$0xff]
        %v5096 = vld [vmem:[%s5091 + $0x20] sm:$0xff]
        %v5097 = vld [vmem:[%s5091 + $0x28] sm:$0xff]
        %v5098 = vld [vmem:[%s5091 + $0x30] sm:$0xff]
        %v5099 = vld [vmem:[%s5091 + $0x38] sm:$0xff]
        %v5100 = vld [vmem:[%s5091 + $0x40] sm:$0xff]
        %v5101 = vld [vmem:[%s5091 + $0x48] sm:$0xff]
        %v5102 = vld [vmem:[%s5091 + $0x50] sm:$0xff]
        %v5103 = vld [vmem:[%s5091 + $0x58] sm:$0xff]
        %v5104 = vld [vmem:[%s5091 + $0x60] sm:$0xff]
        %v5105 = vld [vmem:[%s5091 + $0x68] sm:$0xff]
        %v5106 = vld [vmem:[%s5091 + $0x70] sm:$0xff]
        %v5107 = vld [vmem:[%s5091 + $0x78] sm:$0xff]
        %v5108 = vld [vmem:[%s5091 + $0x80] sm:$0xff]
        %v5109 = vld [vmem:[%s5091 + $0x88] sm:$0xff]
        %v5110 = vld [vmem:[%s5091 + $0x90] sm:$0xff]
        %v5111 = vld [vmem:[%s5091 + $0x98] sm:$0xff]
        %v5112 = vld [vmem:[%s5091 + $0xa0] sm:$0xff]
        %v5113 = vld [vmem:[%s5091 + $0xa8] sm:$0xff]
        %v5114 = vld [vmem:[%s5091 + $0xb0] sm:$0xff]
        %v5115 = vld [vmem:[%s5091 + $0xb8] sm:$0xff]
        %v5116 = vld [vmem:[%s5091 + $0xc0] sm:$0xff]
        %v5117 = vld [vmem:[%s5091 + $0xc8] sm:$0xff]
        %v5118 = vld [vmem:[%s5091 + $0xd0] sm:$0xff]
        %v5119 = vld [vmem:[%s5091 + $0xd8] sm:$0xff]
        %v5120 = vld [vmem:[%s5091 + $0xe0] sm:$0xff]
        %v5121 = vld [vmem:[%s5091 + $0xe8] sm:$0xff]
        %v5122 = vld [vmem:[%s5091 + $0xf0] sm:$0xff]
        %v5123 = vld [vmem:[%s5091 + $0xf8] sm:$0xff]
        %5124 = vmatpush.msra.mxu0 %v5122
        %5125 = vmatpush.msra.mxu0 %v5120
        %5126 = vmatpush.msra.mxu0 %v5118
        %5127 = vmatpush.msra.mxu0 %v5116
        %5128 = vmatpush.msra.mxu0 %v5114
        %5129 = vmatpush.msra.mxu0 %v5112
        %5130 = vmatpush.msra.mxu0 %v5110
        %5131 = vmatpush.msra.mxu0 %v5108
        %5132 = vmatpush.msra.mxu0 %v5106
        %5133 = vmatpush.msra.mxu0 %v5104
        %5134 = vmatpush.msra.mxu0 %v5102
        %5135 = vmatpush.msra.mxu0 %v5100
        %5136 = vmatpush.msra.mxu0 %v5098
        %5137 = vmatpush.msra.mxu0 %v5096
        %5138 = vmatpush.msra.mxu0 %v5094
        %5139 = vmatpush.msra.mxu0 %v5092
        %5140 = vmatmul.f32.gmra.mxu0 %v4120
        %v5141 = vpop.f32.mrf.mxu0
        %v5142 = vadd.f32 0.0, %v5141
        %5143 = vdwg.mxu0
        %5144 = vmatpush.msra.mxu0 %v5123
        %5145 = vmatpush.msra.mxu0 %v5121
        %5146 = vmatpush.msra.mxu0 %v5119
        %5147 = vmatpush.msra.mxu0 %v5117
        %5148 = vmatpush.msra.mxu0 %v5115
        %5149 = vmatpush.msra.mxu0 %v5113
        %5150 = vmatpush.msra.mxu0 %v5111
        %5151 = vmatpush.msra.mxu0 %v5109
        %5152 = vmatpush.msra.mxu0 %v5107
        %5153 = vmatpush.msra.mxu0 %v5105
        %5154 = vmatpush.msra.mxu0 %v5103
        %5155 = vmatpush.msra.mxu0 %v5101
        %5156 = vmatpush.msra.mxu0 %v5099
        %5157 = vmatpush.msra.mxu0 %v5097
        %5158 = vmatpush.msra.mxu0 %v5095
        %5159 = vmatpush.msra.mxu0 %v5093
        %5160 = vmatmul.f32.gmra.mxu0 %v4120
        %v5161 = vpop.f32.mrf.mxu0
        %v5162 = vadd.f32 0.0, %v5161
        %5163 = vdwg.mxu0
        %v5166 = vrot.slane %v5162, 7
        %v5167 = vsel %vm4197, %v5142, %v5166
        %v5169 = vadd.f32 %v5090, %v5167
        %s5170 = scalar_lea.vmem [#allocation14], 3328
        %v5171 = vld [vmem:[%s5170] sm:$0xff]
        %v5172 = vld [vmem:[%s5170 + $0x8] sm:$0xff]
        %v5173 = vld [vmem:[%s5170 + $0x10] sm:$0xff]
        %v5174 = vld [vmem:[%s5170 + $0x18] sm:$0xff]
        %v5175 = vld [vmem:[%s5170 + $0x20] sm:$0xff]
        %v5176 = vld [vmem:[%s5170 + $0x28] sm:$0xff]
        %v5177 = vld [vmem:[%s5170 + $0x30] sm:$0xff]
        %v5178 = vld [vmem:[%s5170 + $0x38] sm:$0xff]
        %v5179 = vld [vmem:[%s5170 + $0x40] sm:$0xff]
        %v5180 = vld [vmem:[%s5170 + $0x48] sm:$0xff]
        %v5181 = vld [vmem:[%s5170 + $0x50] sm:$0xff]
        %v5182 = vld [vmem:[%s5170 + $0x58] sm:$0xff]
        %v5183 = vld [vmem:[%s5170 + $0x60] sm:$0xff]
        %v5184 = vld [vmem:[%s5170 + $0x68] sm:$0xff]
        %v5185 = vld [vmem:[%s5170 + $0x70] sm:$0xff]
        %v5186 = vld [vmem:[%s5170 + $0x78] sm:$0xff]
        %v5187 = vld [vmem:[%s5170 + $0x80] sm:$0xff]
        %v5188 = vld [vmem:[%s5170 + $0x88] sm:$0xff]
        %v5189 = vld [vmem:[%s5170 + $0x90] sm:$0xff]
        %v5190 = vld [vmem:[%s5170 + $0x98] sm:$0xff]
        %v5191 = vld [vmem:[%s5170 + $0xa0] sm:$0xff]
        %v5192 = vld [vmem:[%s5170 + $0xa8] sm:$0xff]
        %v5193 = vld [vmem:[%s5170 + $0xb0] sm:$0xff]
        %v5194 = vld [vmem:[%s5170 + $0xb8] sm:$0xff]
        %v5195 = vld [vmem:[%s5170 + $0xc0] sm:$0xff]
        %v5196 = vld [vmem:[%s5170 + $0xc8] sm:$0xff]
        %v5197 = vld [vmem:[%s5170 + $0xd0] sm:$0xff]
        %v5198 = vld [vmem:[%s5170 + $0xd8] sm:$0xff]
        %v5199 = vld [vmem:[%s5170 + $0xe0] sm:$0xff]
        %v5200 = vld [vmem:[%s5170 + $0xe8] sm:$0xff]
        %v5201 = vld [vmem:[%s5170 + $0xf0] sm:$0xff]
        %v5202 = vld [vmem:[%s5170 + $0xf8] sm:$0xff]
        %v5204 = vrot.slane %v4120, 1
        %5206 = vmatpush.msra.mxu0 %v5201
        %5207 = vmatpush.msra.mxu0 %v5199
        %5208 = vmatpush.msra.mxu0 %v5197
        %5209 = vmatpush.msra.mxu0 %v5195
        %5210 = vmatpush.msra.mxu0 %v5193
        %5211 = vmatpush.msra.mxu0 %v5191
        %5212 = vmatpush.msra.mxu0 %v5189
        %5213 = vmatpush.msra.mxu0 %v5187
        %5214 = vmatpush.msra.mxu0 %v5185
        %5215 = vmatpush.msra.mxu0 %v5183
        %5216 = vmatpush.msra.mxu0 %v5181
        %5217 = vmatpush.msra.mxu0 %v5179
        %5218 = vmatpush.msra.mxu0 %v5177
        %5219 = vmatpush.msra.mxu0 %v5175
        %5220 = vmatpush.msra.mxu0 %v5173
        %5221 = vmatpush.msra.mxu0 %v5171
        %5222 = vmatmul.f32.gmra.mxu0 %v5204
        %v5223 = vpop.f32.mrf.mxu0
        %v5224 = vadd.f32 0.0, %v5223
        %5225 = vdwg.mxu0
        %5226 = vmatpush.msra.mxu0 %v5202
        %5227 = vmatpush.msra.mxu0 %v5200
        %5228 = vmatpush.msra.mxu0 %v5198
        %5229 = vmatpush.msra.mxu0 %v5196
        %5230 = vmatpush.msra.mxu0 %v5194
        %5231 = vmatpush.msra.mxu0 %v5192
        %5232 = vmatpush.msra.mxu0 %v5190
        %5233 = vmatpush.msra.mxu0 %v5188
        %5234 = vmatpush.msra.mxu0 %v5186
        %5235 = vmatpush.msra.mxu0 %v5184
        %5236 = vmatpush.msra.mxu0 %v5182
        %5237 = vmatpush.msra.mxu0 %v5180
        %5238 = vmatpush.msra.mxu0 %v5178
        %5239 = vmatpush.msra.mxu0 %v5176
        %5240 = vmatpush.msra.mxu0 %v5174
        %5241 = vmatpush.msra.mxu0 %v5172
        %5242 = vmatmul.f32.gmra.mxu0 %v5204
        %v5243 = vpop.f32.mrf.mxu0
        %v5244 = vadd.f32 0.0, %v5243
        %5245 = vdwg.mxu0
        %v5248 = vrot.slane %v5244, 7
        %v5249 = vsel %vm4197, %v5224, %v5248
        %v5251 = vadd.f32 %v5169, %v5249
        %s5252 = scalar_lea.vmem [#allocation14], 3584
        %v5253 = vld [vmem:[%s5252] sm:$0xff]
        %v5254 = vld [vmem:[%s5252 + $0x8] sm:$0xff]
        %v5255 = vld [vmem:[%s5252 + $0x10] sm:$0xff]
        %v5256 = vld [vmem:[%s5252 + $0x18] sm:$0xff]
        %v5257 = vld [vmem:[%s5252 + $0x20] sm:$0xff]
        %v5258 = vld [vmem:[%s5252 + $0x28] sm:$0xff]
        %v5259 = vld [vmem:[%s5252 + $0x30] sm:$0xff]
        %v5260 = vld [vmem:[%s5252 + $0x38] sm:$0xff]
        %v5261 = vld [vmem:[%s5252 + $0x40] sm:$0xff]
        %v5262 = vld [vmem:[%s5252 + $0x48] sm:$0xff]
        %v5263 = vld [vmem:[%s5252 + $0x50] sm:$0xff]
        %v5264 = vld [vmem:[%s5252 + $0x58] sm:$0xff]
        %v5265 = vld [vmem:[%s5252 + $0x60] sm:$0xff]
        %v5266 = vld [vmem:[%s5252 + $0x68] sm:$0xff]
        %v5267 = vld [vmem:[%s5252 + $0x70] sm:$0xff]
        %v5268 = vld [vmem:[%s5252 + $0x78] sm:$0xff]
        %v5269 = vld [vmem:[%s5252 + $0x80] sm:$0xff]
        %v5270 = vld [vmem:[%s5252 + $0x88] sm:$0xff]
        %v5271 = vld [vmem:[%s5252 + $0x90] sm:$0xff]
        %v5272 = vld [vmem:[%s5252 + $0x98] sm:$0xff]
        %v5273 = vld [vmem:[%s5252 + $0xa0] sm:$0xff]
        %v5274 = vld [vmem:[%s5252 + $0xa8] sm:$0xff]
        %v5275 = vld [vmem:[%s5252 + $0xb0] sm:$0xff]
        %v5276 = vld [vmem:[%s5252 + $0xb8] sm:$0xff]
        %v5277 = vld [vmem:[%s5252 + $0xc0] sm:$0xff]
        %v5278 = vld [vmem:[%s5252 + $0xc8] sm:$0xff]
        %v5279 = vld [vmem:[%s5252 + $0xd0] sm:$0xff]
        %v5280 = vld [vmem:[%s5252 + $0xd8] sm:$0xff]
        %v5281 = vld [vmem:[%s5252 + $0xe0] sm:$0xff]
        %v5282 = vld [vmem:[%s5252 + $0xe8] sm:$0xff]
        %v5283 = vld [vmem:[%s5252 + $0xf0] sm:$0xff]
        %v5284 = vld [vmem:[%s5252 + $0xf8] sm:$0xff]
        %v5285 = vrot.slane %v4120, 2
        %5287 = vmatpush.msra.mxu0 %v5283
        %5288 = vmatpush.msra.mxu0 %v5281
        %5289 = vmatpush.msra.mxu0 %v5279
        %5290 = vmatpush.msra.mxu0 %v5277
        %5291 = vmatpush.msra.mxu0 %v5275
        %5292 = vmatpush.msra.mxu0 %v5273
        %5293 = vmatpush.msra.mxu0 %v5271
        %5294 = vmatpush.msra.mxu0 %v5269
        %5295 = vmatpush.msra.mxu0 %v5267
        %5296 = vmatpush.msra.mxu0 %v5265
        %5297 = vmatpush.msra.mxu0 %v5263
        %5298 = vmatpush.msra.mxu0 %v5261
        %5299 = vmatpush.msra.mxu0 %v5259
        %5300 = vmatpush.msra.mxu0 %v5257
        %5301 = vmatpush.msra.mxu0 %v5255
        %5302 = vmatpush.msra.mxu0 %v5253
        %5303 = vmatmul.f32.gmra.mxu0 %v5285
        %v5304 = vpop.f32.mrf.mxu0
        %v5305 = vadd.f32 0.0, %v5304
        %5306 = vdwg.mxu0
        %5307 = vmatpush.msra.mxu0 %v5284
        %5308 = vmatpush.msra.mxu0 %v5282
        %5309 = vmatpush.msra.mxu0 %v5280
        %5310 = vmatpush.msra.mxu0 %v5278
        %5311 = vmatpush.msra.mxu0 %v5276
        %5312 = vmatpush.msra.mxu0 %v5274
        %5313 = vmatpush.msra.mxu0 %v5272
        %5314 = vmatpush.msra.mxu0 %v5270
        %5315 = vmatpush.msra.mxu0 %v5268
        %5316 = vmatpush.msra.mxu0 %v5266
        %5317 = vmatpush.msra.mxu0 %v5264
        %5318 = vmatpush.msra.mxu0 %v5262
        %5319 = vmatpush.msra.mxu0 %v5260
        %5320 = vmatpush.msra.mxu0 %v5258
        %5321 = vmatpush.msra.mxu0 %v5256
        %5322 = vmatpush.msra.mxu0 %v5254
        %5323 = vmatmul.f32.gmra.mxu0 %v5285
        %v5324 = vpop.f32.mrf.mxu0
        %v5325 = vadd.f32 0.0, %v5324
        %5326 = vdwg.mxu0
        %v5329 = vrot.slane %v5325, 7
        %v5330 = vsel %vm4197, %v5305, %v5329
        %v5332 = vadd.f32 %v5251, %v5330
        %s5333 = scalar_lea.vmem [#allocation14], 3840
        %v5334 = vld [vmem:[%s5333] sm:$0xff]
        %v5335 = vld [vmem:[%s5333 + $0x8] sm:$0xff]
        %v5336 = vld [vmem:[%s5333 + $0x10] sm:$0xff]
        %v5337 = vld [vmem:[%s5333 + $0x18] sm:$0xff]
        %v5338 = vld [vmem:[%s5333 + $0x20] sm:$0xff]
        %v5339 = vld [vmem:[%s5333 + $0x28] sm:$0xff]
        %v5340 = vld [vmem:[%s5333 + $0x30] sm:$0xff]
        %v5341 = vld [vmem:[%s5333 + $0x38] sm:$0xff]
        %v5342 = vld [vmem:[%s5333 + $0x40] sm:$0xff]
        %v5343 = vld [vmem:[%s5333 + $0x48] sm:$0xff]
        %v5344 = vld [vmem:[%s5333 + $0x50] sm:$0xff]
        %v5345 = vld [vmem:[%s5333 + $0x58] sm:$0xff]
        %v5346 = vld [vmem:[%s5333 + $0x60] sm:$0xff]
        %v5347 = vld [vmem:[%s5333 + $0x68] sm:$0xff]
        %v5348 = vld [vmem:[%s5333 + $0x70] sm:$0xff]
        %v5349 = vld [vmem:[%s5333 + $0x78] sm:$0xff]
        %v5350 = vld [vmem:[%s5333 + $0x80] sm:$0xff]
        %v5351 = vld [vmem:[%s5333 + $0x88] sm:$0xff]
        %v5352 = vld [vmem:[%s5333 + $0x90] sm:$0xff]
        %v5353 = vld [vmem:[%s5333 + $0x98] sm:$0xff]
        %v5354 = vld [vmem:[%s5333 + $0xa0] sm:$0xff]
        %v5355 = vld [vmem:[%s5333 + $0xa8] sm:$0xff]
        %v5356 = vld [vmem:[%s5333 + $0xb0] sm:$0xff]
        %v5357 = vld [vmem:[%s5333 + $0xb8] sm:$0xff]
        %v5358 = vld [vmem:[%s5333 + $0xc0] sm:$0xff]
        %v5359 = vld [vmem:[%s5333 + $0xc8] sm:$0xff]
        %v5360 = vld [vmem:[%s5333 + $0xd0] sm:$0xff]
        %v5361 = vld [vmem:[%s5333 + $0xd8] sm:$0xff]
        %v5362 = vld [vmem:[%s5333 + $0xe0] sm:$0xff]
        %v5363 = vld [vmem:[%s5333 + $0xe8] sm:$0xff]
        %v5364 = vld [vmem:[%s5333 + $0xf0] sm:$0xff]
        %v5365 = vld [vmem:[%s5333 + $0xf8] sm:$0xff]
        %v5366 = vrot.slane %v4120, 3
        %5368 = vmatpush.msra.mxu0 %v5364
        %5369 = vmatpush.msra.mxu0 %v5362
        %5370 = vmatpush.msra.mxu0 %v5360
        %5371 = vmatpush.msra.mxu0 %v5358
        %5372 = vmatpush.msra.mxu0 %v5356
        %5373 = vmatpush.msra.mxu0 %v5354
        %5374 = vmatpush.msra.mxu0 %v5352
        %5375 = vmatpush.msra.mxu0 %v5350
        %5376 = vmatpush.msra.mxu0 %v5348
        %5377 = vmatpush.msra.mxu0 %v5346
        %5378 = vmatpush.msra.mxu0 %v5344
        %5379 = vmatpush.msra.mxu0 %v5342
        %5380 = vmatpush.msra.mxu0 %v5340
        %5381 = vmatpush.msra.mxu0 %v5338
        %5382 = vmatpush.msra.mxu0 %v5336
        %5383 = vmatpush.msra.mxu0 %v5334
        %5384 = vmatmul.f32.gmra.mxu0 %v5366
        %v5385 = vpop.f32.mrf.mxu0
        %v5386 = vadd.f32 0.0, %v5385
        %5387 = vdwg.mxu0
        %5388 = vmatpush.msra.mxu0 %v5365
        %5389 = vmatpush.msra.mxu0 %v5363
        %5390 = vmatpush.msra.mxu0 %v5361
        %5391 = vmatpush.msra.mxu0 %v5359
        %5392 = vmatpush.msra.mxu0 %v5357
        %5393 = vmatpush.msra.mxu0 %v5355
        %5394 = vmatpush.msra.mxu0 %v5353
        %5395 = vmatpush.msra.mxu0 %v5351
        %5396 = vmatpush.msra.mxu0 %v5349
        %5397 = vmatpush.msra.mxu0 %v5347
        %5398 = vmatpush.msra.mxu0 %v5345
        %5399 = vmatpush.msra.mxu0 %v5343
        %5400 = vmatpush.msra.mxu0 %v5341
        %5401 = vmatpush.msra.mxu0 %v5339
        %5402 = vmatpush.msra.mxu0 %v5337
        %5403 = vmatpush.msra.mxu0 %v5335
        %5404 = vmatmul.f32.gmra.mxu0 %v5366
        %v5405 = vpop.f32.mrf.mxu0
        %v5406 = vadd.f32 0.0, %v5405
        %5407 = vdwg.mxu0
        %v5410 = vrot.slane %v5406, 7
        %v5411 = vsel %vm4197, %v5386, %v5410
        %v5413 = vadd.f32 %v5332, %v5411
        %v5414 = vmax.f32 %v5413, 0.0
        %v5415 = vld [vmem:[%s7] sm:$0xff]
        %v5416 = vld [vmem:[%s7 + $0x8] sm:$0xff]
        %v5417 = vld [vmem:[%s7 + $0x10] sm:$0xff]
        %v5418 = vld [vmem:[%s7 + $0x18] sm:$0xff]
        %v5419 = vld [vmem:[%s7 + $0x20] sm:$0xff]
        %v5420 = vld [vmem:[%s7 + $0x28] sm:$0xff]
        %v5421 = vld [vmem:[%s7 + $0x30] sm:$0xff]
        %v5422 = vld [vmem:[%s7 + $0x38] sm:$0xff]
        %v5423 = vld [vmem:[%s7 + $0x40] sm:$0xff]
        %v5424 = vld [vmem:[%s7 + $0x48] sm:$0xff]
        %v5425 = vld [vmem:[%s7 + $0x50] sm:$0xff]
        %v5426 = vld [vmem:[%s7 + $0x58] sm:$0xff]
        %v5427 = vld [vmem:[%s7 + $0x60] sm:$0xff]
        %v5428 = vld [vmem:[%s7 + $0x68] sm:$0xff]
        %v5429 = vld [vmem:[%s7 + $0x70] sm:$0xff]
        %v5430 = vld [vmem:[%s7 + $0x78] sm:$0xff]
        %v5431 = vld [vmem:[%s7 + $0x80] sm:$0xff]
        %v5432 = vld [vmem:[%s7 + $0x88] sm:$0xff]
        %v5433 = vld [vmem:[%s7 + $0x90] sm:$0xff]
        %v5434 = vld [vmem:[%s7 + $0x98] sm:$0xff]
        %v5435 = vld [vmem:[%s7 + $0xa0] sm:$0xff]
        %v5436 = vld [vmem:[%s7 + $0xa8] sm:$0xff]
        %v5437 = vld [vmem:[%s7 + $0xb0] sm:$0xff]
        %v5438 = vld [vmem:[%s7 + $0xb8] sm:$0xff]
        %v5439 = vld [vmem:[%s7 + $0xc0] sm:$0xff]
        %v5440 = vld [vmem:[%s7 + $0xc8] sm:$0xff]
        %v5441 = vld [vmem:[%s7 + $0xd0] sm:$0xff]
        %v5442 = vld [vmem:[%s7 + $0xd8] sm:$0xff]
        %v5443 = vld [vmem:[%s7 + $0xe0] sm:$0xff]
        %v5444 = vld [vmem:[%s7 + $0xe8] sm:$0xff]
        %v5445 = vld [vmem:[%s7 + $0xf0] sm:$0xff]
        %v5446 = vld [vmem:[%s7 + $0xf8] sm:$0xff]
        %v5447 = vld [vmem:[#allocation17] sm:$0x1]
        %v5449 = vperm.slane %v5414, 0
        %v5450 = vperm.slane %v5414, 1
        %5453 = vmatpush.msra.mxu0 %v5430
        %5454 = vmatpush.msra.mxu0 %v5429
        %5455 = vmatpush.msra.mxu0 %v5428
        %5456 = vmatpush.msra.mxu0 %v5427
        %5457 = vmatpush.msra.mxu0 %v5426
        %5458 = vmatpush.msra.mxu0 %v5425
        %5459 = vmatpush.msra.mxu0 %v5424
        %5460 = vmatpush.msra.mxu0 %v5423
        %5461 = vmatpush.msra.mxu0 %v5422
        %5462 = vmatpush.msra.mxu0 %v5421
        %5463 = vmatpush.msra.mxu0 %v5420
        %5464 = vmatpush.msra.mxu0 %v5419
        %5465 = vmatpush.msra.mxu0 %v5418
        %5466 = vmatpush.msra.mxu0 %v5417
        %5467 = vmatpush.msra.mxu0 %v5416
        %5468 = vmatpush.msra.mxu0 %v5415
        %5469 = vmatmul.f32.gmra.mxu0 %v5449
        %v5470 = vpop.f32.mrf.mxu0
        %v5471 = vadd.f32 %v5447, %v5470
        %5472 = vdwg.mxu0
        %5473 = vmatpush.msra.mxu0 %v5446
        %5474 = vmatpush.msra.mxu0 %v5445
        %5475 = vmatpush.msra.mxu0 %v5444
        %5476 = vmatpush.msra.mxu0 %v5443
        %5477 = vmatpush.msra.mxu0 %v5442
        %5478 = vmatpush.msra.mxu0 %v5441
        %5479 = vmatpush.msra.mxu0 %v5440
        %5480 = vmatpush.msra.mxu0 %v5439
        %5481 = vmatpush.msra.mxu0 %v5438
        %5482 = vmatpush.msra.mxu0 %v5437
        %5483 = vmatpush.msra.mxu0 %v5436
        %5484 = vmatpush.msra.mxu0 %v5435
        %5485 = vmatpush.msra.mxu0 %v5434
        %5486 = vmatpush.msra.mxu0 %v5433
        %5487 = vmatpush.msra.mxu0 %v5432
        %5488 = vmatpush.msra.mxu0 %v5431
        %5489 = vmatmul.f32.gmra.mxu0 %v5450
        %v5490 = vpop.f32.mrf.mxu0
        %v5491 = vadd.f32 %v5471, %v5490
        %5492 = vdwg.mxu0
        %vm5493 = vcmask 8192
        %5494 = vst.msk [vmem:[%s432] sm:$0x1] %vm5493, %v5491
        %s5495 = sand.u32 %s229, 1
        %s5496 = scalar_lea.sflag [#allocation8], %s5495
        %s5497 = sand.u32 %s229, 1
        %s5498 = scalar_lea.vmem [#allocation18], %s5497
        // Predicated region
        $region85: #{cva_net_forward.1} parent=55 // pred_check
          %p5499 = pneg %p239
        $region86: #{cva_net_forward.1} parent=55 // pred_check_branch
          %5501 = sbr.rel (%p5499) target = $region88
        $region87: #{cva_net_forward.1} parent=55 // pred_region
          %5503 = vsyncadd %s5496, 0
          %s5504 = scalar_lea.hbm %s9, %s27
          %s5506 = sshll.u32 %s5498, 4
          %s5507 = int_to_ptr.vmem [resolvable:$true] %s5506
          %s5508 = sshll.u32 %s5504, 4
          %s5509 = int_to_ptr.hbm [resolvable:$true] %s5508
          %5511 = dma.vmem_to_hbm [thread:$0]  %s5507, 16, %s5509, %s5496
        $region88: #{cva_net_forward.1} parent=55 // pred_fallthru
          _
      $region56: #{cva_net_forward.1} parent=5 // pred_fallthru
        _
      %p5512 = scmp.le.s32.totalorder 2, %s22
      // Predicated region
      $region89: #{cva_net_forward.1} parent=5 // pred_check
        %p5513 = pneg %p5512
      $region90: #{cva_net_forward.1} parent=5 // pred_check_branch
        %5515 = sbr.rel (%p5513) target = $region92
      $region91: #{cva_net_forward.1} parent=5 // pred_region
        %s5516 = ssub.s32 %s22, 2
        // Predicated region
        $region93: #{cva_net_forward.1} parent=91 // pred_check
          %p5517 = pneg %p245
        $region94: #{cva_net_forward.1} parent=91 // pred_check_branch
          %5519 = sbr.rel (%p5517) target = $region96
        $region95: #{cva_net_forward.1} parent=91 // pred_region
          %s5520 = sand.u32 %s230, 1
          %s5521 = scalar_lea.sflag [#allocation8], %s5520
          %s5522 = sand.u32 %s230, 1
          %s5523 = scalar_lea.vmem [#allocation18], %s5522
          %5525 = dma.done %s5521, 16
        $region96: #{cva_net_forward.1} parent=91 // pred_fallthru
          _
      $region92: #{cva_net_forward.1} parent=5 // pred_fallthru
        _
    $region6: #{cva_net_forward.1} parent=1 // loop_footer
      %s26 = sadd.s32 1, %s22
    $region7: #{cva_net_forward.1} parent=1 // loop_footer_branch
      %21 = sbr.rel target = $region3
    $region8: #{cva_net_forward.1} parent=1 // loop_exit
      _
    %5526 = vsyncpa [#allocation7], 1
    %s5527 = scalar_lea.sflag [#allocation7], 1
    %5528 = vsyncpa %s5527, 1
    %5529 = vsyncpa [#allocation10], 1
    %5530 = vsyncpa [#allocation13], 1
    %5531 = vsyncpa [#allocation16], 1
    %5532 = vsyncpa [#allocation8], 1
    %s5533 = scalar_lea.sflag [#allocation8], 1
    %5534 = vsyncpa %s5533, 1

</llo_original>
